<compile_context>
chip_gen: v6e
topology: v6e:2x2x1
jax: 0.10.0
libtpu: 0.0.40
codegen_flags: <defaults>
</compile_context>

<pallas_src>
import functools
import math

import jax
import jax.numpy as jnp
from jax.experimental import pallas as pl
from jax.experimental.pallas import tpu as pltpu

EPS = 1e-5      # nn.BatchNorm2d default eps
LANE = 128      # TPU lane width


def _rup(x, m):
    return ((x + m - 1) // m) * m


def _pick_tm(m):
    if m >= 4096:
        return 512
    if m >= 1024:
        return 256
    return min(64, _rup(m, 8))


# ---------------------------------------------------------------------------
# Pass A kernels: matmul (bf16 -> f32) + per-channel sum / sum-of-squares
# ---------------------------------------------------------------------------
def _mm_stats_kernel(x_ref, w_ref, y_ref, s_ref, q_ref):
    # x: (TM, Cin) bf16, w: (Cin, Cout) bf16 (resident), y: (TM, Cout) f32
    # s/q: (1, Cout) f32 accumulators, revisited across the M grid axis.
    y = jnp.dot(x_ref[...], w_ref[...], preferred_element_type=jnp.float32)
    y_ref[...] = y

    @pl.when(pl.program_id(0) == 0)
    def _():
        s_ref[...] = jnp.zeros_like(s_ref)
        q_ref[...] = jnp.zeros_like(q_ref)

    s_ref[...] += jnp.sum(y, axis=0, keepdims=True)
    q_ref[...] += jnp.sum(y * y, axis=0, keepdims=True)


def _conv3x3_stats_kernel(a_ref, w_ref, y_ref, s_ref, q_ref, *, H, W):
    # a: (1, (H+2)*(W+2)+8, C) bf16 zero-padded activation of one image (flattened spatial)
    # w: (9, C, C) bf16 (tap-major, resident), y: (1, H*(W+2), C) f32 raw conv output.
    Wp2 = W + 2
    Lout = H * Wp2
    C = a_ref.shape[-1]

    acc = jnp.zeros((Lout, C), jnp.float32)
    for kh in range(3):
        for kw in range(3):
            off = kh * Wp2 + kw
            patch = a_ref[0, off:off + Lout, :]          # shifted row window (in-kernel im2col)
            acc = acc + jnp.dot(patch, w_ref[kh * 3 + kw],
                                preferred_element_type=jnp.float32)

    # Mask wrap-around columns (w >= W inside each padded row) so they don't pollute stats.
    col = jax.lax.broadcasted_iota(jnp.int32, (Lout, 1), 0) % Wp2
    acc = jnp.where(col < W, acc, 0.0)
    y_ref[0, :, :] = acc

    @pl.when(pl.program_id(0) == 0)
    def _():
        s_ref[...] = jnp.zeros_like(s_ref)
        q_ref[...] = jnp.zeros_like(q_ref)

    s_ref[...] += jnp.sum(acc, axis=0, keepdims=True)
    q_ref[...] += jnp.sum(acc * acc, axis=0, keepdims=True)


# ---------------------------------------------------------------------------
# Pass B kernels: normalize (scale/shift) [+ residual] + ReLU
# ---------------------------------------------------------------------------
def _bn_relu_kernel(y_ref, sc_ref, sh_ref, o_ref):
    o_ref[...] = jnp.maximum(y_ref[...] * sc_ref[...] + sh_ref[...],
                             0.0).astype(o_ref.dtype)


def _bn_add_relu_kernel(y_ref, sc_ref, sh_ref, r_ref, o_ref):
    o_ref[...] = jnp.maximum(y_ref[...] * sc_ref[...] + sh_ref[...] + r_ref[...],
                             0.0).astype(o_ref.dtype)


# ---------------------------------------------------------------------------
# pallas_call wrappers
# ---------------------------------------------------------------------------
def _conv1x1_stats(x_bf16, w_bf16, tm):
    Mp, cin = x_bf16.shape
    cout = w_bf16.shape[1]
    return pl.pallas_call(
        _mm_stats_kernel,
        out_shape=(jax.ShapeDtypeStruct((Mp, cout), jnp.float32),
                   jax.ShapeDtypeStruct((1, cout), jnp.float32),
                   jax.ShapeDtypeStruct((1, cout), jnp.float32)),
        grid=(Mp // tm,),
        in_specs=[pl.BlockSpec((tm, cin), lambda i: (i, 0)),
                  pl.BlockSpec((cin, cout), lambda i: (0, 0))],
        out_specs=(pl.BlockSpec((tm, cout), lambda i: (i, 0)),
                   pl.BlockSpec((1, cout), lambda i: (0, 0)),
                   pl.BlockSpec((1, cout), lambda i: (0, 0))),
        compiler_params=pltpu.CompilerParams(
            dimension_semantics=("arbitrary",),
            vmem_limit_bytes=32 * 1024 * 1024),
    )(x_bf16, w_bf16)


def _conv3x3_stats(a_pad_flat, w_taps, H, W):
    N, Lp_in, C = a_pad_flat.shape
    Lout = H * (W + 2)
    kern = functools.partial(_conv3x3_stats_kernel, H=H, W=W)
    return pl.pallas_call(
        kern,
        out_shape=(jax.ShapeDtypeStruct((N, Lout, C), jnp.float32),
                   jax.ShapeDtypeStruct((1, C), jnp.float32),
                   jax.ShapeDtypeStruct((1, C), jnp.float32)),
        grid=(N,),
        in_specs=[pl.BlockSpec((1, Lp_in, C), lambda n: (n, 0, 0)),
                  pl.BlockSpec((9, C, C), lambda n: (0, 0, 0))],
        out_specs=(pl.BlockSpec((1, Lout, C), lambda n: (n, 0, 0)),
                   pl.BlockSpec((1, C), lambda n: (0, 0)),
                   pl.BlockSpec((1, C), lambda n: (0, 0))),
        compiler_params=pltpu.CompilerParams(
            dimension_semantics=("arbitrary",),
            vmem_limit_bytes=32 * 1024 * 1024),
    )(a_pad_flat, w_taps)


def _bn_act(y, scale, shift, res=None, out_dtype=jnp.bfloat16):
    M, C = y.shape
    tm = _pick_tm(M)
    Mp = _rup(M, tm)
    if Mp != M:
        y = jnp.pad(y, ((0, Mp - M), (0, 0)))
        if res is not None:
            res = jnp.pad(res, ((0, Mp - M), (0, 0)))

    in_specs = [pl.BlockSpec((tm, C), lambda i: (i, 0)),
                pl.BlockSpec((1, C), lambda i: (0, 0)),
                pl.BlockSpec((1, C), lambda i: (0, 0))]
    args = [y, scale, shift]
    kern = _bn_relu_kernel
    if res is not None:
        in_specs.append(pl.BlockSpec((tm, C), lambda i: (i, 0)))
        args.append(res)
        kern = _bn_add_relu_kernel

    out = pl.pallas_call(
        kern,
        out_shape=jax.ShapeDtypeStruct((Mp, C), out_dtype),
        grid=(Mp // tm,),
        in_specs=in_specs,
        out_specs=pl.BlockSpec((tm, C), lambda i: (i, 0)),
        compiler_params=pltpu.CompilerParams(dimension_semantics=("parallel",)),
    )(*args)
    return out[:M] if Mp != M else out


def _bn_scale_shift(s, q, gamma, beta, count):
    mean = s / count                                   # (1, C)
    var = jnp.maximum(q / count - mean * mean, 0.0)    # biased var, like PyTorch training BN
    inv = jax.lax.rsqrt(var + EPS)
    scale = gamma.reshape(1, -1) * inv
    shift = beta.reshape(1, -1) - mean * scale
    return scale.astype(jnp.float32), shift.astype(jnp.float32)


# ---------------------------------------------------------------------------
# Parameter init (deterministic; shapes match the PyTorch module's __init__)
# ---------------------------------------------------------------------------
def init_bottleneck_params(key, inplanes, planes):
    k1, k2, k3 = jax.random.split(key, 3)
    w1 = jax.random.normal(k1, (planes, inplanes, 1, 1), jnp.float32) / math.sqrt(inplanes)
    w2 = jax.random.normal(k2, (planes, planes, 3, 3), jnp.float32) / math.sqrt(9 * planes)
    w3 = jax.random.normal(k3, (planes * 4, planes, 1, 1), jnp.float32) / math.sqrt(planes)
    return {
        "w1": w1, "g1": jnp.ones((planes,), jnp.float32), "b1": jnp.zeros((planes,), jnp.float32),
        "w2": w2, "g2": jnp.ones((planes,), jnp.float32), "b2": jnp.zeros((planes,), jnp.float32),
        "w3": w3, "g3": jnp.ones((planes * 4,), jnp.float32), "b3": jnp.zeros((planes * 4,), jnp.float32),
    }


# ---------------------------------------------------------------------------
# Bottleneck forward (stride=1, downsample=None)
# ---------------------------------------------------------------------------
def bottleneck_forward(x_nchw, p):
    x = jnp.transpose(x_nchw, (0, 2, 3, 1)).astype(jnp.float32)  # NCHW -> NHWC
    N, H, W, cin = x.shape
    planes = p["w1"].shape[0]
    cout3 = planes * 4
    assert cin == cout3, "identity residual requires inplanes == 4*planes"

    C1 = _rup(cin, LANE)
    CP = _rup(planes, LANE)
    C3 = _rup(cout3, LANE)

    M = N * H * W
    tm = _pick_tm(M)
    Mp = _rup(M, tm)

    # ---- padded operands (layout glue only) ----
    x_flat = x.reshape(M, cin)
    x_res_f32 = jnp.pad(x_flat, ((0, Mp - M), (0, C1 - cin)))           # f32 residual
    x_bf16 = x_res_f32.astype(jnp.bfloat16)

    w1 = jnp.pad(jnp.transpose(p["w1"][:, :, 0, 0], (1, 0)),
                 ((0, C1 - cin), (0, CP - planes))).astype(jnp.bfloat16)
    w2 = jnp.transpose(p["w2"], (2, 3, 1, 0)).reshape(9, planes, planes)
    w2 = jnp.pad(w2, ((0, 0), (0, CP - planes), (0, CP - planes))).astype(jnp.bfloat16)
    w3 = jnp.pad(jnp.transpose(p["w3"][:, :, 0, 0], (1, 0)),
                 ((0, CP - planes), (0, C3 - cout3))).astype(jnp.bfloat16)

    g1 = jnp.pad(p["g1"], (0, CP - planes), constant_values=1.0)
    b1 = jnp.pad(p["b1"], (0, CP - planes))
    g2 = jnp.pad(p["g2"], (0, CP - planes), constant_values=1.0)
    b2 = jnp.pad(p["b2"], (0, CP - planes))
    g3 = jnp.pad(p["g3"], (0, C3 - cout3), constant_values=1.0)
    b3 = jnp.pad(p["b3"], (0, C3 - cout3))

    count = float(M)

    # ---- stage 1: 1x1 conv + bn1 + relu ----
    y1, s1, q1 = _conv1x1_stats(x_bf16, w1, tm)
    sc1, sh1 = _bn_scale_shift(s1, q1, g1, b1, count)
    a1 = _bn_act(y1, sc1, sh1, out_dtype=jnp.bfloat16)[:M]
    a1 = a1.reshape(N, H, W, CP)

    # zero-pad spatially (after ReLU) and flatten spatial for the in-kernel im2col;
    # +8 extra zero rows keep the last shifted tap window in-bounds.
    a1p = jnp.pad(a1, ((0, 0), (1, 1), (1, 1), (0, 0)))
    a1p = a1p.reshape(N, (H + 2) * (W + 2), CP)
    a1p = jnp.pad(a1p, ((0, 0), (0, 8), (0, 0)))

    # ---- stage 2: 3x3 conv (in-kernel im2col) + bn2 + relu ----
    y2, s2, q2 = _conv3x3_stats(a1p, w2, H, W)             # (N, H*(W+2), CP)
    sc2, sh2 = _bn_scale_shift(s2, q2, g2, b2, count)
    a2 = _bn_act(y2.reshape(N * H * (W + 2), CP), sc2, sh2, out_dtype=jnp.bfloat16)
    a2 = a2.reshape(N, H, W + 2, CP)[:, :, :W, :].reshape(M, CP)   # drop wrap columns

    # ---- stage 3: 1x1 conv + bn3 + residual add + relu ----
    a2p = jnp.pad(a2, ((0, Mp - M), (0, 0)))
    y3, s3, q3 = _conv1x1_stats(a2p, w3, tm)
    sc3, sh3 = _bn_scale_shift(s3, q3, g3, b3, count)
    out = _bn_act(y3, sc3, sh3, res=x_res_f32, out_dtype=jnp.float32)
    out = out[:M, :cout3].reshape(N, H, W, cout3)

    return jnp.transpose(out, (0, 3, 1, 2))  # NHWC -> NCHW


# ---------------------------------------------------------------------------
# Pure-JAX reference (mirrors bf16 matmul operands; BN in f32 training mode)
# ---------------------------------------------------------------------------
def _bn_train_ref(y, g, b):
    mean = jnp.mean(y, axis=(0, 1, 2), keepdims=True)
    var = jnp.mean((y - mean) ** 2, axis=(0, 1, 2), keepdims=True)
    return (y - mean) * jax.lax.rsqrt(var + EPS) * g + b


def bottleneck_reference(x_nchw, p):
    x = jnp.transpose(x_nchw, (0, 2, 3, 1)).astype(jnp.float32)
    dn = ("NHWC", "HWIO", "NHWC")

    def conv(a, w, pad):
        return jax.lax.conv_general_dilated(
            a.astype(jnp.bfloat16),
            jnp.transpose(w, (2, 3, 1, 0)).astype(jnp.bfloat16),
            (1, 1), pad, dimension_numbers=dn,
            preferred_element_type=jnp.float32)

    y = jax.nn.relu(_bn_train_ref(conv(x, p["w1"], "VALID"), p["g1"], p["b1"]))
    y = jax.nn.relu(_bn_train_ref(conv(y, p["w2"], ((1, 1), (1, 1))), p["g2"], p["b2"]))
    y = jax.nn.relu(_bn_train_ref(conv(y, p["w3"], "VALID"), p["g3"], p["b3"]) + x)
    return jnp.transpose(y, (0, 3, 1, 2))


if __name__ == "__main__":
    key = jax.random.PRNGKey(0)
    k_x, k_p = jax.random.split(key)

    # Small shapes: batch=2, inplanes=16, planes=4 (expansion 4 -> 16), spatial 8x8.
    N, inplanes, planes, H, W = 2, 16, 4, 8, 8
    x = jax.random.normal(k_x, (N, inplanes, H, W), jnp.float32)
    params = init_bottleneck_params(k_p, inplanes, planes)

    fwd = jax.jit(bottleneck_forward)
    out = jax.block_until_ready(fwd(x, params))
    assert out.shape == (N, planes * 4, H, W), out.shape

    ref = jax.block_until_ready(bottleneck_reference(x, params))
    max_err = float(jnp.max(jnp.abs(out - ref)))
    assert jnp.allclose(out, ref, atol=1e-2, rtol=1e-2), max_err

    print("KERNEL_OK")
</pallas_src>

<mosaic_0001>
module attributes {stable_mosaic.version = 11 : i64} {
  func.func @_mm_stats_kernel(%arg0: i32, %arg1: memref<64x128xbf16, #tpu.memory_space<vmem>>, %arg2: memref<128x128xbf16, #tpu.memory_space<vmem>>, %arg3: memref<64x128xf32, #tpu.memory_space<vmem>>, %arg4: memref<1x128xf32, #tpu.memory_space<vmem>>, %arg5: memref<1x128xf32, #tpu.memory_space<vmem>>) attributes {dimension_semantics = [#tpu.dimension_semantics<arbitrary>], iteration_bounds = array<i64: 2>, scalar_prefetch = 0 : i64, scratch_operands = 0 : i64, tpu.core_type = #tpu.core_type<tc>, window_params = [{transform_indices = @transform_0, window_bounds = array<i64: 64, 128>}, {pipeline_mode = #tpu.pipeline_mode<synchronous>, transform_indices = @transform_1, window_bounds = array<i64: 128, 128>}, {transform_indices = @transform_2, window_bounds = array<i64: 64, 128>}, {pipeline_mode = #tpu.pipeline_mode<synchronous>, transform_indices = @transform_3, window_bounds = array<i64: 1, 128>}, {pipeline_mode = #tpu.pipeline_mode<synchronous>, transform_indices = @transform_4, window_bounds = array<i64: 1, 128>}]} {
    %c0 = arith.constant 0 : index
    %c0_0 = arith.constant 0 : index
    %0 = vector.load %arg1[%c0, %c0_0] : memref<64x128xbf16, #tpu.memory_space<vmem>>, vector<64x128xbf16>
    %c0_1 = arith.constant 0 : index
    %c0_2 = arith.constant 0 : index
    %1 = vector.load %arg2[%c0_1, %c0_2] : memref<128x128xbf16, #tpu.memory_space<vmem>>, vector<128x128xbf16>
    %cst = arith.constant dense<0.000000e+00> : vector<64x128xf32>
    %2 = tpu.matmul %0, %1, %cst {dimension_numbers = #tpu.dot_dimension_numbers<[1], [0], [0], [1], [0, 0, 1, 1], [], []>} : vector<64x128xbf16>, vector<128x128xbf16>, vector<64x128xf32> -> vector<64x128xf32>
    %c0_3 = arith.constant 0 : index
    %c0_4 = arith.constant 0 : index
    %3 = vector.load %arg3[%c0_3, %c0_4] : memref<64x128xf32, #tpu.memory_space<vmem>>, vector<64x128xf32>
    tpu.vector_store %arg3[%c0_3, %c0_4], %2 {strides = array<i32>} : memref<64x128xf32, #tpu.memory_space<vmem>>, vector<64x128xf32>,
    %c0_i32 = arith.constant 0 : i32
    %4 = arith.cmpi eq, %arg0, %c0_i32 : i32
    %5 = arith.extui %4 : i1 to i32
    %c0_i32_5 = arith.constant 0 : i32
    %6 = arith.cmpi ne, %5, %c0_i32_5 : i32
    scf.if %6 {
      %cst_16 = arith.constant 0.000000e+00 : f32
      %18 = vector.broadcast %cst_16 : f32 to vector<1x128xf32>
      %c0_17 = arith.constant 0 : index
      %c0_18 = arith.constant 0 : index
      %19 = vector.load %arg4[%c0_17, %c0_18] : memref<1x128xf32, #tpu.memory_space<vmem>>, vector<1x128xf32>
      tpu.vector_store %arg4[%c0_17, %c0_18], %18 {strides = array<i32>} : memref<1x128xf32, #tpu.memory_space<vmem>>, vector<1x128xf32>,
      %cst_19 = arith.constant 0.000000e+00 : f32
      %20 = vector.broadcast %cst_19 : f32 to vector<1x128xf32>
      %c0_20 = arith.constant 0 : index
      %c0_21 = arith.constant 0 : index
      %21 = vector.load %arg5[%c0_20, %c0_21] : memref<1x128xf32, #tpu.memory_space<vmem>>, vector<1x128xf32>
      tpu.vector_store %arg5[%c0_20, %c0_21], %20 {strides = array<i32>} : memref<1x128xf32, #tpu.memory_space<vmem>>, vector<1x128xf32>,
    } else {
    }
    %c0_6 = arith.constant 0 : index
    %c0_7 = arith.constant 0 : index
    %7 = vector.load %arg4[%c0_6, %c0_7] : memref<1x128xf32, #tpu.memory_space<vmem>>, vector<1x128xf32>
    %cst_8 = arith.constant dense<0.000000e+00> : vector<128xf32>
    %8 = vector.multi_reduction <add>, %2, %cst_8 [0] : vector<64x128xf32> to vector<128xf32>
    %9 = vector.shape_cast %8 : vector<128xf32> to vector<1x128xf32>
    %10 = arith.addf %7, %9 : vector<1x128xf32>
    %c0_9 = arith.constant 0 : index
    %c0_10 = arith.constant 0 : index
    %11 = vector.load %arg4[%c0_9, %c0_10] : memref<1x128xf32, #tpu.memory_space<vmem>>, vector<1x128xf32>
    tpu.vector_store %arg4[%c0_9, %c0_10], %10 {strides = array<i32>} : memref<1x128xf32, #tpu.memory_space<vmem>>, vector<1x128xf32>,
    %c0_11 = arith.constant 0 : index
    %c0_12 = arith.constant 0 : index
    %12 = vector.load %arg5[%c0_11, %c0_12] : memref<1x128xf32, #tpu.memory_space<vmem>>, vector<1x128xf32>
    %13 = arith.mulf %2, %2 : vector<64x128xf32>
    %cst_13 = arith.constant dense<0.000000e+00> : vector<128xf32>
    %14 = vector.multi_reduction <add>, %13, %cst_13 [0] : vector<64x128xf32> to vector<128xf32>
    %15 = vector.shape_cast %14 : vector<128xf32> to vector<1x128xf32>
    %16 = arith.addf %12, %15 : vector<1x128xf32>
    %c0_14 = arith.constant 0 : index
    %c0_15 = arith.constant 0 : index
    %17 = vector.load %arg5[%c0_14, %c0_15] : memref<1x128xf32, #tpu.memory_space<vmem>>, vector<1x128xf32>
    tpu.vector_store %arg5[%c0_14, %c0_15], %16 {strides = array<i32>} : memref<1x128xf32, #tpu.memory_space<vmem>>, vector<1x128xf32>,
    return
  }
  func.func @transform_0(%arg0: i32) -> (i32, i32) {
    %c0_i32 = arith.constant 0 : i32
    %c0_i32_0 = arith.constant 0 : i32
    return %arg0, %c0_i32 : i32, i32
  }
  func.func @transform_1(%arg0: i32) -> (i32, i32) {
    %c0_i32 = arith.constant 0 : i32
    %c0_i32_0 = arith.constant 0 : i32
    %c0_i32_1 = arith.constant 0 : i32
    return %c0_i32, %c0_i32_0 : i32, i32
  }
  func.func @transform_2(%arg0: i32) -> (i32, i32) {
    %c0_i32 = arith.constant 0 : i32
    %c0_i32_0 = arith.constant 0 : i32
    return %arg0, %c0_i32 : i32, i32
  }
  func.func @transform_3(%arg0: i32) -> (i32, i32) {
    %c0_i32 = arith.constant 0 : i32
    %c0_i32_0 = arith.constant 0 : i32
    %c0_i32_1 = arith.constant 0 : i32
    return %c0_i32, %c0_i32_0 : i32, i32
  }
  func.func @transform_4(%arg0: i32) -> (i32, i32) {
    %c0_i32 = arith.constant 0 : i32
    %c0_i32_0 = arith.constant 0 : i32
    %c0_i32_1 = arith.constant 0 : i32
    return %c0_i32, %c0_i32_0 : i32, i32
  }
}

module attributes {stable_mosaic.version = 11 : i64} {
  func.func @_bn_relu_kernel(%arg0: i32, %arg1: memref<64x128xf32, #tpu.memory_space<vmem>>, %arg2: memref<1x128xf32, #tpu.memory_space<vmem>>, %arg3: memref<1x128xf32, #tpu.memory_space<vmem>>, %arg4: memref<64x128xbf16, #tpu.memory_space<vmem>>) attributes {dimension_semantics = [#tpu.dimension_semantics<parallel>], iteration_bounds = array<i64: 2>, scalar_prefetch = 0 : i64, scratch_operands = 0 : i64, tpu.core_type = #tpu.core_type<tc>, window_params = [{transform_indices = @transform_0, window_bounds = array<i64: 64, 128>}, {pipeline_mode = #tpu.pipeline_mode<synchronous>, transform_indices = @transform_1, window_bounds = array<i64: 1, 128>}, {pipeline_mode = #tpu.pipeline_mode<synchronous>, transform_indices = @transform_2, window_bounds = array<i64: 1, 128>}, {transform_indices = @transform_3, window_bounds = array<i64: 64, 128>}]} {
    %c0 = arith.constant 0 : index
    %c0_0 = arith.constant 0 : index
    %0 = vector.load %arg1[%c0, %c0_0] : memref<64x128xf32, #tpu.memory_space<vmem>>, vector<64x128xf32>
    %c0_1 = arith.constant 0 : index
    %c0_2 = arith.constant 0 : index
    %1 = vector.load %arg2[%c0_1, %c0_2] : memref<1x128xf32, #tpu.memory_space<vmem>>, vector<1x128xf32>
    %2 = vector.broadcast %1 : vector<1x128xf32> to vector<64x128xf32>
    %3 = arith.mulf %0, %2 : vector<64x128xf32>
    %c0_3 = arith.constant 0 : index
    %c0_4 = arith.constant 0 : index
    %4 = vector.load %arg3[%c0_3, %c0_4] : memref<1x128xf32, #tpu.memory_space<vmem>>, vector<1x128xf32>
    %5 = vector.broadcast %4 : vector<1x128xf32> to vector<64x128xf32>
    %6 = arith.addf %3, %5 : vector<64x128xf32>
    %cst = arith.constant 0.000000e+00 : f32
    %7 = vector.broadcast %cst : f32 to vector<64x128xf32>
    %8 = arith.maximumf %6, %7 : vector<64x128xf32>
    %9 = arith.truncf %8 : vector<64x128xf32> to vector<64x128xbf16>
    %c0_5 = arith.constant 0 : index
    %c0_6 = arith.constant 0 : index
    %10 = vector.load %arg4[%c0_5, %c0_6] : memref<64x128xbf16, #tpu.memory_space<vmem>>, vector<64x128xbf16>
    tpu.vector_store %arg4[%c0_5, %c0_6], %9 {strides = array<i32>} : memref<64x128xbf16, #tpu.memory_space<vmem>>, vector<64x128xbf16>,
    return
  }
  func.func @transform_0(%arg0: i32) -> (i32, i32) {
    %c0_i32 = arith.constant 0 : i32
    %c0_i32_0 = arith.constant 0 : i32
    return %arg0, %c0_i32 : i32, i32
  }
  func.func @transform_1(%arg0: i32) -> (i32, i32) {
    %c0_i32 = arith.constant 0 : i32
    %c0_i32_0 = arith.constant 0 : i32
    %c0_i32_1 = arith.constant 0 : i32
    return %c0_i32, %c0_i32_0 : i32, i32
  }
  func.func @transform_2(%arg0: i32) -> (i32, i32) {
    %c0_i32 = arith.constant 0 : i32
    %c0_i32_0 = arith.constant 0 : i32
    %c0_i32_1 = arith.constant 0 : i32
    return %c0_i32, %c0_i32_0 : i32, i32
  }
  func.func @transform_3(%arg0: i32) -> (i32, i32) {
    %c0_i32 = arith.constant 0 : i32
    %c0_i32_0 = arith.constant 0 : i32
    return %arg0, %c0_i32 : i32, i32
  }
}

module attributes {stable_mosaic.version = 11 : i64} {
  func.func @_conv3x3_stats_kernel(%arg0: i32, %arg1: memref<1x108x128xbf16, #tpu.memory_space<vmem>>, %arg2: memref<9x128x128xbf16, #tpu.memory_space<vmem>>, %arg3: memref<1x80x128xf32, #tpu.memory_space<vmem>>, %arg4: memref<1x128xf32, #tpu.memory_space<vmem>>, %arg5: memref<1x128xf32, #tpu.memory_space<vmem>>) attributes {dimension_semantics = [#tpu.dimension_semantics<arbitrary>], iteration_bounds = array<i64: 2>, scalar_prefetch = 0 : i64, scratch_operands = 0 : i64, tpu.core_type = #tpu.core_type<tc>, window_params = [{transform_indices = @transform_0, window_bounds = array<i64: 1, 108, 128>}, {pipeline_mode = #tpu.pipeline_mode<synchronous>, transform_indices = @transform_1, window_bounds = array<i64: 9, 128, 128>}, {transform_indices = @transform_2, window_bounds = array<i64: 1, 80, 128>}, {pipeline_mode = #tpu.pipeline_mode<synchronous>, transform_indices = @transform_3, window_bounds = array<i64: 1, 128>}, {pipeline_mode = #tpu.pipeline_mode<synchronous>, transform_indices = @transform_4, window_bounds = array<i64: 1, 128>}]} {
    %cst = arith.constant 0.000000e+00 : f32
    %0 = vector.broadcast %cst : f32 to vector<80x128xf32>
    %c0 = arith.constant 0 : index
    %c0_0 = arith.constant 0 : index
    %c0_1 = arith.constant 0 : index
    %1 = vector.load %arg1[%c0, %c0_0, %c0_1] : memref<1x108x128xbf16, #tpu.memory_space<vmem>>, vector<1x80x128xbf16>
    %2 = vector.shape_cast %1 : vector<1x80x128xbf16> to vector<80x128xbf16>
    %c0_2 = arith.constant 0 : index
    %c0_3 = arith.constant 0 : index
    %c0_4 = arith.constant 0 : index
    %3 = vector.load %arg2[%c0_2, %c0_3, %c0_4] : memref<9x128x128xbf16, #tpu.memory_space<vmem>>, vector<1x128x128xbf16>
    %4 = vector.shape_cast %3 : vector<1x128x128xbf16> to vector<128x128xbf16>
    %cst_5 = arith.constant dense<0.000000e+00> : vector<80x128xf32>
    %5 = tpu.matmul %2, %4, %cst_5 {dimension_numbers = #tpu.dot_dimension_numbers<[1], [0], [0], [1], [0, 0, 1, 1], [], []>} : vector<80x128xbf16>, vector<128x128xbf16>, vector<80x128xf32> -> vector<80x128xf32>
    %6 = arith.addf %0, %5 : vector<80x128xf32>
    %c0_6 = arith.constant 0 : index
    %c1 = arith.constant 1 : index
    %c0_7 = arith.constant 0 : index
    %7 = vector.load %arg1[%c0_6, %c1, %c0_7] : memref<1x108x128xbf16, #tpu.memory_space<vmem>>, vector<1x80x128xbf16>
    %8 = vector.shape_cast %7 : vector<1x80x128xbf16> to vector<80x128xbf16>
    %c1_8 = arith.constant 1 : index
    %c0_9 = arith.constant 0 : index
    %c0_10 = arith.constant 0 : index
    %9 = vector.load %arg2[%c1_8, %c0_9, %c0_10] : memref<9x128x128xbf16, #tpu.memory_space<vmem>>, vector<1x128x128xbf16>
    %10 = vector.shape_cast %9 : vector<1x128x128xbf16> to vector<128x128xbf16>
    %cst_11 = arith.constant dense<0.000000e+00> : vector<80x128xf32>
    %11 = tpu.matmul %8, %10, %cst_11 {dimension_numbers = #tpu.dot_dimension_numbers<[1], [0], [0], [1], [0, 0, 1, 1], [], []>} : vector<80x128xbf16>, vector<128x128xbf16>, vector<80x128xf32> -> vector<80x128xf32>
    %12 = arith.addf %6, %11 : vector<80x128xf32>
    %c0_12 = arith.constant 0 : index
    %c2 = arith.constant 2 : index
    %c0_13 = arith.constant 0 : index
    %13 = vector.load %arg1[%c0_12, %c2, %c0_13] : memref<1x108x128xbf16, #tpu.memory_space<vmem>>, vector<1x80x128xbf16>
    %14 = vector.shape_cast %13 : vector<1x80x128xbf16> to vector<80x128xbf16>
    %c2_14 = arith.constant 2 : index
    %c0_15 = arith.constant 0 : index
    %c0_16 = arith.constant 0 : index
    %15 = vector.load %arg2[%c2_14, %c0_15, %c0_16] : memref<9x128x128xbf16, #tpu.memory_space<vmem>>, vector<1x128x128xbf16>
    %16 = vector.shape_cast %15 : vector<1x128x128xbf16> to vector<128x128xbf16>
    %cst_17 = arith.constant dense<0.000000e+00> : vector<80x128xf32>
    %17 = tpu.matmul %14, %16, %cst_17 {dimension_numbers = #tpu.dot_dimension_numbers<[1], [0], [0], [1], [0, 0, 1, 1], [], []>} : vector<80x128xbf16>, vector<128x128xbf16>, vector<80x128xf32> -> vector<80x128xf32>
    %18 = arith.addf %12, %17 : vector<80x128xf32>
    %c0_18 = arith.constant 0 : index
    %c10 = arith.constant 10 : index
    %c0_19 = arith.constant 0 : index
    %19 = vector.load %arg1[%c0_18, %c10, %c0_19] : memref<1x108x128xbf16, #tpu.memory_space<vmem>>, vector<1x80x128xbf16>
    %20 = vector.shape_cast %19 : vector<1x80x128xbf16> to vector<80x128xbf16>
    %c3 = arith.constant 3 : index
    %c0_20 = arith.constant 0 : index
    %c0_21 = arith.constant 0 : index
    %21 = vector.load %arg2[%c3, %c0_20, %c0_21] : memref<9x128x128xbf16, #tpu.memory_space<vmem>>, vector<1x128x128xbf16>
    %22 = vector.shape_cast %21 : vector<1x128x128xbf16> to vector<128x128xbf16>
    %cst_22 = arith.constant dense<0.000000e+00> : vector<80x128xf32>
    %23 = tpu.matmul %20, %22, %cst_22 {dimension_numbers = #tpu.dot_dimension_numbers<[1], [0], [0], [1], [0, 0, 1, 1], [], []>} : vector<80x128xbf16>, vector<128x128xbf16>, vector<80x128xf32> -> vector<80x128xf32>
    %24 = arith.addf %18, %23 : vector<80x128xf32>
    %c0_23 = arith.constant 0 : index
    %c11 = arith.constant 11 : index
    %c0_24 = arith.constant 0 : index
    %25 = vector.load %arg1[%c0_23, %c11, %c0_24] : memref<1x108x128xbf16, #tpu.memory_space<vmem>>, vector<1x80x128xbf16>
    %26 = vector.shape_cast %25 : vector<1x80x128xbf16> to vector<80x128xbf16>
    %c4 = arith.constant 4 : index
    %c0_25 = arith.constant 0 : index
    %c0_26 = arith.constant 0 : index
    %27 = vector.load %arg2[%c4, %c0_25, %c0_26] : memref<9x128x128xbf16, #tpu.memory_space<vmem>>, vector<1x128x128xbf16>
    %28 = vector.shape_cast %27 : vector<1x128x128xbf16> to vector<128x128xbf16>
    %cst_27 = arith.constant dense<0.000000e+00> : vector<80x128xf32>
    %29 = tpu.matmul %26, %28, %cst_27 {dimension_numbers = #tpu.dot_dimension_numbers<[1], [0], [0], [1], [0, 0, 1, 1], [], []>} : vector<80x128xbf16>, vector<128x128xbf16>, vector<80x128xf32> -> vector<80x128xf32>
    %30 = arith.addf %24, %29 : vector<80x128xf32>
    %c0_28 = arith.constant 0 : index
    %c12 = arith.constant 12 : index
    %c0_29 = arith.constant 0 : index
    %31 = vector.load %arg1[%c0_28, %c12, %c0_29] : memref<1x108x128xbf16, #tpu.memory_space<vmem>>, vector<1x80x128xbf16>
    %32 = vector.shape_cast %31 : vector<1x80x128xbf16> to vector<80x128xbf16>
    %c5 = arith.constant 5 : index
    %c0_30 = arith.constant 0 : index
    %c0_31 = arith.constant 0 : index
    %33 = vector.load %arg2[%c5, %c0_30, %c0_31] : memref<9x128x128xbf16, #tpu.memory_space<vmem>>, vector<1x128x128xbf16>
    %34 = vector.shape_cast %33 : vector<1x128x128xbf16> to vector<128x128xbf16>
    %cst_32 = arith.constant dense<0.000000e+00> : vector<80x128xf32>
    %35 = tpu.matmul %32, %34, %cst_32 {dimension_numbers = #tpu.dot_dimension_numbers<[1], [0], [0], [1], [0, 0, 1, 1], [], []>} : vector<80x128xbf16>, vector<128x128xbf16>, vector<80x128xf32> -> vector<80x128xf32>
    %36 = arith.addf %30, %35 : vector<80x128xf32>
    %c0_33 = arith.constant 0 : index
    %c20 = arith.constant 20 : index
    %c0_34 = arith.constant 0 : index
    %37 = vector.load %arg1[%c0_33, %c20, %c0_34] : memref<1x108x128xbf16, #tpu.memory_space<vmem>>, vector<1x80x128xbf16>
    %38 = vector.shape_cast %37 : vector<1x80x128xbf16> to vector<80x128xbf16>
    %c6 = arith.constant 6 : index
    %c0_35 = arith.constant 0 : index
    %c0_36 = arith.constant 0 : index
    %39 = vector.load %arg2[%c6, %c0_35, %c0_36] : memref<9x128x128xbf16, #tpu.memory_space<vmem>>, vector<1x128x128xbf16>
    %40 = vector.shape_cast %39 : vector<1x128x128xbf16> to vector<128x128xbf16>
    %cst_37 = arith.constant dense<0.000000e+00> : vector<80x128xf32>
    %41 = tpu.matmul %38, %40, %cst_37 {dimension_numbers = #tpu.dot_dimension_numbers<[1], [0], [0], [1], [0, 0, 1, 1], [], []>} : vector<80x128xbf16>, vector<128x128xbf16>, vector<80x128xf32> -> vector<80x128xf32>
    %42 = arith.addf %36, %41 : vector<80x128xf32>
    %c0_38 = arith.constant 0 : index
    %c21 = arith.constant 21 : index
    %c0_39 = arith.constant 0 : index
    %43 = vector.load %arg1[%c0_38, %c21, %c0_39] : memref<1x108x128xbf16, #tpu.memory_space<vmem>>, vector<1x80x128xbf16>
    %44 = vector.shape_cast %43 : vector<1x80x128xbf16> to vector<80x128xbf16>
    %c7 = arith.constant 7 : index
    %c0_40 = arith.constant 0 : index
    %c0_41 = arith.constant 0 : index
    %45 = vector.load %arg2[%c7, %c0_40, %c0_41] : memref<9x128x128xbf16, #tpu.memory_space<vmem>>, vector<1x128x128xbf16>
    %46 = vector.shape_cast %45 : vector<1x128x128xbf16> to vector<128x128xbf16>
    %cst_42 = arith.constant dense<0.000000e+00> : vector<80x128xf32>
    %47 = tpu.matmul %44, %46, %cst_42 {dimension_numbers = #tpu.dot_dimension_numbers<[1], [0], [0], [1], [0, 0, 1, 1], [], []>} : vector<80x128xbf16>, vector<128x128xbf16>, vector<80x128xf32> -> vector<80x128xf32>
    %48 = arith.addf %42, %47 : vector<80x128xf32>
    %c0_43 = arith.constant 0 : index
    %c22 = arith.constant 22 : index
    %c0_44 = arith.constant 0 : index
    %49 = vector.load %arg1[%c0_43, %c22, %c0_44] : memref<1x108x128xbf16, #tpu.memory_space<vmem>>, vector<1x80x128xbf16>
    %50 = vector.shape_cast %49 : vector<1x80x128xbf16> to vector<80x128xbf16>
    %c8 = arith.constant 8 : index
    %c0_45 = arith.constant 0 : index
    %c0_46 = arith.constant 0 : index
    %51 = vector.load %arg2[%c8, %c0_45, %c0_46] : memref<9x128x128xbf16, #tpu.memory_space<vmem>>, vector<1x128x128xbf16>
    %52 = vector.shape_cast %51 : vector<1x128x128xbf16> to vector<128x128xbf16>
    %cst_47 = arith.constant dense<0.000000e+00> : vector<80x128xf32>
    %53 = tpu.matmul %50, %52, %cst_47 {dimension_numbers = #tpu.dot_dimension_numbers<[1], [0], [0], [1], [0, 0, 1, 1], [], []>} : vector<80x128xbf16>, vector<128x128xbf16>, vector<80x128xf32> -> vector<80x128xf32>
    %54 = arith.addf %48, %53 : vector<80x128xf32>
    %55 = tpu.iota {dimensions = array<i32: 0>} : vector<80x1xi32>
    %c10_i32 = arith.constant 10 : i32
    %c0_i32 = arith.constant 0 : i32
    %56 = arith.cmpi eq, %c10_i32, %c0_i32 : i32
    %c1_i32 = arith.constant 1 : i32
    %57 = arith.select %56, %c1_i32, %c10_i32 : i32
    %58 = vector.broadcast %57 : i32 to vector<80x1xi32>
    %59 = arith.remsi %55, %58 : vector<80x1xi32>
    %c0_i32_48 = arith.constant 0 : i32
    %60 = vector.broadcast %c0_i32_48 : i32 to vector<80x1xi32>
    %61 = arith.cmpi ne, %59, %60 : vector<80x1xi32>
    %c0_i32_49 = arith.constant 0 : i32
    %62 = vector.broadcast %c0_i32_49 : i32 to vector<80x1xi32>
    %63 = arith.cmpi slt, %59, %62 : vector<80x1xi32>
    %c0_i32_50 = arith.constant 0 : i32
    %64 = arith.cmpi slt, %57, %c0_i32_50 : i32
    %65 = vector.broadcast %64 : i1 to vector<80x1xi1>
    %66 = vector.broadcast %65 : vector<80x1xi1> to vector<80x1xi1>
    %67 = arith.xori %63, %66 : vector<80x1xi1>
    %68 = arith.andi %67, %61 : vector<80x1xi1>
    %69 = vector.broadcast %57 : i32 to vector<80x1xi32>
    %70 = arith.addi %59, %69 : vector<80x1xi32>
    %71 = arith.select %68, %70, %59 : vector<80x1xi1>, vector<80x1xi32>
    %c8_i32 = arith.constant 8 : i32
    %72 = vector.broadcast %c8_i32 : i32 to vector<80x1xi32>
    %73 = arith.cmpi slt, %71, %72 : vector<80x1xi32>
    %cst_51 = arith.constant 0.000000e+00 : f32
    %74 = vector.shape_cast %73 : vector<80x1xi1> to vector<80x1xi1>
    %75 = vector.broadcast %74 : vector<80x1xi1> to vector<80x128xi1>
    %76 = vector.broadcast %cst_51 : f32 to vector<80x128xf32>
    %77 = arith.select %75, %54, %76 : vector<80x128xi1>, vector<80x128xf32>
    %c0_52 = arith.constant 0 : index
    %c0_53 = arith.constant 0 : index
    %c0_54 = arith.constant 0 : index
    %78 = vector.load %arg3[%c0_52, %c0_53, %c0_54] : memref<1x80x128xf32, #tpu.memory_space<vmem>>, vector<1x80x128xf32>
    %79 = vector.shape_cast %78 : vector<1x80x128xf32> to vector<80x128xf32>
    %80 = vector.shape_cast %77 : vector<80x128xf32> to vector<1x80x128xf32>
    tpu.vector_store %arg3[%c0_52, %c0_53, %c0_54], %80 {strides = array<i32>} : memref<1x80x128xf32, #tpu.memory_space<vmem>>, vector<1x80x128xf32>,
    %c0_i32_55 = arith.constant 0 : i32
    %81 = arith.cmpi eq, %arg0, %c0_i32_55 : i32
    %82 = arith.extui %81 : i1 to i32
    %c0_i32_56 = arith.constant 0 : i32
    %83 = arith.cmpi ne, %82, %c0_i32_56 : i32
    scf.if %83 {
      %cst_67 = arith.constant 0.000000e+00 : f32
      %95 = vector.broadcast %cst_67 : f32 to vector<1x128xf32>
      %c0_68 = arith.constant 0 : index
      %c0_69 = arith.constant 0 : index
      %96 = vector.load %arg4[%c0_68, %c0_69] : memref<1x128xf32, #tpu.memory_space<vmem>>, vector<1x128xf32>
      tpu.vector_store %arg4[%c0_68, %c0_69], %95 {strides = array<i32>} : memref<1x128xf32, #tpu.memory_space<vmem>>, vector<1x128xf32>,
      %cst_70 = arith.constant 0.000000e+00 : f32
      %97 = vector.broadcast %cst_70 : f32 to vector<1x128xf32>
      %c0_71 = arith.constant 0 : index
      %c0_72 = arith.constant 0 : index
      %98 = vector.load %arg5[%c0_71, %c0_72] : memref<1x128xf32, #tpu.memory_space<vmem>>, vector<1x128xf32>
      tpu.vector_store %arg5[%c0_71, %c0_72], %97 {strides = array<i32>} : memref<1x128xf32, #tpu.memory_space<vmem>>, vector<1x128xf32>,
    } else {
    }
    %c0_57 = arith.constant 0 : index
    %c0_58 = arith.constant 0 : index
    %84 = vector.load %arg4[%c0_57, %c0_58] : memref<1x128xf32, #tpu.memory_space<vmem>>, vector<1x128xf32>
    %cst_59 = arith.constant dense<0.000000e+00> : vector<128xf32>
    %85 = vector.multi_reduction <add>, %77, %cst_59 [0] : vector<80x128xf32> to vector<128xf32>
    %86 = vector.shape_cast %85 : vector<128xf32> to vector<1x128xf32>
    %87 = arith.addf %84, %86 : vector<1x128xf32>
    %c0_60 = arith.constant 0 : index
    %c0_61 = arith.constant 0 : index
    %88 = vector.load %arg4[%c0_60, %c0_61] : memref<1x128xf32, #tpu.memory_space<vmem>>, vector<1x128xf32>
    tpu.vector_store %arg4[%c0_60, %c0_61], %87 {strides = array<i32>} : memref<1x128xf32, #tpu.memory_space<vmem>>, vector<1x128xf32>,
    %c0_62 = arith.constant 0 : index
    %c0_63 = arith.constant 0 : index
    %89 = vector.load %arg5[%c0_62, %c0_63] : memref<1x128xf32, #tpu.memory_space<vmem>>, vector<1x128xf32>
    %90 = arith.mulf %77, %77 : vector<80x128xf32>
    %cst_64 = arith.constant dense<0.000000e+00> : vector<128xf32>
    %91 = vector.multi_reduction <add>, %90, %cst_64 [0] : vector<80x128xf32> to vector<128xf32>
    %92 = vector.shape_cast %91 : vector<128xf32> to vector<1x128xf32>
    %93 = arith.addf %89, %92 : vector<1x128xf32>
    %c0_65 = arith.constant 0 : index
    %c0_66 = arith.constant 0 : index
    %94 = vector.load %arg5[%c0_65, %c0_66] : memref<1x128xf32, #tpu.memory_space<vmem>>, vector<1x128xf32>
    tpu.vector_store %arg5[%c0_65, %c0_66], %93 {strides = array<i32>} : memref<1x128xf32, #tpu.memory_space<vmem>>, vector<1x128xf32>,
    return
  }
  func.func @transform_0(%arg0: i32) -> (i32, i32, i32) {
    %c0_i32 = arith.constant 0 : i32
    %c0_i32_0 = arith.constant 0 : i32
    %c0_i32_1 = arith.constant 0 : i32
    return %arg0, %c0_i32, %c0_i32_0 : i32, i32, i32
  }
  func.func @transform_1(%arg0: i32) -> (i32, i32, i32) {
    %c0_i32 = arith.constant 0 : i32
    %c0_i32_0 = arith.constant 0 : i32
    %c0_i32_1 = arith.constant 0 : i32
    %c0_i32_2 = arith.constant 0 : i32
    return %c0_i32, %c0_i32_0, %c0_i32_1 : i32, i32, i32
  }
  func.func @transform_2(%arg0: i32) -> (i32, i32, i32) {
    %c0_i32 = arith.constant 0 : i32
    %c0_i32_0 = arith.constant 0 : i32
    %c0_i32_1 = arith.constant 0 : i32
    return %arg0, %c0_i32, %c0_i32_0 : i32, i32, i32
  }
  func.func @transform_3(%arg0: i32) -> (i32, i32) {
    %c0_i32 = arith.constant 0 : i32
    %c0_i32_0 = arith.constant 0 : i32
    %c0_i32_1 = arith.constant 0 : i32
    return %c0_i32, %c0_i32_0 : i32, i32
  }
  func.func @transform_4(%arg0: i32) -> (i32, i32) {
    %c0_i32 = arith.constant 0 : i32
    %c0_i32_0 = arith.constant 0 : i32
    %c0_i32_1 = arith.constant 0 : i32
    return %c0_i32, %c0_i32_0 : i32, i32
  }
}

module attributes {stable_mosaic.version = 11 : i64} {
  func.func @_bn_relu_kernel(%arg0: i32, %arg1: memref<64x128xf32, #tpu.memory_space<vmem>>, %arg2: memref<1x128xf32, #tpu.memory_space<vmem>>, %arg3: memref<1x128xf32, #tpu.memory_space<vmem>>, %arg4: memref<64x128xbf16, #tpu.memory_space<vmem>>) attributes {dimension_semantics = [#tpu.dimension_semantics<parallel>], iteration_bounds = array<i64: 3>, scalar_prefetch = 0 : i64, scratch_operands = 0 : i64, tpu.core_type = #tpu.core_type<tc>, window_params = [{transform_indices = @transform_0, window_bounds = array<i64: 64, 128>}, {pipeline_mode = #tpu.pipeline_mode<synchronous>, transform_indices = @transform_1, window_bounds = array<i64: 1, 128>}, {pipeline_mode = #tpu.pipeline_mode<synchronous>, transform_indices = @transform_2, window_bounds = array<i64: 1, 128>}, {transform_indices = @transform_3, window_bounds = array<i64: 64, 128>}]} {
    %c0 = arith.constant 0 : index
    %c0_0 = arith.constant 0 : index
    %0 = vector.load %arg1[%c0, %c0_0] : memref<64x128xf32, #tpu.memory_space<vmem>>, vector<64x128xf32>
    %c0_1 = arith.constant 0 : index
    %c0_2 = arith.constant 0 : index
    %1 = vector.load %arg2[%c0_1, %c0_2] : memref<1x128xf32, #tpu.memory_space<vmem>>, vector<1x128xf32>
    %2 = vector.broadcast %1 : vector<1x128xf32> to vector<64x128xf32>
    %3 = arith.mulf %0, %2 : vector<64x128xf32>
    %c0_3 = arith.constant 0 : index
    %c0_4 = arith.constant 0 : index
    %4 = vector.load %arg3[%c0_3, %c0_4] : memref<1x128xf32, #tpu.memory_space<vmem>>, vector<1x128xf32>
    %5 = vector.broadcast %4 : vector<1x128xf32> to vector<64x128xf32>
    %6 = arith.addf %3, %5 : vector<64x128xf32>
    %cst = arith.constant 0.000000e+00 : f32
    %7 = vector.broadcast %cst : f32 to vector<64x128xf32>
    %8 = arith.maximumf %6, %7 : vector<64x128xf32>
    %9 = arith.truncf %8 : vector<64x128xf32> to vector<64x128xbf16>
    %c0_5 = arith.constant 0 : index
    %c0_6 = arith.constant 0 : index
    %10 = vector.load %arg4[%c0_5, %c0_6] : memref<64x128xbf16, #tpu.memory_space<vmem>>, vector<64x128xbf16>
    tpu.vector_store %arg4[%c0_5, %c0_6], %9 {strides = array<i32>} : memref<64x128xbf16, #tpu.memory_space<vmem>>, vector<64x128xbf16>,
    return
  }
  func.func @transform_0(%arg0: i32) -> (i32, i32) {
    %c0_i32 = arith.constant 0 : i32
    %c0_i32_0 = arith.constant 0 : i32
    return %arg0, %c0_i32 : i32, i32
  }
  func.func @transform_1(%arg0: i32) -> (i32, i32) {
    %c0_i32 = arith.constant 0 : i32
    %c0_i32_0 = arith.constant 0 : i32
    %c0_i32_1 = arith.constant 0 : i32
    return %c0_i32, %c0_i32_0 : i32, i32
  }
  func.func @transform_2(%arg0: i32) -> (i32, i32) {
    %c0_i32 = arith.constant 0 : i32
    %c0_i32_0 = arith.constant 0 : i32
    %c0_i32_1 = arith.constant 0 : i32
    return %c0_i32, %c0_i32_0 : i32, i32
  }
  func.func @transform_3(%arg0: i32) -> (i32, i32) {
    %c0_i32 = arith.constant 0 : i32
    %c0_i32_0 = arith.constant 0 : i32
    return %arg0, %c0_i32 : i32, i32
  }
}

module attributes {stable_mosaic.version = 11 : i64} {
  func.func @_bn_add_relu_kernel(%arg0: i32, %arg1: memref<64x128xf32, #tpu.memory_space<vmem>>, %arg2: memref<1x128xf32, #tpu.memory_space<vmem>>, %arg3: memref<1x128xf32, #tpu.memory_space<vmem>>, %arg4: memref<64x128xf32, #tpu.memory_space<vmem>>, %arg5: memref<64x128xf32, #tpu.memory_space<vmem>>) attributes {dimension_semantics = [#tpu.dimension_semantics<parallel>], iteration_bounds = array<i64: 2>, scalar_prefetch = 0 : i64, scratch_operands = 0 : i64, tpu.core_type = #tpu.core_type<tc>, window_params = [{transform_indices = @transform_0, window_bounds = array<i64: 64, 128>}, {pipeline_mode = #tpu.pipeline_mode<synchronous>, transform_indices = @transform_1, window_bounds = array<i64: 1, 128>}, {pipeline_mode = #tpu.pipeline_mode<synchronous>, transform_indices = @transform_2, window_bounds = array<i64: 1, 128>}, {transform_indices = @transform_3, window_bounds = array<i64: 64, 128>}, {transform_indices = @transform_4, window_bounds = array<i64: 64, 128>}]} {
    %c0 = arith.constant 0 : index
    %c0_0 = arith.constant 0 : index
    %0 = vector.load %arg1[%c0, %c0_0] : memref<64x128xf32, #tpu.memory_space<vmem>>, vector<64x128xf32>
    %c0_1 = arith.constant 0 : index
    %c0_2 = arith.constant 0 : index
    %1 = vector.load %arg2[%c0_1, %c0_2] : memref<1x128xf32, #tpu.memory_space<vmem>>, vector<1x128xf32>
    %2 = vector.broadcast %1 : vector<1x128xf32> to vector<64x128xf32>
    %3 = arith.mulf %0, %2 : vector<64x128xf32>
    %c0_3 = arith.constant 0 : index
    %c0_4 = arith.constant 0 : index
    %4 = vector.load %arg3[%c0_3, %c0_4] : memref<1x128xf32, #tpu.memory_space<vmem>>, vector<1x128xf32>
    %5 = vector.broadcast %4 : vector<1x128xf32> to vector<64x128xf32>
    %6 = arith.addf %3, %5 : vector<64x128xf32>
    %c0_5 = arith.constant 0 : index
    %c0_6 = arith.constant 0 : index
    %7 = vector.load %arg4[%c0_5, %c0_6] : memref<64x128xf32, #tpu.memory_space<vmem>>, vector<64x128xf32>
    %8 = arith.addf %6, %7 : vector<64x128xf32>
    %cst = arith.constant 0.000000e+00 : f32
    %9 = vector.broadcast %cst : f32 to vector<64x128xf32>
    %10 = arith.maximumf %8, %9 : vector<64x128xf32>
    %c0_7 = arith.constant 0 : index
    %c0_8 = arith.constant 0 : index
    %11 = vector.load %arg5[%c0_7, %c0_8] : memref<64x128xf32, #tpu.memory_space<vmem>>, vector<64x128xf32>
    tpu.vector_store %arg5[%c0_7, %c0_8], %10 {strides = array<i32>} : memref<64x128xf32, #tpu.memory_space<vmem>>, vector<64x128xf32>,
    return
  }
  func.func @transform_0(%arg0: i32) -> (i32, i32) {
    %c0_i32 = arith.constant 0 : i32
    %c0_i32_0 = arith.constant 0 : i32
    return %arg0, %c0_i32 : i32, i32
  }
  func.func @transform_1(%arg0: i32) -> (i32, i32) {
    %c0_i32 = arith.constant 0 : i32
    %c0_i32_0 = arith.constant 0 : i32
    %c0_i32_1 = arith.constant 0 : i32
    return %c0_i32, %c0_i32_0 : i32, i32
  }
  func.func @transform_2(%arg0: i32) -> (i32, i32) {
    %c0_i32 = arith.constant 0 : i32
    %c0_i32_0 = arith.constant 0 : i32
    %c0_i32_1 = arith.constant 0 : i32
    return %c0_i32, %c0_i32_0 : i32, i32
  }
  func.func @transform_3(%arg0: i32) -> (i32, i32) {
    %c0_i32 = arith.constant 0 : i32
    %c0_i32_0 = arith.constant 0 : i32
    return %arg0, %c0_i32 : i32, i32
  }
  func.func @transform_4(%arg0: i32) -> (i32, i32) {
    %c0_i32 = arith.constant 0 : i32
    %c0_i32_0 = arith.constant 0 : i32
    return %arg0, %c0_i32 : i32, i32
  }
}

</mosaic_0001>

<llo_original>
// kernel: bottleneck_forward.7
$region0: #{bottleneck_forward.7}
  #allocation0 [shape = 'u32[]', space=smem, size = 0x4, offset = 0x4, fixed_abs, tag = 'smem constant byte address 0x4 - core index']
  #allocation1 [shape = 'u32[144,128]{1,0:T(1,128)}', space=vmem, size = 0x12000, scoped, tag = 'internal scratch']
  %s0 = inlined_call_operand.vmem [shape: f32[128,128], index: 0, kind: input, shape index: {}]
  %s1 = inlined_call_operand.vmem [shape: f32[1,128], index: 1, kind: input, shape index: {}]
  %s2 = inlined_call_operand.vmem [shape: f32[1,128], index: 2, kind: input, shape index: {}]
  %s3 = inlined_call_operand.vmem [shape: bf16[128,128], index: 3, kind: output, shape index: {}]
  %s4 = sld [smem:[#allocation0]]
  $region45: #{bottleneck_forward.7} parent=0
    _
  %s6 = ssub.s32 1, %s4
  %s7 = scalar_select 0, %s6, %s4
  loop: start=0, step=1, limit=4
  $region2: #{bottleneck_forward.7} parent=0 // loop_pre_header
    _
  $region3: #{bottleneck_forward.7} parent=0 // loop_header
    %s9 = sphi 0, %s13
    %p10 = scmp.ge.s32.totalorder %s9, 4
    %s19 = sphi 0, %s21
    %s22 = sphi 0, %s19
    %s23 = sphi 0, %s22
    %s39 = sphi 0, %s23
    %s43 = sphi 0, %s43
    %s45 = sphi 0, %s43
    %s46 = sphi 0, %s45
    %s60 = sphi 0, %s46
    %s64 = sphi 0, %s64
    %s66 = sphi 0, %s64
    %s67 = sphi 0, %s66
    %s81 = sphi 0, %s67
    %s87 = sphi 0, %s89
    %s90 = sphi 0, %s87
    %s91 = sphi 0, %s90
    %s107 = sphi 0, %s91
  $region4: #{bottleneck_forward.7} parent=0 // loop_header_branch
    %12 = sbr.rel (%p10) target = $region8
  $region5: #{bottleneck_forward.7} parent=0 // loop_body
    %s14 = ssub.s32 %s9, 1
    %s15 = ssub.s32 %s9, 2
    %s16 = sadd.s32 %s9, 1
    %s17 = ssub.s32 %s9, %s16
    %p18 = scmp.eq.s32.totalorder %s17, 0
    %s20 = sadd.s32 %s19, 1
    %s21 = scalar_select %p18, %s19, %s20
    %p24 = pneg %p18
    %p25 = scmp.eq.s32.totalorder %s9, 1
    %p26 = por %p24, %p25
    %p27 = scmp.ne.s32.totalorder %s19, %s22
    %p28 = scmp.eq.s32.totalorder %s9, 0
    %p29 = por %p27, %p28
    %p30 = scmp.ne.s32.totalorder %s19, %s22
    %p31 = scmp.eq.s32.totalorder %s14, 1
    %p32 = por %p30, %p31
    %p33 = scmp.ne.s32.totalorder %s22, %s23
    %p34 = scmp.eq.s32.totalorder %s14, 0
    %p35 = por %p33, %p34
    %p36 = scmp.ne.s32.totalorder %s22, %s23
    %p37 = scmp.eq.s32.totalorder %s15, 1
    %p38 = por %p36, %p37
    %p40 = scmp.ne.s32.totalorder %s23, %s39
    %p41 = scmp.eq.s32.totalorder %s15, 0
    %p42 = por %p40, %p41
    %s44 = sadd.s32 %s43, 1
    %p47 = scmp.eq.s32.totalorder %s9, 1
    %p48 = scmp.ne.s32.totalorder %s43, %s45
    %p49 = scmp.eq.s32.totalorder %s9, 0
    %p50 = por %p48, %p49
    %p51 = scmp.ne.s32.totalorder %s43, %s45
    %p52 = scmp.eq.s32.totalorder %s14, 1
    %p53 = por %p51, %p52
    %p54 = scmp.ne.s32.totalorder %s45, %s46
    %p55 = scmp.eq.s32.totalorder %s14, 0
    %p56 = por %p54, %p55
    %p57 = scmp.ne.s32.totalorder %s45, %s46
    %p58 = scmp.eq.s32.totalorder %s15, 1
    %p59 = por %p57, %p58
    %p61 = scmp.ne.s32.totalorder %s46, %s60
    %p62 = scmp.eq.s32.totalorder %s15, 0
    %p63 = por %p61, %p62
    %s65 = sadd.s32 %s64, 1
    %p68 = scmp.eq.s32.totalorder %s9, 1
    %p69 = scmp.ne.s32.totalorder %s64, %s66
    %p70 = scmp.eq.s32.totalorder %s9, 0
    %p71 = por %p69, %p70
    %p72 = scmp.ne.s32.totalorder %s64, %s66
    %p73 = scmp.eq.s32.totalorder %s14, 1
    %p74 = por %p72, %p73
    %p75 = scmp.ne.s32.totalorder %s66, %s67
    %p76 = scmp.eq.s32.totalorder %s14, 0
    %p77 = por %p75, %p76
    %p78 = scmp.ne.s32.totalorder %s66, %s67
    %p79 = scmp.eq.s32.totalorder %s15, 1
    %p80 = por %p78, %p79
    %p82 = scmp.ne.s32.totalorder %s67, %s81
    %p83 = scmp.eq.s32.totalorder %s15, 0
    %p84 = por %p82, %p83
    %s85 = ssub.s32 %s9, %s16
    %p86 = scmp.eq.s32.totalorder %s85, 0
    %s88 = sadd.s32 %s87, 1
    %s89 = scalar_select %p86, %s87, %s88
    %p92 = pneg %p86
    %p93 = scmp.eq.s32.totalorder %s9, 1
    %p94 = por %p92, %p93
    %p95 = scmp.ne.s32.totalorder %s87, %s90
    %p96 = scmp.eq.s32.totalorder %s9, 0
    %p97 = por %p95, %p96
    %p98 = scmp.ne.s32.totalorder %s87, %s90
    %p99 = scmp.eq.s32.totalorder %s14, 1
    %p100 = por %p98, %p99
    %p101 = scmp.ne.s32.totalorder %s90, %s91
    %p102 = scmp.eq.s32.totalorder %s14, 0
    %p103 = por %p101, %p102
    %p104 = scmp.ne.s32.totalorder %s90, %s91
    %p105 = scmp.eq.s32.totalorder %s15, 1
    %p106 = por %p104, %p105
    %p108 = scmp.ne.s32.totalorder %s91, %s107
    %p109 = scmp.eq.s32.totalorder %s15, 0
    %p110 = por %p108, %p109
    %p111 = scmp.le.s32.totalorder 1, %s9
    %p112 = scmp.lt.s32.totalorder %s9, 3
    %p113 = pnand %p111, %p112
    %p114 = pneg %p113
    // Predicated region
    $region9: #{bottleneck_forward.7} parent=5 // pred_check
      _
    $region10: #{bottleneck_forward.7} parent=5 // pred_check_branch
      %116 = sbr.rel (%p113) target = $region12
    $region11: #{bottleneck_forward.7} parent=5 // pred_region
      %s117 = ssub.s32 %s9, 1
      // Predicated region
      $region13: #{bottleneck_forward.7} parent=11 // pred_check
        %p118 = pneg %p56
      $region14: #{bottleneck_forward.7} parent=11 // pred_check_branch
        %120 = sbr.rel (%p118) target = $region16
      $region15: #{bottleneck_forward.7} parent=11 // pred_region
        _
      $region16: #{bottleneck_forward.7} parent=11 // pred_fallthru
        _
      // Predicated region
      $region17: #{bottleneck_forward.7} parent=11 // pred_check
        %p121 = pneg %p77
      $region18: #{bottleneck_forward.7} parent=11 // pred_check_branch
        %123 = sbr.rel (%p121) target = $region20
      $region19: #{bottleneck_forward.7} parent=11 // pred_region
        _
      $region20: #{bottleneck_forward.7} parent=11 // pred_fallthru
        _
    $region12: #{bottleneck_forward.7} parent=5 // pred_fallthru
      _
    %p124 = scmp.lt.s32.totalorder %s9, 2
    // Predicated region
    $region21: #{bottleneck_forward.7} parent=5 // pred_check
      %p125 = pneg %p124
    $region22: #{bottleneck_forward.7} parent=5 // pred_check_branch
      %127 = sbr.rel (%p125) target = $region24
    $region23: #{bottleneck_forward.7} parent=5 // pred_region
      // Predicated region
      $region25: #{bottleneck_forward.7} parent=23 // pred_check
        %p128 = pneg %p29
      $region26: #{bottleneck_forward.7} parent=23 // pred_check_branch
        %130 = sbr.rel (%p128) target = $region28
      $region27: #{bottleneck_forward.7} parent=23 // pred_region
        %s131 = smul.u32 8, %s9
        %p132 = scmp.lt.s32.totalorder %s131, 15
        %s133 = scalar_select %p132, %s131, 15
        %s134 = smul.addr %s133, 8
        %s135 = scalar_lea.vmem %s0, %s134
        %s136 = smul.u32 8, %s9
      $region28: #{bottleneck_forward.7} parent=23 // pred_fallthru
        _
    $region24: #{bottleneck_forward.7} parent=5 // pred_fallthru
      _
    %p137 = scmp.le.s32.totalorder 1, %s9
    %p138 = scmp.lt.s32.totalorder %s9, 3
    %p139 = pnand %p137, %p138
    %p140 = pneg %p139
    // Predicated region
    $region29: #{bottleneck_forward.7} parent=5 // pred_check
      _
    $region30: #{bottleneck_forward.7} parent=5 // pred_check_branch
      %142 = sbr.rel (%p139) target = $region32
    $region31: #{bottleneck_forward.7} parent=5 // pred_region
      %s143 = ssub.s32 %s9, 1
      %s144 = smul.u32 8, %s14
      %p145 = scmp.lt.s32.totalorder %s144, 15
      %s146 = scalar_select %p145, %s144, 15
      %s147 = smul.addr %s146, 8
      %s148 = scalar_lea.vmem %s0, %s147
      %p149 = pneg %p35
      %p150 = pneg %p32
      %p151 = pneg %p56
      %p152 = pneg %p53
      %p153 = pneg %p77
      %p154 = pneg %p74
      %p155 = pneg %p103
      %p156 = pneg %p100
      %s157 = smul.u32 8, %s14
      %p158 = scmp.lt.s32.totalorder %s157, 15
      %s159 = scalar_select %p158, %s157, 15
      %s160 = smul.addr %s159, 4
      %s161 = scalar_lea.vmem %s3, %s160
      %s162 = smul.u32 8, %s14
      %p163 = scmp.lt.s32.totalorder %s162, 15
      %s164 = scalar_select %p163, %s162, 15
      %s165 = smul.addr %s164, 8
      %s166 = scalar_lea.vmem %s0, %s165
      %s167 = smul.u32 8, %s14
      %s168 = smul.u32 8, %s14
      %p169 = scmp.lt.s32.totalorder %s168, 15
      %s170 = scalar_select %p169, %s168, 15
      %s171 = smul.addr %s170, 4
      %s172 = scalar_lea.vmem %s3, %s171
      %s173 = smul.u32 8, %s14
      %v174 = vld [vmem:[%s166] sm:$0xff]
      %v175 = vld [vmem:[%s166 + $0x8] sm:$0xff]
      %v176 = vld [vmem:[%s166 + $0x10] sm:$0xff]
      %v177 = vld [vmem:[%s166 + $0x18] sm:$0xff]
      %v178 = vld [vmem:[%s166 + $0x20] sm:$0xff]
      %v179 = vld [vmem:[%s166 + $0x28] sm:$0xff]
      %v180 = vld [vmem:[%s166 + $0x30] sm:$0xff]
      %v181 = vld [vmem:[%s166 + $0x38] sm:$0xff]
      %v182 = vld [vmem:[%s1] sm:$0x1]
      %v184 = vlaneseq
      %v185 = vshrl.u32 %v184, 7
      %v186 = vsub.s32 0, %v185
      %v187 = vrot.slane %v182, %v186
      %v189 = vmul.f32 %v174, %v187
      %v190 = vmul.f32 %v175, %v187
      %v191 = vmul.f32 %v176, %v187
      %v192 = vmul.f32 %v177, %v187
      %v193 = vmul.f32 %v178, %v187
      %v194 = vmul.f32 %v179, %v187
      %v195 = vmul.f32 %v180, %v187
      %v196 = vmul.f32 %v181, %v187
      %v197 = vld [vmem:[%s2] sm:$0x1]
      %v199 = vlaneseq
      %v200 = vshrl.u32 %v199, 7
      %v201 = vsub.s32 0, %v200
      %v202 = vrot.slane %v197, %v201
      %v204 = vadd.f32 %v189, %v202
      %v205 = vadd.f32 %v190, %v202
      %v206 = vadd.f32 %v191, %v202
      %v207 = vadd.f32 %v192, %v202
      %v208 = vadd.f32 %v193, %v202
      %v209 = vadd.f32 %v194, %v202
      %v210 = vadd.f32 %v195, %v202
      %v211 = vadd.f32 %v196, %v202
      %v212 = vmax.f32 %v204, 0.0
      %v213 = vmax.f32 %v205, 0.0
      %v214 = vmax.f32 %v206, 0.0
      %v215 = vmax.f32 %v207, 0.0
      %v216 = vmax.f32 %v208, 0.0
      %v217 = vmax.f32 %v209, 0.0
      %v218 = vmax.f32 %v210, 0.0
      %v219 = vmax.f32 %v211, 0.0
      %v220 = vpack.c.bf16 %v213, %v212
      %v221 = vpack.c.bf16 %v215, %v214
      %v222 = vpack.c.bf16 %v217, %v216
      %v223 = vpack.c.bf16 %v219, %v218
      %v228 = vunpack.c.l.b16 %v220
      %v229 = vunpack.c.h.b16 %v220
      %v230 = vunpack.c.l.b16 %v221
      %v231 = vunpack.c.h.b16 %v221
      %v232 = vunpack.c.l.b16 %v222
      %v233 = vunpack.c.h.b16 %v222
      %v234 = vunpack.c.l.b16 %v223
      %v235 = vunpack.c.h.b16 %v223
      %v236 = vpack.c.b16 %v228, %v228
      %v237 = vpack.c.b16 %v229, %v229
      %v238 = vpack.c.b16 %v230, %v230
      %v239 = vpack.c.b16 %v231, %v231
      %v240 = vpack.c.b16 %v232, %v232
      %v241 = vpack.c.b16 %v233, %v233
      %v242 = vpack.c.b16 %v234, %v234
      %v243 = vpack.c.b16 %v235, %v235
      %252 = vst [vmem:[%s172] sm:$0xf] %v236
      %253 = vst [vmem:[%s172 + $0x4] sm:$0xf] %v237
      %254 = vst [vmem:[%s172 + $0x8] sm:$0xf] %v238
      %255 = vst [vmem:[%s172 + $0xc] sm:$0xf] %v239
      %256 = vst [vmem:[%s172 + $0x10] sm:$0xf] %v240
      %257 = vst [vmem:[%s172 + $0x14] sm:$0xf] %v241
      %258 = vst [vmem:[%s172 + $0x18] sm:$0xf] %v242
      %259 = vst [vmem:[%s172 + $0x1c] sm:$0xf] %v243
      %s260 = smul.u32 8, %s14
      %p261 = scmp.lt.s32.totalorder %s260, 15
      %s262 = scalar_select %p261, %s260, 15
      %s263 = smul.addr %s262, 4
      %s264 = scalar_lea.vmem %s3, %s263
      // Predicated region
      $region33: #{bottleneck_forward.7} parent=31 // pred_check
        %p265 = pneg %p100
      $region34: #{bottleneck_forward.7} parent=31 // pred_check_branch
        %267 = sbr.rel (%p265) target = $region36
      $region35: #{bottleneck_forward.7} parent=31 // pred_region
        %s268 = smul.u32 8, %s14
      $region36: #{bottleneck_forward.7} parent=31 // pred_fallthru
        _
    $region32: #{bottleneck_forward.7} parent=5 // pred_fallthru
      _
    %p269 = scmp.le.s32.totalorder 2, %s9
    // Predicated region
    $region37: #{bottleneck_forward.7} parent=5 // pred_check
      %p270 = pneg %p269
    $region38: #{bottleneck_forward.7} parent=5 // pred_check_branch
      %272 = sbr.rel (%p270) target = $region40
    $region39: #{bottleneck_forward.7} parent=5 // pred_region
      %s273 = ssub.s32 %s9, 2
      // Predicated region
      $region41: #{bottleneck_forward.7} parent=39 // pred_check
        %p274 = pneg %p106
      $region42: #{bottleneck_forward.7} parent=39 // pred_check_branch
        %276 = sbr.rel (%p274) target = $region44
      $region43: #{bottleneck_forward.7} parent=39 // pred_region
        %s277 = smul.u32 8, %s15
        %p278 = scmp.lt.s32.totalorder %s277, 15
        %s279 = scalar_select %p278, %s277, 15
        %s280 = smul.addr %s279, 4
        %s281 = scalar_lea.vmem %s3, %s280
      $region44: #{bottleneck_forward.7} parent=39 // pred_fallthru
        _
    $region40: #{bottleneck_forward.7} parent=5 // pred_fallthru
      _
  $region6: #{bottleneck_forward.7} parent=0 // loop_footer
    %s13 = sadd.s32 1, %s9
  $region7: #{bottleneck_forward.7} parent=0 // loop_footer_branch
    %8 = sbr.rel target = $region3
  $region8: #{bottleneck_forward.7} parent=0 // loop_exit
    _

// kernel: bottleneck_forward.6
$region0: #{bottleneck_forward.6}
  #allocation0 [shape = 'u32[]', space=smem, size = 0x4, offset = 0x4, fixed_abs, tag = 'smem constant byte address 0x4 - core index']
  #allocation1 [shape = 'u32[144,128]{1,0:T(1,128)}', space=vmem, size = 0x12000, scoped, tag = 'internal scratch']
  %s0 = inlined_call_operand.vmem [shape: bf16[128,128], index: 0, kind: input, shape index: {}]
  %s1 = inlined_call_operand.vmem [shape: bf16[128,128], index: 1, kind: input, shape index: {}]
  %s2 = inlined_call_operand.vmem [shape: f32[128,128], index: 2, kind: output, shape index: {0}]
  %s3 = inlined_call_operand.vmem [shape: f32[1,128], index: 3, kind: output, shape index: {1}]
  %s4 = inlined_call_operand.vmem [shape: f32[1,128], index: 4, kind: output, shape index: {2}]
  %5 = xla_tuple %s2, %s3, %s4
  %s6 = sld [smem:[#allocation0]]
  $region61: #{bottleneck_forward.6} parent=0
    _
  %s8 = ssub.s32 1, %s6
  %s9 = scalar_select 0, %s8, %s6
  loop: start=0, step=1, limit=4
  $region2: #{bottleneck_forward.6} parent=0 // loop_pre_header
    _
  $region3: #{bottleneck_forward.6} parent=0 // loop_header
    %s11 = sphi 0, %s15
    %p12 = scmp.ge.s32.totalorder %s11, 4
    %s21 = sphi 0, %s23
    %s24 = sphi 0, %s21
    %s25 = sphi 0, %s24
    %s41 = sphi 0, %s25
    %s45 = sphi 0, %s45
    %s47 = sphi 0, %s45
    %s48 = sphi 0, %s47
    %s62 = sphi 0, %s48
    %s68 = sphi 0, %s70
    %s71 = sphi 0, %s68
    %s72 = sphi 0, %s71
    %s88 = sphi 0, %s72
    %s92 = sphi 0, %s92
    %s94 = sphi 0, %s92
    %s95 = sphi 0, %s94
    %s109 = sphi 0, %s95
    %s113 = sphi 0, %s113
    %s115 = sphi 0, %s113
    %s116 = sphi 0, %s115
    %s130 = sphi 0, %s116
  $region4: #{bottleneck_forward.6} parent=0 // loop_header_branch
    %14 = sbr.rel (%p12) target = $region8
  $region5: #{bottleneck_forward.6} parent=0 // loop_body
    %s16 = ssub.s32 %s11, 1
    %s17 = ssub.s32 %s11, 2
    %s18 = sadd.s32 %s11, 1
    %s19 = ssub.s32 %s11, %s18
    %p20 = scmp.eq.s32.totalorder %s19, 0
    %s22 = sadd.s32 %s21, 1
    %s23 = scalar_select %p20, %s21, %s22
    %p26 = pneg %p20
    %p27 = scmp.eq.s32.totalorder %s11, 1
    %p28 = por %p26, %p27
    %p29 = scmp.ne.s32.totalorder %s21, %s24
    %p30 = scmp.eq.s32.totalorder %s11, 0
    %p31 = por %p29, %p30
    %p32 = scmp.ne.s32.totalorder %s21, %s24
    %p33 = scmp.eq.s32.totalorder %s16, 1
    %p34 = por %p32, %p33
    %p35 = scmp.ne.s32.totalorder %s24, %s25
    %p36 = scmp.eq.s32.totalorder %s16, 0
    %p37 = por %p35, %p36
    %p38 = scmp.ne.s32.totalorder %s24, %s25
    %p39 = scmp.eq.s32.totalorder %s17, 1
    %p40 = por %p38, %p39
    %p42 = scmp.ne.s32.totalorder %s25, %s41
    %p43 = scmp.eq.s32.totalorder %s17, 0
    %p44 = por %p42, %p43
    %s46 = sadd.s32 %s45, 1
    %p49 = scmp.eq.s32.totalorder %s11, 1
    %p50 = scmp.ne.s32.totalorder %s45, %s47
    %p51 = scmp.eq.s32.totalorder %s11, 0
    %p52 = por %p50, %p51
    %p53 = scmp.ne.s32.totalorder %s45, %s47
    %p54 = scmp.eq.s32.totalorder %s16, 1
    %p55 = por %p53, %p54
    %p56 = scmp.ne.s32.totalorder %s47, %s48
    %p57 = scmp.eq.s32.totalorder %s16, 0
    %p58 = por %p56, %p57
    %p59 = scmp.ne.s32.totalorder %s47, %s48
    %p60 = scmp.eq.s32.totalorder %s17, 1
    %p61 = por %p59, %p60
    %p63 = scmp.ne.s32.totalorder %s48, %s62
    %p64 = scmp.eq.s32.totalorder %s17, 0
    %p65 = por %p63, %p64
    %s66 = ssub.s32 %s11, %s18
    %p67 = scmp.eq.s32.totalorder %s66, 0
    %s69 = sadd.s32 %s68, 1
    %s70 = scalar_select %p67, %s68, %s69
    %p73 = pneg %p67
    %p74 = scmp.eq.s32.totalorder %s11, 1
    %p75 = por %p73, %p74
    %p76 = scmp.ne.s32.totalorder %s68, %s71
    %p77 = scmp.eq.s32.totalorder %s11, 0
    %p78 = por %p76, %p77
    %p79 = scmp.ne.s32.totalorder %s68, %s71
    %p80 = scmp.eq.s32.totalorder %s16, 1
    %p81 = por %p79, %p80
    %p82 = scmp.ne.s32.totalorder %s71, %s72
    %p83 = scmp.eq.s32.totalorder %s16, 0
    %p84 = por %p82, %p83
    %p85 = scmp.ne.s32.totalorder %s71, %s72
    %p86 = scmp.eq.s32.totalorder %s17, 1
    %p87 = por %p85, %p86
    %p89 = scmp.ne.s32.totalorder %s72, %s88
    %p90 = scmp.eq.s32.totalorder %s17, 0
    %p91 = por %p89, %p90
    %s93 = sadd.s32 %s92, 1
    %p96 = scmp.eq.s32.totalorder %s11, 1
    %p97 = scmp.ne.s32.totalorder %s92, %s94
    %p98 = scmp.eq.s32.totalorder %s11, 0
    %p99 = por %p97, %p98
    %p100 = scmp.ne.s32.totalorder %s92, %s94
    %p101 = scmp.eq.s32.totalorder %s16, 1
    %p102 = por %p100, %p101
    %p103 = scmp.ne.s32.totalorder %s94, %s95
    %p104 = scmp.eq.s32.totalorder %s16, 0
    %p105 = por %p103, %p104
    %p106 = scmp.ne.s32.totalorder %s94, %s95
    %p107 = scmp.eq.s32.totalorder %s17, 1
    %p108 = por %p106, %p107
    %p110 = scmp.ne.s32.totalorder %s95, %s109
    %p111 = scmp.eq.s32.totalorder %s17, 0
    %p112 = por %p110, %p111
    %s114 = sadd.s32 %s113, 1
    %p117 = scmp.eq.s32.totalorder %s11, 1
    %p118 = scmp.ne.s32.totalorder %s113, %s115
    %p119 = scmp.eq.s32.totalorder %s11, 0
    %p120 = por %p118, %p119
    %p121 = scmp.ne.s32.totalorder %s113, %s115
    %p122 = scmp.eq.s32.totalorder %s16, 1
    %p123 = por %p121, %p122
    %p124 = scmp.ne.s32.totalorder %s115, %s116
    %p125 = scmp.eq.s32.totalorder %s16, 0
    %p126 = por %p124, %p125
    %p127 = scmp.ne.s32.totalorder %s115, %s116
    %p128 = scmp.eq.s32.totalorder %s17, 1
    %p129 = por %p127, %p128
    %p131 = scmp.ne.s32.totalorder %s116, %s130
    %p132 = scmp.eq.s32.totalorder %s17, 0
    %p133 = por %p131, %p132
    %p134 = scmp.le.s32.totalorder 1, %s11
    %p135 = scmp.lt.s32.totalorder %s11, 3
    %p136 = pnand %p134, %p135
    %p137 = pneg %p136
    // Predicated region
    $region9: #{bottleneck_forward.6} parent=5 // pred_check
      _
    $region10: #{bottleneck_forward.6} parent=5 // pred_check_branch
      %139 = sbr.rel (%p136) target = $region12
    $region11: #{bottleneck_forward.6} parent=5 // pred_region
      %s140 = ssub.s32 %s11, 1
      // Predicated region
      $region13: #{bottleneck_forward.6} parent=11 // pred_check
        %p141 = pneg %p58
      $region14: #{bottleneck_forward.6} parent=11 // pred_check_branch
        %143 = sbr.rel (%p141) target = $region16
      $region15: #{bottleneck_forward.6} parent=11 // pred_region
        _
      $region16: #{bottleneck_forward.6} parent=11 // pred_fallthru
        _
    $region12: #{bottleneck_forward.6} parent=5 // pred_fallthru
      _
    %p144 = scmp.lt.s32.totalorder %s11, 2
    // Predicated region
    $region17: #{bottleneck_forward.6} parent=5 // pred_check
      %p145 = pneg %p144
    $region18: #{bottleneck_forward.6} parent=5 // pred_check_branch
      %147 = sbr.rel (%p145) target = $region20
    $region19: #{bottleneck_forward.6} parent=5 // pred_region
      // Predicated region
      $region21: #{bottleneck_forward.6} parent=19 // pred_check
        %p148 = pneg %p31
      $region22: #{bottleneck_forward.6} parent=19 // pred_check_branch
        %150 = sbr.rel (%p148) target = $region24
      $region23: #{bottleneck_forward.6} parent=19 // pred_region
        %s151 = smul.u32 8, %s11
        %p152 = scmp.lt.s32.totalorder %s151, 15
        %s153 = scalar_select %p152, %s151, 15
        %s154 = smul.addr %s153, 4
        %s155 = scalar_lea.vmem %s0, %s154
        %s156 = smul.u32 8, %s11
      $region24: #{bottleneck_forward.6} parent=19 // pred_fallthru
        _
    $region20: #{bottleneck_forward.6} parent=5 // pred_fallthru
      _
    %p157 = scmp.le.s32.totalorder 1, %s11
    %p158 = scmp.lt.s32.totalorder %s11, 3
    %p159 = pnand %p157, %p158
    %p160 = pneg %p159
    // Predicated region
    $region25: #{bottleneck_forward.6} parent=5 // pred_check
      _
    $region26: #{bottleneck_forward.6} parent=5 // pred_check_branch
      %162 = sbr.rel (%p159) target = $region28
    $region27: #{bottleneck_forward.6} parent=5 // pred_region
      %s163 = ssub.s32 %s11, 1
      %s164 = smul.u32 8, %s16
      %p165 = scmp.lt.s32.totalorder %s164, 15
      %s166 = scalar_select %p165, %s164, 15
      %s167 = smul.addr %s166, 4
      %s168 = scalar_lea.vmem %s0, %s167
      %p169 = pneg %p37
      %p170 = pneg %p34
      %p171 = pneg %p58
      %p172 = pneg %p55
      %p173 = pneg %p84
      %p174 = pneg %p81
      %s175 = smul.u32 8, %s16
      %p176 = scmp.lt.s32.totalorder %s175, 15
      %s177 = scalar_select %p176, %s175, 15
      %s178 = smul.addr %s177, 8
      %s179 = scalar_lea.vmem %s2, %s178
      %p180 = pneg %p105
      %p181 = pneg %p102
      %p182 = pneg %p126
      %p183 = pneg %p123
      %s184 = smul.u32 8, %s16
      %p185 = scmp.lt.s32.totalorder %s184, 15
      %s186 = scalar_select %p185, %s184, 15
      %s187 = smul.addr %s186, 4
      %s188 = scalar_lea.vmem %s0, %s187
      %s189 = smul.u32 8, %s16
      %s190 = smul.u32 8, %s16
      %p191 = scmp.lt.s32.totalorder %s190, 15
      %s192 = scalar_select %p191, %s190, 15
      %s193 = smul.addr %s192, 8
      %s194 = scalar_lea.vmem %s2, %s193
      %s195 = smul.u32 8, %s16
      %v197 = vld [vmem:[%s188] sm:$0xf]
      %v198 = vld [vmem:[%s188 + $0x4] sm:$0xf]
      %v199 = vld [vmem:[%s188 + $0x8] sm:$0xf]
      %v200 = vld [vmem:[%s188 + $0xc] sm:$0xf]
      %v201 = vld [vmem:[%s188 + $0x10] sm:$0xf]
      %v202 = vld [vmem:[%s188 + $0x14] sm:$0xf]
      %v203 = vld [vmem:[%s188 + $0x18] sm:$0xf]
      %v204 = vld [vmem:[%s188 + $0x1c] sm:$0xf]
      %v205 = vld [vmem:[%s1] sm:$0xf]
      %v206 = vld [vmem:[%s1 + $0x4] sm:$0xf]
      %v207 = vld [vmem:[%s1 + $0x8] sm:$0xf]
      %v208 = vld [vmem:[%s1 + $0xc] sm:$0xf]
      %v209 = vld [vmem:[%s1 + $0x10] sm:$0xf]
      %v210 = vld [vmem:[%s1 + $0x14] sm:$0xf]
      %v211 = vld [vmem:[%s1 + $0x18] sm:$0xf]
      %v212 = vld [vmem:[%s1 + $0x1c] sm:$0xf]
      %v213 = vld [vmem:[%s1 + $0x20] sm:$0xf]
      %v214 = vld [vmem:[%s1 + $0x24] sm:$0xf]
      %v215 = vld [vmem:[%s1 + $0x28] sm:$0xf]
      %v216 = vld [vmem:[%s1 + $0x2c] sm:$0xf]
      %v217 = vld [vmem:[%s1 + $0x30] sm:$0xf]
      %v218 = vld [vmem:[%s1 + $0x34] sm:$0xf]
      %v219 = vld [vmem:[%s1 + $0x38] sm:$0xf]
      %v220 = vld [vmem:[%s1 + $0x3c] sm:$0xf]
      %v229 = vunpack.c.l.b16 %v197
      %v230 = vunpack.c.l.b16 %v198
      %v231 = vunpack.c.l.b16 %v199
      %v232 = vunpack.c.l.b16 %v200
      %v233 = vunpack.c.l.b16 %v201
      %v234 = vunpack.c.l.b16 %v202
      %v235 = vunpack.c.l.b16 %v203
      %v236 = vunpack.c.l.b16 %v204
      %v237 = vpack.c.b16 %v230, %v229
      %v238 = vpack.c.b16 %v232, %v231
      %v239 = vpack.c.b16 %v234, %v233
      %v240 = vpack.c.b16 %v236, %v235
      %v261 = vunpack.c.l.b16 %v205
      %v262 = vunpack.c.l.b16 %v206
      %v263 = vunpack.c.l.b16 %v207
      %v264 = vunpack.c.l.b16 %v208
      %v265 = vunpack.c.l.b16 %v209
      %v266 = vunpack.c.l.b16 %v210
      %v267 = vunpack.c.l.b16 %v211
      %v268 = vunpack.c.l.b16 %v212
      %v269 = vunpack.c.l.b16 %v213
      %v270 = vunpack.c.l.b16 %v214
      %v271 = vunpack.c.l.b16 %v215
      %v272 = vunpack.c.l.b16 %v216
      %v273 = vunpack.c.l.b16 %v217
      %v274 = vunpack.c.l.b16 %v218
      %v275 = vunpack.c.l.b16 %v219
      %v276 = vunpack.c.l.b16 %v220
      %v277 = vpack.c.b16 %v262, %v261
      %v278 = vpack.c.b16 %v264, %v263
      %v279 = vpack.c.b16 %v266, %v265
      %v280 = vpack.c.b16 %v268, %v267
      %v281 = vpack.c.b16 %v270, %v269
      %v282 = vpack.c.b16 %v272, %v271
      %v283 = vpack.c.b16 %v274, %v273
      %v284 = vpack.c.b16 %v276, %v275
      %293 = vmatprep.subr.bf16.mxu0 0
      %294 = vmatpush1.bf16.msra.mxu0 %v284
      %295 = vmatprep.subr.bf16.mxu0 0
      %296 = vmatpush1.bf16.msra.mxu0 %v283
      %297 = vmatprep.subr.bf16.mxu0 0
      %298 = vmatpush1.bf16.msra.mxu0 %v282
      %299 = vmatprep.subr.bf16.mxu0 0
      %300 = vmatpush1.bf16.msra.mxu0 %v281
      %301 = vmatprep.subr.bf16.mxu0 0
      %302 = vmatpush1.bf16.msra.mxu0 %v280
      %303 = vmatprep.subr.bf16.mxu0 0
      %304 = vmatpush1.bf16.msra.mxu0 %v279
      %305 = vmatprep.subr.bf16.mxu0 0
      %306 = vmatpush1.bf16.msra.mxu0 %v278
      %307 = vmatprep.subr.bf16.mxu0 0
      %308 = vmatpush1.bf16.msra.mxu0 %v277
      %309 = vmatprep.subr.bf16.mxu0 0
      %310 = vmatpush2.bf16.msra.mxu0 0
      %311 = vmatprep.subr.bf16.mxu0 0
      %312 = vmatpush2.bf16.msra.mxu0 0
      %313 = vmatprep.subr.bf16.mxu0 0
      %314 = vmatpush2.bf16.msra.mxu0 0
      %315 = vmatprep.subr.bf16.mxu0 0
      %316 = vmatpush2.bf16.msra.mxu0 0
      %317 = vmatprep.subr.bf16.mxu0 0
      %318 = vmatpush2.bf16.msra.mxu0 0
      %319 = vmatprep.subr.bf16.mxu0 0
      %320 = vmatpush2.bf16.msra.mxu0 0
      %321 = vmatprep.subr.bf16.mxu0 0
      %322 = vmatpush2.bf16.msra.mxu0 0
      %323 = vmatprep.subr.bf16.mxu0 0
      %324 = vmatpush2.bf16.msra.mxu0 0
      %325 = vmatprep.mubr.bf16.mxu0 0
      %326 = vmatmul.mubr.bf16.gmra.mxu0 %v237
      %v327 = vpop.f32.mrf.mxu0
      %v328 = vadd.f32 0.0, %v327
      %v329 = vpop.f32.mrf.mxu0
      %v330 = vpop.f32.mrf.mxu0
      %v331 = vadd.f32 0.0, %v330
      %v332 = vpop.f32.mrf.mxu0
      %333 = vmatprep.mubr.bf16.mxu0 0
      %334 = vmatmul.mubr.bf16.gmra.mxu0 %v238
      %v335 = vpop.f32.mrf.mxu0
      %v336 = vadd.f32 0.0, %v335
      %v337 = vpop.f32.mrf.mxu0
      %v338 = vpop.f32.mrf.mxu0
      %v339 = vadd.f32 0.0, %v338
      %v340 = vpop.f32.mrf.mxu0
      %341 = vmatprep.mubr.bf16.mxu0 0
      %342 = vmatmul.mubr.bf16.gmra.mxu0 %v239
      %v343 = vpop.f32.mrf.mxu0
      %v344 = vadd.f32 0.0, %v343
      %v345 = vpop.f32.mrf.mxu0
      %v346 = vpop.f32.mrf.mxu0
      %v347 = vadd.f32 0.0, %v346
      %v348 = vpop.f32.mrf.mxu0
      %349 = vmatprep.mubr.bf16.mxu0 0
      %350 = vmatmul.mubr.bf16.gmra.mxu0 %v240
      %v351 = vpop.f32.mrf.mxu0
      %v352 = vadd.f32 0.0, %v351
      %v353 = vpop.f32.mrf.mxu0
      %v354 = vpop.f32.mrf.mxu0
      %v355 = vadd.f32 0.0, %v354
      %v356 = vpop.f32.mrf.mxu0
      %357 = vdwg.mxu0
      %358 = vst [vmem:[%s194] sm:$0xff] %v328
      %359 = vst [vmem:[%s194 + $0x8] sm:$0xff] %v331
      %360 = vst [vmem:[%s194 + $0x10] sm:$0xff] %v336
      %361 = vst [vmem:[%s194 + $0x18] sm:$0xff] %v339
      %362 = vst [vmem:[%s194 + $0x20] sm:$0xff] %v344
      %363 = vst [vmem:[%s194 + $0x28] sm:$0xff] %v347
      %364 = vst [vmem:[%s194 + $0x30] sm:$0xff] %v352
      %365 = vst [vmem:[%s194 + $0x38] sm:$0xff] %v355
      %p366 = scmp.eq.s32.totalorder %s16, 0
      // Predicated region
      $region29: #{bottleneck_forward.6} parent=27 // pred_check
        %p367 = pneg %p366
      $region30: #{bottleneck_forward.6} parent=27 // pred_check_branch
        %369 = sbr.rel (%p367) target = $region32
      $region31: #{bottleneck_forward.6} parent=27 // pred_region
        %370 = vst [vmem:[%s3] sm:$0x1] 0.0
        %371 = vst [vmem:[%s4] sm:$0x1] 0.0
      $region32: #{bottleneck_forward.6} parent=27 // pred_fallthru
        _
      %v372 = vld [vmem:[%s3] sm:$0x1]
      %v373 = vadd.f32 %v328, %v331
      %v374 = vadd.f32 %v373, %v336
      %v375 = vadd.f32 %v374, %v339
      %v376 = vadd.f32 %v375, %v344
      %v377 = vadd.f32 %v376, %v347
      %v378 = vadd.f32 %v377, %v352
      %v379 = vadd.f32 %v378, %v355
      %v380 = vrot.slane %v379, 4
      %v381 = vadd.f32 %v379, %v380
      %v382 = vrot.slane %v381, 2
      %v383 = vadd.f32 %v381, %v382
      %v384 = vrot.slane %v383, 1
      %v385 = vadd.f32 %v383, %v384
      %v386 = vadd.f32 %v372, %v385
      %387 = vst [vmem:[%s3] sm:$0x1] %v386
      %v388 = vld [vmem:[%s4] sm:$0x1]
      %v389 = vmul.f32 %v328, %v328
      %v390 = vmul.f32 %v331, %v331
      %v391 = vmul.f32 %v336, %v336
      %v392 = vmul.f32 %v339, %v339
      %v393 = vmul.f32 %v344, %v344
      %v394 = vmul.f32 %v347, %v347
      %v395 = vmul.f32 %v352, %v352
      %v396 = vmul.f32 %v355, %v355
      %v397 = vadd.f32 %v389, %v390
      %v398 = vadd.f32 %v397, %v391
      %v399 = vadd.f32 %v398, %v392
      %v400 = vadd.f32 %v399, %v393
      %v401 = vadd.f32 %v400, %v394
      %v402 = vadd.f32 %v401, %v395
      %v403 = vadd.f32 %v402, %v396
      %v404 = vrot.slane %v403, 4
      %v405 = vadd.f32 %v403, %v404
      %v406 = vrot.slane %v405, 2
      %v407 = vadd.f32 %v405, %v406
      %v408 = vrot.slane %v407, 1
      %v409 = vadd.f32 %v407, %v408
      %v410 = vadd.f32 %v388, %v409
      %411 = vst [vmem:[%s4] sm:$0x1] %v410
      %s412 = smul.u32 8, %s16
      %p413 = scmp.lt.s32.totalorder %s412, 15
      %s414 = scalar_select %p413, %s412, 15
      %s415 = smul.addr %s414, 8
      %s416 = scalar_lea.vmem %s2, %s415
      // Predicated region
      $region33: #{bottleneck_forward.6} parent=27 // pred_check
        %p417 = pneg %p81
      $region34: #{bottleneck_forward.6} parent=27 // pred_check_branch
        %419 = sbr.rel (%p417) target = $region36
      $region35: #{bottleneck_forward.6} parent=27 // pred_region
        %s420 = smul.u32 8, %s16
      $region36: #{bottleneck_forward.6} parent=27 // pred_fallthru
        _
      // Predicated region
      $region37: #{bottleneck_forward.6} parent=27 // pred_check
        %p421 = pneg %p102
      $region38: #{bottleneck_forward.6} parent=27 // pred_check_branch
        %423 = sbr.rel (%p421) target = $region40
      $region39: #{bottleneck_forward.6} parent=27 // pred_region
        _
      $region40: #{bottleneck_forward.6} parent=27 // pred_fallthru
        _
      // Predicated region
      $region41: #{bottleneck_forward.6} parent=27 // pred_check
        %p424 = pneg %p123
      $region42: #{bottleneck_forward.6} parent=27 // pred_check_branch
        %426 = sbr.rel (%p424) target = $region44
      $region43: #{bottleneck_forward.6} parent=27 // pred_region
        _
      $region44: #{bottleneck_forward.6} parent=27 // pred_fallthru
        _
      // Predicated region
      $region45: #{bottleneck_forward.6} parent=27 // pred_check
        %p427 = pneg %p102
      $region46: #{bottleneck_forward.6} parent=27 // pred_check_branch
        %429 = sbr.rel (%p427) target = $region48
      $region47: #{bottleneck_forward.6} parent=27 // pred_region
        _
      $region48: #{bottleneck_forward.6} parent=27 // pred_fallthru
        _
      // Predicated region
      $region49: #{bottleneck_forward.6} parent=27 // pred_check
        %p430 = pneg %p123
      $region50: #{bottleneck_forward.6} parent=27 // pred_check_branch
        %432 = sbr.rel (%p430) target = $region52
      $region51: #{bottleneck_forward.6} parent=27 // pred_region
        _
      $region52: #{bottleneck_forward.6} parent=27 // pred_fallthru
        _
    $region28: #{bottleneck_forward.6} parent=5 // pred_fallthru
      _
    %p433 = scmp.le.s32.totalorder 2, %s11
    // Predicated region
    $region53: #{bottleneck_forward.6} parent=5 // pred_check
      %p434 = pneg %p433
    $region54: #{bottleneck_forward.6} parent=5 // pred_check_branch
      %436 = sbr.rel (%p434) target = $region56
    $region55: #{bottleneck_forward.6} parent=5 // pred_region
      %s437 = ssub.s32 %s11, 2
      // Predicated region
      $region57: #{bottleneck_forward.6} parent=55 // pred_check
        %p438 = pneg %p87
      $region58: #{bottleneck_forward.6} parent=55 // pred_check_branch
        %440 = sbr.rel (%p438) target = $region60
      $region59: #{bottleneck_forward.6} parent=55 // pred_region
        %s441 = smul.u32 8, %s17
        %p442 = scmp.lt.s32.totalorder %s441, 15
        %s443 = scalar_select %p442, %s441, 15
        %s444 = smul.addr %s443, 8
        %s445 = scalar_lea.vmem %s2, %s444
      $region60: #{bottleneck_forward.6} parent=55 // pred_fallthru
        _
    $region56: #{bottleneck_forward.6} parent=5 // pred_fallthru
      _
  $region6: #{bottleneck_forward.6} parent=0 // loop_footer
    %s15 = sadd.s32 1, %s11
  $region7: #{bottleneck_forward.6} parent=0 // loop_footer_branch
    %10 = sbr.rel target = $region3
  $region8: #{bottleneck_forward.6} parent=0 // loop_exit
    _

// kernel: bottleneck_forward.9
$region0: #{bottleneck_forward.9}
  #allocation0 [shape = 'u32[]', space=smem, size = 0x4, offset = 0x4, fixed_abs, tag = 'smem constant byte address 0x4 - core index']
  #allocation1 [shape = 'u32[144,128]{1,0:T(1,128)}', space=vmem, size = 0x12000, scoped, tag = 'internal scratch']
  %s0 = inlined_call_operand.vmem [shape: f32[192,128], index: 0, kind: input, shape index: {}]
  %s1 = inlined_call_operand.vmem [shape: f32[1,128], index: 1, kind: input, shape index: {}]
  %s2 = inlined_call_operand.vmem [shape: f32[1,128], index: 2, kind: input, shape index: {}]
  %s3 = inlined_call_operand.vmem [shape: bf16[192,128], index: 3, kind: output, shape index: {}]
  %s4 = sld [smem:[#allocation0]]
  $region45: #{bottleneck_forward.9} parent=0
    _
  %s6 = ssub.s32 1, %s4
  %s7 = scalar_select 0, %s6, %s4
  loop: start=0, step=1, limit=5
  $region2: #{bottleneck_forward.9} parent=0 // loop_pre_header
    _
  $region3: #{bottleneck_forward.9} parent=0 // loop_header
    %s9 = sphi 0, %s13
    %p10 = scmp.ge.s32.totalorder %s9, 5
    %s19 = sphi 0, %s21
    %s22 = sphi 0, %s19
    %s23 = sphi 0, %s22
    %s39 = sphi 0, %s23
    %s43 = sphi 0, %s43
    %s45 = sphi 0, %s43
    %s46 = sphi 0, %s45
    %s60 = sphi 0, %s46
    %s64 = sphi 0, %s64
    %s66 = sphi 0, %s64
    %s67 = sphi 0, %s66
    %s81 = sphi 0, %s67
    %s87 = sphi 0, %s89
    %s90 = sphi 0, %s87
    %s91 = sphi 0, %s90
    %s107 = sphi 0, %s91
  $region4: #{bottleneck_forward.9} parent=0 // loop_header_branch
    %12 = sbr.rel (%p10) target = $region8
  $region5: #{bottleneck_forward.9} parent=0 // loop_body
    %s14 = ssub.s32 %s9, 1
    %s15 = ssub.s32 %s9, 2
    %s16 = sadd.s32 %s9, 1
    %s17 = ssub.s32 %s9, %s16
    %p18 = scmp.eq.s32.totalorder %s17, 0
    %s20 = sadd.s32 %s19, 1
    %s21 = scalar_select %p18, %s19, %s20
    %p24 = pneg %p18
    %p25 = scmp.eq.s32.totalorder %s9, 2
    %p26 = por %p24, %p25
    %p27 = scmp.ne.s32.totalorder %s19, %s22
    %p28 = scmp.eq.s32.totalorder %s9, 0
    %p29 = por %p27, %p28
    %p30 = scmp.ne.s32.totalorder %s19, %s22
    %p31 = scmp.eq.s32.totalorder %s14, 2
    %p32 = por %p30, %p31
    %p33 = scmp.ne.s32.totalorder %s22, %s23
    %p34 = scmp.eq.s32.totalorder %s14, 0
    %p35 = por %p33, %p34
    %p36 = scmp.ne.s32.totalorder %s22, %s23
    %p37 = scmp.eq.s32.totalorder %s15, 2
    %p38 = por %p36, %p37
    %p40 = scmp.ne.s32.totalorder %s23, %s39
    %p41 = scmp.eq.s32.totalorder %s15, 0
    %p42 = por %p40, %p41
    %s44 = sadd.s32 %s43, 1
    %p47 = scmp.eq.s32.totalorder %s9, 2
    %p48 = scmp.ne.s32.totalorder %s43, %s45
    %p49 = scmp.eq.s32.totalorder %s9, 0
    %p50 = por %p48, %p49
    %p51 = scmp.ne.s32.totalorder %s43, %s45
    %p52 = scmp.eq.s32.totalorder %s14, 2
    %p53 = por %p51, %p52
    %p54 = scmp.ne.s32.totalorder %s45, %s46
    %p55 = scmp.eq.s32.totalorder %s14, 0
    %p56 = por %p54, %p55
    %p57 = scmp.ne.s32.totalorder %s45, %s46
    %p58 = scmp.eq.s32.totalorder %s15, 2
    %p59 = por %p57, %p58
    %p61 = scmp.ne.s32.totalorder %s46, %s60
    %p62 = scmp.eq.s32.totalorder %s15, 0
    %p63 = por %p61, %p62
    %s65 = sadd.s32 %s64, 1
    %p68 = scmp.eq.s32.totalorder %s9, 2
    %p69 = scmp.ne.s32.totalorder %s64, %s66
    %p70 = scmp.eq.s32.totalorder %s9, 0
    %p71 = por %p69, %p70
    %p72 = scmp.ne.s32.totalorder %s64, %s66
    %p73 = scmp.eq.s32.totalorder %s14, 2
    %p74 = por %p72, %p73
    %p75 = scmp.ne.s32.totalorder %s66, %s67
    %p76 = scmp.eq.s32.totalorder %s14, 0
    %p77 = por %p75, %p76
    %p78 = scmp.ne.s32.totalorder %s66, %s67
    %p79 = scmp.eq.s32.totalorder %s15, 2
    %p80 = por %p78, %p79
    %p82 = scmp.ne.s32.totalorder %s67, %s81
    %p83 = scmp.eq.s32.totalorder %s15, 0
    %p84 = por %p82, %p83
    %s85 = ssub.s32 %s9, %s16
    %p86 = scmp.eq.s32.totalorder %s85, 0
    %s88 = sadd.s32 %s87, 1
    %s89 = scalar_select %p86, %s87, %s88
    %p92 = pneg %p86
    %p93 = scmp.eq.s32.totalorder %s9, 2
    %p94 = por %p92, %p93
    %p95 = scmp.ne.s32.totalorder %s87, %s90
    %p96 = scmp.eq.s32.totalorder %s9, 0
    %p97 = por %p95, %p96
    %p98 = scmp.ne.s32.totalorder %s87, %s90
    %p99 = scmp.eq.s32.totalorder %s14, 2
    %p100 = por %p98, %p99
    %p101 = scmp.ne.s32.totalorder %s90, %s91
    %p102 = scmp.eq.s32.totalorder %s14, 0
    %p103 = por %p101, %p102
    %p104 = scmp.ne.s32.totalorder %s90, %s91
    %p105 = scmp.eq.s32.totalorder %s15, 2
    %p106 = por %p104, %p105
    %p108 = scmp.ne.s32.totalorder %s91, %s107
    %p109 = scmp.eq.s32.totalorder %s15, 0
    %p110 = por %p108, %p109
    %p111 = scmp.le.s32.totalorder 1, %s9
    %p112 = scmp.lt.s32.totalorder %s9, 4
    %p113 = pnand %p111, %p112
    %p114 = pneg %p113
    // Predicated region
    $region9: #{bottleneck_forward.9} parent=5 // pred_check
      _
    $region10: #{bottleneck_forward.9} parent=5 // pred_check_branch
      %116 = sbr.rel (%p113) target = $region12
    $region11: #{bottleneck_forward.9} parent=5 // pred_region
      %s117 = ssub.s32 %s9, 1
      // Predicated region
      $region13: #{bottleneck_forward.9} parent=11 // pred_check
        %p118 = pneg %p56
      $region14: #{bottleneck_forward.9} parent=11 // pred_check_branch
        %120 = sbr.rel (%p118) target = $region16
      $region15: #{bottleneck_forward.9} parent=11 // pred_region
        _
      $region16: #{bottleneck_forward.9} parent=11 // pred_fallthru
        _
      // Predicated region
      $region17: #{bottleneck_forward.9} parent=11 // pred_check
        %p121 = pneg %p77
      $region18: #{bottleneck_forward.9} parent=11 // pred_check_branch
        %123 = sbr.rel (%p121) target = $region20
      $region19: #{bottleneck_forward.9} parent=11 // pred_region
        _
      $region20: #{bottleneck_forward.9} parent=11 // pred_fallthru
        _
    $region12: #{bottleneck_forward.9} parent=5 // pred_fallthru
      _
    %p124 = scmp.lt.s32.totalorder %s9, 3
    // Predicated region
    $region21: #{bottleneck_forward.9} parent=5 // pred_check
      %p125 = pneg %p124
    $region22: #{bottleneck_forward.9} parent=5 // pred_check_branch
      %127 = sbr.rel (%p125) target = $region24
    $region23: #{bottleneck_forward.9} parent=5 // pred_region
      // Predicated region
      $region25: #{bottleneck_forward.9} parent=23 // pred_check
        %p128 = pneg %p29
      $region26: #{bottleneck_forward.9} parent=23 // pred_check_branch
        %130 = sbr.rel (%p128) target = $region28
      $region27: #{bottleneck_forward.9} parent=23 // pred_region
        %s131 = smul.u32 8, %s9
        %p132 = scmp.lt.s32.totalorder %s131, 23
        %s133 = scalar_select %p132, %s131, 23
        %s134 = smul.addr %s133, 8
        %s135 = scalar_lea.vmem %s0, %s134
        %s136 = smul.u32 8, %s9
      $region28: #{bottleneck_forward.9} parent=23 // pred_fallthru
        _
    $region24: #{bottleneck_forward.9} parent=5 // pred_fallthru
      _
    %p137 = scmp.le.s32.totalorder 1, %s9
    %p138 = scmp.lt.s32.totalorder %s9, 4
    %p139 = pnand %p137, %p138
    %p140 = pneg %p139
    // Predicated region
    $region29: #{bottleneck_forward.9} parent=5 // pred_check
      _
    $region30: #{bottleneck_forward.9} parent=5 // pred_check_branch
      %142 = sbr.rel (%p139) target = $region32
    $region31: #{bottleneck_forward.9} parent=5 // pred_region
      %s143 = ssub.s32 %s9, 1
      %s144 = smul.u32 8, %s14
      %p145 = scmp.lt.s32.totalorder %s144, 23
      %s146 = scalar_select %p145, %s144, 23
      %s147 = smul.addr %s146, 8
      %s148 = scalar_lea.vmem %s0, %s147
      %p149 = pneg %p35
      %p150 = pneg %p32
      %p151 = pneg %p56
      %p152 = pneg %p53
      %p153 = pneg %p77
      %p154 = pneg %p74
      %p155 = pneg %p103
      %p156 = pneg %p100
      %s157 = smul.u32 8, %s14
      %p158 = scmp.lt.s32.totalorder %s157, 23
      %s159 = scalar_select %p158, %s157, 23
      %s160 = smul.addr %s159, 4
      %s161 = scalar_lea.vmem %s3, %s160
      %s162 = smul.u32 8, %s14
      %p163 = scmp.lt.s32.totalorder %s162, 23
      %s164 = scalar_select %p163, %s162, 23
      %s165 = smul.addr %s164, 8
      %s166 = scalar_lea.vmem %s0, %s165
      %s167 = smul.u32 8, %s14
      %s168 = smul.u32 8, %s14
      %p169 = scmp.lt.s32.totalorder %s168, 23
      %s170 = scalar_select %p169, %s168, 23
      %s171 = smul.addr %s170, 4
      %s172 = scalar_lea.vmem %s3, %s171
      %s173 = smul.u32 8, %s14
      %v174 = vld [vmem:[%s166] sm:$0xff]
      %v175 = vld [vmem:[%s166 + $0x8] sm:$0xff]
      %v176 = vld [vmem:[%s166 + $0x10] sm:$0xff]
      %v177 = vld [vmem:[%s166 + $0x18] sm:$0xff]
      %v178 = vld [vmem:[%s166 + $0x20] sm:$0xff]
      %v179 = vld [vmem:[%s166 + $0x28] sm:$0xff]
      %v180 = vld [vmem:[%s166 + $0x30] sm:$0xff]
      %v181 = vld [vmem:[%s166 + $0x38] sm:$0xff]
      %v182 = vld [vmem:[%s1] sm:$0x1]
      %v184 = vlaneseq
      %v185 = vshrl.u32 %v184, 7
      %v186 = vsub.s32 0, %v185
      %v187 = vrot.slane %v182, %v186
      %v189 = vmul.f32 %v174, %v187
      %v190 = vmul.f32 %v175, %v187
      %v191 = vmul.f32 %v176, %v187
      %v192 = vmul.f32 %v177, %v187
      %v193 = vmul.f32 %v178, %v187
      %v194 = vmul.f32 %v179, %v187
      %v195 = vmul.f32 %v180, %v187
      %v196 = vmul.f32 %v181, %v187
      %v197 = vld [vmem:[%s2] sm:$0x1]
      %v199 = vlaneseq
      %v200 = vshrl.u32 %v199, 7
      %v201 = vsub.s32 0, %v200
      %v202 = vrot.slane %v197, %v201
      %v204 = vadd.f32 %v189, %v202
      %v205 = vadd.f32 %v190, %v202
      %v206 = vadd.f32 %v191, %v202
      %v207 = vadd.f32 %v192, %v202
      %v208 = vadd.f32 %v193, %v202
      %v209 = vadd.f32 %v194, %v202
      %v210 = vadd.f32 %v195, %v202
      %v211 = vadd.f32 %v196, %v202
      %v212 = vmax.f32 %v204, 0.0
      %v213 = vmax.f32 %v205, 0.0
      %v214 = vmax.f32 %v206, 0.0
      %v215 = vmax.f32 %v207, 0.0
      %v216 = vmax.f32 %v208, 0.0
      %v217 = vmax.f32 %v209, 0.0
      %v218 = vmax.f32 %v210, 0.0
      %v219 = vmax.f32 %v211, 0.0
      %v220 = vpack.c.bf16 %v213, %v212
      %v221 = vpack.c.bf16 %v215, %v214
      %v222 = vpack.c.bf16 %v217, %v216
      %v223 = vpack.c.bf16 %v219, %v218
      %v228 = vunpack.c.l.b16 %v220
      %v229 = vunpack.c.h.b16 %v220
      %v230 = vunpack.c.l.b16 %v221
      %v231 = vunpack.c.h.b16 %v221
      %v232 = vunpack.c.l.b16 %v222
      %v233 = vunpack.c.h.b16 %v222
      %v234 = vunpack.c.l.b16 %v223
      %v235 = vunpack.c.h.b16 %v223
      %v236 = vpack.c.b16 %v228, %v228
      %v237 = vpack.c.b16 %v229, %v229
      %v238 = vpack.c.b16 %v230, %v230
      %v239 = vpack.c.b16 %v231, %v231
      %v240 = vpack.c.b16 %v232, %v232
      %v241 = vpack.c.b16 %v233, %v233
      %v242 = vpack.c.b16 %v234, %v234
      %v243 = vpack.c.b16 %v235, %v235
      %252 = vst [vmem:[%s172] sm:$0xf] %v236
      %253 = vst [vmem:[%s172 + $0x4] sm:$0xf] %v237
      %254 = vst [vmem:[%s172 + $0x8] sm:$0xf] %v238
      %255 = vst [vmem:[%s172 + $0xc] sm:$0xf] %v239
      %256 = vst [vmem:[%s172 + $0x10] sm:$0xf] %v240
      %257 = vst [vmem:[%s172 + $0x14] sm:$0xf] %v241
      %258 = vst [vmem:[%s172 + $0x18] sm:$0xf] %v242
      %259 = vst [vmem:[%s172 + $0x1c] sm:$0xf] %v243
      %s260 = smul.u32 8, %s14
      %p261 = scmp.lt.s32.totalorder %s260, 23
      %s262 = scalar_select %p261, %s260, 23
      %s263 = smul.addr %s262, 4
      %s264 = scalar_lea.vmem %s3, %s263
      // Predicated region
      $region33: #{bottleneck_forward.9} parent=31 // pred_check
        %p265 = pneg %p100
      $region34: #{bottleneck_forward.9} parent=31 // pred_check_branch
        %267 = sbr.rel (%p265) target = $region36
      $region35: #{bottleneck_forward.9} parent=31 // pred_region
        %s268 = smul.u32 8, %s14
      $region36: #{bottleneck_forward.9} parent=31 // pred_fallthru
        _
    $region32: #{bottleneck_forward.9} parent=5 // pred_fallthru
      _
    %p269 = scmp.le.s32.totalorder 2, %s9
    // Predicated region
    $region37: #{bottleneck_forward.9} parent=5 // pred_check
      %p270 = pneg %p269
    $region38: #{bottleneck_forward.9} parent=5 // pred_check_branch
      %272 = sbr.rel (%p270) target = $region40
    $region39: #{bottleneck_forward.9} parent=5 // pred_region
      %s273 = ssub.s32 %s9, 2
      // Predicated region
      $region41: #{bottleneck_forward.9} parent=39 // pred_check
        %p274 = pneg %p106
      $region42: #{bottleneck_forward.9} parent=39 // pred_check_branch
        %276 = sbr.rel (%p274) target = $region44
      $region43: #{bottleneck_forward.9} parent=39 // pred_region
        %s277 = smul.u32 8, %s15
        %p278 = scmp.lt.s32.totalorder %s277, 23
        %s279 = scalar_select %p278, %s277, 23
        %s280 = smul.addr %s279, 4
        %s281 = scalar_lea.vmem %s3, %s280
      $region44: #{bottleneck_forward.9} parent=39 // pred_fallthru
        _
    $region40: #{bottleneck_forward.9} parent=5 // pred_fallthru
      _
  $region6: #{bottleneck_forward.9} parent=0 // loop_footer
    %s13 = sadd.s32 1, %s9
  $region7: #{bottleneck_forward.9} parent=0 // loop_footer_branch
    %8 = sbr.rel target = $region3
  $region8: #{bottleneck_forward.9} parent=0 // loop_exit
    _

// kernel: bottleneck_forward.11
$region0: #{bottleneck_forward.11}
  #allocation0 [shape = 'u32[]', space=smem, size = 0x4, offset = 0x4, fixed_abs, tag = 'smem constant byte address 0x4 - core index']
  #allocation1 [shape = 'u32[144,128]{1,0:T(1,128)}', space=vmem, size = 0x12000, scoped, tag = 'internal scratch']
  %s0 = inlined_call_operand.vmem [shape: f32[128,128], index: 0, kind: input, shape index: {}]
  %s1 = inlined_call_operand.vmem [shape: f32[1,128], index: 1, kind: input, shape index: {}]
  %s2 = inlined_call_operand.vmem [shape: f32[1,128], index: 2, kind: input, shape index: {}]
  %s3 = inlined_call_operand.vmem [shape: f32[128,128], index: 3, kind: input, shape index: {}]
  %s4 = inlined_call_operand.hbm [shape: f32[128,128], index: 4, kind: output, shape index: {}]
  %s5 = sld [smem:[#allocation0]]
  $region49: #{bottleneck_forward.11} parent=0
    _
  %s7 = ssub.s32 1, %s5
  %s8 = scalar_select 0, %s7, %s5
  $region1: #{bottleneck_forward.11} parent=0
    #allocation2 [shape = 'u8[65536]{0}', space=vmem, size = 0x10000, scoped, tag = 'output window, operand 0']
    #allocation3 [shape = 's32[2]{0}', space=sflag, size = 0x8, scoped, tag = 'scoped memory for bottleneck_forward.11']
    %9 = vsyncpa [#allocation3], 0
    %s10 = scalar_lea.sflag [#allocation3], 1
    %11 = vsyncpa %s10, 0
    loop: start=0, step=1, limit=4
    $region2: #{bottleneck_forward.11} parent=1 // loop_pre_header
      _
    $region3: #{bottleneck_forward.11} parent=1 // loop_header
      %s13 = sphi 0, %s17
      %p14 = scmp.ge.s32.totalorder %s13, 4
      %s23 = sphi 0, %s25
      %s26 = sphi 0, %s23
      %s27 = sphi 0, %s26
      %s43 = sphi 0, %s27
      %s47 = sphi 0, %s47
      %s49 = sphi 0, %s47
      %s50 = sphi 0, %s49
      %s64 = sphi 0, %s50
      %s68 = sphi 0, %s68
      %s70 = sphi 0, %s68
      %s71 = sphi 0, %s70
      %s85 = sphi 0, %s71
      %s91 = sphi 0, %s93
      %s94 = sphi 0, %s91
      %s95 = sphi 0, %s94
      %s111 = sphi 0, %s95
      %s117 = sphi 0, %s119
      %s120 = sphi 0, %s117
      %s121 = sphi 0, %s120
      %s137 = sphi 0, %s121
    $region4: #{bottleneck_forward.11} parent=1 // loop_header_branch
      %16 = sbr.rel (%p14) target = $region8
    $region5: #{bottleneck_forward.11} parent=1 // loop_body
      %s18 = ssub.s32 %s13, 1
      %s19 = ssub.s32 %s13, 2
      %s20 = sadd.s32 %s13, 1
      %s21 = ssub.s32 %s13, %s20
      %p22 = scmp.eq.s32.totalorder %s21, 0
      %s24 = sadd.s32 %s23, 1
      %s25 = scalar_select %p22, %s23, %s24
      %p28 = pneg %p22
      %p29 = scmp.eq.s32.totalorder %s13, 1
      %p30 = por %p28, %p29
      %p31 = scmp.ne.s32.totalorder %s23, %s26
      %p32 = scmp.eq.s32.totalorder %s13, 0
      %p33 = por %p31, %p32
      %p34 = scmp.ne.s32.totalorder %s23, %s26
      %p35 = scmp.eq.s32.totalorder %s18, 1
      %p36 = por %p34, %p35
      %p37 = scmp.ne.s32.totalorder %s26, %s27
      %p38 = scmp.eq.s32.totalorder %s18, 0
      %p39 = por %p37, %p38
      %p40 = scmp.ne.s32.totalorder %s26, %s27
      %p41 = scmp.eq.s32.totalorder %s19, 1
      %p42 = por %p40, %p41
      %p44 = scmp.ne.s32.totalorder %s27, %s43
      %p45 = scmp.eq.s32.totalorder %s19, 0
      %p46 = por %p44, %p45
      %s48 = sadd.s32 %s47, 1
      %p51 = scmp.eq.s32.totalorder %s13, 1
      %p52 = scmp.ne.s32.totalorder %s47, %s49
      %p53 = scmp.eq.s32.totalorder %s13, 0
      %p54 = por %p52, %p53
      %p55 = scmp.ne.s32.totalorder %s47, %s49
      %p56 = scmp.eq.s32.totalorder %s18, 1
      %p57 = por %p55, %p56
      %p58 = scmp.ne.s32.totalorder %s49, %s50
      %p59 = scmp.eq.s32.totalorder %s18, 0
      %p60 = por %p58, %p59
      %p61 = scmp.ne.s32.totalorder %s49, %s50
      %p62 = scmp.eq.s32.totalorder %s19, 1
      %p63 = por %p61, %p62
      %p65 = scmp.ne.s32.totalorder %s50, %s64
      %p66 = scmp.eq.s32.totalorder %s19, 0
      %p67 = por %p65, %p66
      %s69 = sadd.s32 %s68, 1
      %p72 = scmp.eq.s32.totalorder %s13, 1
      %p73 = scmp.ne.s32.totalorder %s68, %s70
      %p74 = scmp.eq.s32.totalorder %s13, 0
      %p75 = por %p73, %p74
      %p76 = scmp.ne.s32.totalorder %s68, %s70
      %p77 = scmp.eq.s32.totalorder %s18, 1
      %p78 = por %p76, %p77
      %p79 = scmp.ne.s32.totalorder %s70, %s71
      %p80 = scmp.eq.s32.totalorder %s18, 0
      %p81 = por %p79, %p80
      %p82 = scmp.ne.s32.totalorder %s70, %s71
      %p83 = scmp.eq.s32.totalorder %s19, 1
      %p84 = por %p82, %p83
      %p86 = scmp.ne.s32.totalorder %s71, %s85
      %p87 = scmp.eq.s32.totalorder %s19, 0
      %p88 = por %p86, %p87
      %s89 = ssub.s32 %s13, %s20
      %p90 = scmp.eq.s32.totalorder %s89, 0
      %s92 = sadd.s32 %s91, 1
      %s93 = scalar_select %p90, %s91, %s92
      %p96 = pneg %p90
      %p97 = scmp.eq.s32.totalorder %s13, 1
      %p98 = por %p96, %p97
      %p99 = scmp.ne.s32.totalorder %s91, %s94
      %p100 = scmp.eq.s32.totalorder %s13, 0
      %p101 = por %p99, %p100
      %p102 = scmp.ne.s32.totalorder %s91, %s94
      %p103 = scmp.eq.s32.totalorder %s18, 1
      %p104 = por %p102, %p103
      %p105 = scmp.ne.s32.totalorder %s94, %s95
      %p106 = scmp.eq.s32.totalorder %s18, 0
      %p107 = por %p105, %p106
      %p108 = scmp.ne.s32.totalorder %s94, %s95
      %p109 = scmp.eq.s32.totalorder %s19, 1
      %p110 = por %p108, %p109
      %p112 = scmp.ne.s32.totalorder %s95, %s111
      %p113 = scmp.eq.s32.totalorder %s19, 0
      %p114 = por %p112, %p113
      %s115 = ssub.s32 %s13, %s20
      %p116 = scmp.eq.s32.totalorder %s115, 0
      %s118 = sadd.s32 %s117, 1
      %s119 = scalar_select %p116, %s117, %s118
      %p122 = pneg %p116
      %p123 = scmp.eq.s32.totalorder %s13, 1
      %p124 = por %p122, %p123
      %p125 = scmp.ne.s32.totalorder %s117, %s120
      %p126 = scmp.eq.s32.totalorder %s13, 0
      %p127 = por %p125, %p126
      %p128 = scmp.ne.s32.totalorder %s117, %s120
      %p129 = scmp.eq.s32.totalorder %s18, 1
      %p130 = por %p128, %p129
      %p131 = scmp.ne.s32.totalorder %s120, %s121
      %p132 = scmp.eq.s32.totalorder %s18, 0
      %p133 = por %p131, %p132
      %p134 = scmp.ne.s32.totalorder %s120, %s121
      %p135 = scmp.eq.s32.totalorder %s19, 1
      %p136 = por %p134, %p135
      %p138 = scmp.ne.s32.totalorder %s121, %s137
      %p139 = scmp.eq.s32.totalorder %s19, 0
      %p140 = por %p138, %p139
      %p141 = scmp.le.s32.totalorder 1, %s13
      %p142 = scmp.lt.s32.totalorder %s13, 3
      %p143 = pnand %p141, %p142
      %p144 = pneg %p143
      // Predicated region
      $region9: #{bottleneck_forward.11} parent=5 // pred_check
        _
      $region10: #{bottleneck_forward.11} parent=5 // pred_check_branch
        %146 = sbr.rel (%p143) target = $region12
      $region11: #{bottleneck_forward.11} parent=5 // pred_region
        %s147 = ssub.s32 %s13, 1
        // Predicated region
        $region13: #{bottleneck_forward.11} parent=11 // pred_check
          %p148 = pneg %p60
        $region14: #{bottleneck_forward.11} parent=11 // pred_check_branch
          %150 = sbr.rel (%p148) target = $region16
        $region15: #{bottleneck_forward.11} parent=11 // pred_region
          _
        $region16: #{bottleneck_forward.11} parent=11 // pred_fallthru
          _
        // Predicated region
        $region17: #{bottleneck_forward.11} parent=11 // pred_check
          %p151 = pneg %p81
        $region18: #{bottleneck_forward.11} parent=11 // pred_check_branch
          %153 = sbr.rel (%p151) target = $region20
        $region19: #{bottleneck_forward.11} parent=11 // pred_region
          _
        $region20: #{bottleneck_forward.11} parent=11 // pred_fallthru
          _
      $region12: #{bottleneck_forward.11} parent=5 // pred_fallthru
        _
      %p154 = scmp.lt.s32.totalorder %s13, 2
      // Predicated region
      $region21: #{bottleneck_forward.11} parent=5 // pred_check
        %p155 = pneg %p154
      $region22: #{bottleneck_forward.11} parent=5 // pred_check_branch
        %157 = sbr.rel (%p155) target = $region24
      $region23: #{bottleneck_forward.11} parent=5 // pred_region
        // Predicated region
        $region25: #{bottleneck_forward.11} parent=23 // pred_check
          %p158 = pneg %p33
        $region26: #{bottleneck_forward.11} parent=23 // pred_check_branch
          %160 = sbr.rel (%p158) target = $region28
        $region27: #{bottleneck_forward.11} parent=23 // pred_region
          %s161 = smul.u32 8, %s13
          %p162 = scmp.lt.s32.totalorder %s161, 15
          %s163 = scalar_select %p162, %s161, 15
          %s164 = smul.addr %s163, 8
          %s165 = scalar_lea.vmem %s0, %s164
          %s166 = smul.u32 8, %s13
        $region28: #{bottleneck_forward.11} parent=23 // pred_fallthru
          _
        // Predicated region
        $region29: #{bottleneck_forward.11} parent=23 // pred_check
          %p167 = pneg %p101
        $region30: #{bottleneck_forward.11} parent=23 // pred_check_branch
          %169 = sbr.rel (%p167) target = $region32
        $region31: #{bottleneck_forward.11} parent=23 // pred_region
          %s170 = smul.u32 8, %s13
          %p171 = scmp.lt.s32.totalorder %s170, 15
          %s172 = scalar_select %p171, %s170, 15
          %s173 = smul.addr %s172, 8
          %s174 = scalar_lea.vmem %s3, %s173
          %s175 = smul.u32 8, %s13
        $region32: #{bottleneck_forward.11} parent=23 // pred_fallthru
          _
      $region24: #{bottleneck_forward.11} parent=5 // pred_fallthru
        _
      %p176 = scmp.le.s32.totalorder 1, %s13
      %p177 = scmp.lt.s32.totalorder %s13, 3
      %p178 = pnand %p176, %p177
      %p179 = pneg %p178
      // Predicated region
      $region33: #{bottleneck_forward.11} parent=5 // pred_check
        _
      $region34: #{bottleneck_forward.11} parent=5 // pred_check_branch
        %181 = sbr.rel (%p178) target = $region36
      $region35: #{bottleneck_forward.11} parent=5 // pred_region
        %s182 = ssub.s32 %s13, 1
        %s183 = smul.u32 8, %s18
        %p184 = scmp.lt.s32.totalorder %s183, 15
        %s185 = scalar_select %p184, %s183, 15
        %s186 = smul.addr %s185, 8
        %s187 = scalar_lea.vmem %s0, %s186
        %p188 = pneg %p39
        %p189 = pneg %p36
        %p190 = pneg %p60
        %p191 = pneg %p57
        %p192 = pneg %p81
        %p193 = pneg %p78
        %s194 = smul.u32 8, %s18
        %p195 = scmp.lt.s32.totalorder %s194, 15
        %s196 = scalar_select %p195, %s194, 15
        %s197 = smul.addr %s196, 8
        %s198 = scalar_lea.vmem %s3, %s197
        %p199 = pneg %p107
        %p200 = pneg %p104
        %p201 = pneg %p133
        %p202 = pneg %p130
        %s203 = sand.u32 %s120, 1
        %s204 = scalar_lea.sflag [#allocation3], %s203
        %s205 = sand.u32 %s120, 1
        %s206 = smul.addr %s205, 64
        %s207 = scalar_lea.vmem [#allocation2], %s206
        %s208 = smul.u32 8, %s18
        %p209 = scmp.lt.s32.totalorder %s208, 15
        %s210 = scalar_select %p209, %s208, 15
        %s211 = smul.addr %s210, 8
        %s212 = scalar_lea.vmem %s0, %s211
        %s213 = smul.u32 8, %s18
        %s214 = smul.u32 8, %s18
        %p215 = scmp.lt.s32.totalorder %s214, 15
        %s216 = scalar_select %p215, %s214, 15
        %s217 = smul.addr %s216, 8
        %s218 = scalar_lea.vmem %s3, %s217
        %s219 = smul.u32 8, %s18
        %s220 = smul.u32 8, %s18
        %v221 = vld [vmem:[%s212] sm:$0xff]
        %v222 = vld [vmem:[%s212 + $0x8] sm:$0xff]
        %v223 = vld [vmem:[%s212 + $0x10] sm:$0xff]
        %v224 = vld [vmem:[%s212 + $0x18] sm:$0xff]
        %v225 = vld [vmem:[%s212 + $0x20] sm:$0xff]
        %v226 = vld [vmem:[%s212 + $0x28] sm:$0xff]
        %v227 = vld [vmem:[%s212 + $0x30] sm:$0xff]
        %v228 = vld [vmem:[%s212 + $0x38] sm:$0xff]
        %v229 = vld [vmem:[%s1] sm:$0x1]
        %v231 = vlaneseq
        %v232 = vshrl.u32 %v231, 7
        %v233 = vsub.s32 0, %v232
        %v234 = vrot.slane %v229, %v233
        %v236 = vmul.f32 %v221, %v234
        %v237 = vmul.f32 %v222, %v234
        %v238 = vmul.f32 %v223, %v234
        %v239 = vmul.f32 %v224, %v234
        %v240 = vmul.f32 %v225, %v234
        %v241 = vmul.f32 %v226, %v234
        %v242 = vmul.f32 %v227, %v234
        %v243 = vmul.f32 %v228, %v234
        %v244 = vld [vmem:[%s2] sm:$0x1]
        %v246 = vlaneseq
        %v247 = vshrl.u32 %v246, 7
        %v248 = vsub.s32 0, %v247
        %v249 = vrot.slane %v244, %v248
        %v251 = vadd.f32 %v236, %v249
        %v252 = vadd.f32 %v237, %v249
        %v253 = vadd.f32 %v238, %v249
        %v254 = vadd.f32 %v239, %v249
        %v255 = vadd.f32 %v240, %v249
        %v256 = vadd.f32 %v241, %v249
        %v257 = vadd.f32 %v242, %v249
        %v258 = vadd.f32 %v243, %v249
        %v259 = vld [vmem:[%s218] sm:$0xff]
        %v260 = vld [vmem:[%s218 + $0x8] sm:$0xff]
        %v261 = vld [vmem:[%s218 + $0x10] sm:$0xff]
        %v262 = vld [vmem:[%s218 + $0x18] sm:$0xff]
        %v263 = vld [vmem:[%s218 + $0x20] sm:$0xff]
        %v264 = vld [vmem:[%s218 + $0x28] sm:$0xff]
        %v265 = vld [vmem:[%s218 + $0x30] sm:$0xff]
        %v266 = vld [vmem:[%s218 + $0x38] sm:$0xff]
        %v267 = vadd.f32 %v251, %v259
        %v268 = vadd.f32 %v252, %v260
        %v269 = vadd.f32 %v253, %v261
        %v270 = vadd.f32 %v254, %v262
        %v271 = vadd.f32 %v255, %v263
        %v272 = vadd.f32 %v256, %v264
        %v273 = vadd.f32 %v257, %v265
        %v274 = vadd.f32 %v258, %v266
        %v275 = vmax.f32 %v267, 0.0
        %v276 = vmax.f32 %v268, 0.0
        %v277 = vmax.f32 %v269, 0.0
        %v278 = vmax.f32 %v270, 0.0
        %v279 = vmax.f32 %v271, 0.0
        %v280 = vmax.f32 %v272, 0.0
        %v281 = vmax.f32 %v273, 0.0
        %v282 = vmax.f32 %v274, 0.0
        %283 = vst [vmem:[%s207] sm:$0xff] %v275
        %284 = vst [vmem:[%s207 + $0x8] sm:$0xff] %v276
        %285 = vst [vmem:[%s207 + $0x10] sm:$0xff] %v277
        %286 = vst [vmem:[%s207 + $0x18] sm:$0xff] %v278
        %287 = vst [vmem:[%s207 + $0x20] sm:$0xff] %v279
        %288 = vst [vmem:[%s207 + $0x28] sm:$0xff] %v280
        %289 = vst [vmem:[%s207 + $0x30] sm:$0xff] %v281
        %290 = vst [vmem:[%s207 + $0x38] sm:$0xff] %v282
        %s291 = sand.u32 %s120, 1
        %s292 = scalar_lea.sflag [#allocation3], %s291
        %s293 = sand.u32 %s120, 1
        %s294 = smul.addr %s293, 64
        %s295 = scalar_lea.vmem [#allocation2], %s294
        // Predicated region
        $region37: #{bottleneck_forward.11} parent=35 // pred_check
          %p296 = pneg %p130
        $region38: #{bottleneck_forward.11} parent=35 // pred_check_branch
          %298 = sbr.rel (%p296) target = $region40
        $region39: #{bottleneck_forward.11} parent=35 // pred_region
          %s299 = smul.u32 8, %s18
          %s301 = ssub.s32 1024, 1024
          %302 = vsyncadd %s292, %s301
          %s303 = smul.addr %s299, 128
          %s304 = scalar_lea.hbm %s4, %s303
          %s305 = sshll.u32 %s295, 4
          %s306 = int_to_ptr.vmem [resolvable:$true] %s305
          %311 = dma.vmem_to_hbm [thread:$0]  %s306, 1024, %s304, %s292, 128, 128, 8
        $region40: #{bottleneck_forward.11} parent=35 // pred_fallthru
          _
      $region36: #{bottleneck_forward.11} parent=5 // pred_fallthru
        _
      %p312 = scmp.le.s32.totalorder 2, %s13
      // Predicated region
      $region41: #{bottleneck_forward.11} parent=5 // pred_check
        %p313 = pneg %p312
      $region42: #{bottleneck_forward.11} parent=5 // pred_check_branch
        %315 = sbr.rel (%p313) target = $region44
      $region43: #{bottleneck_forward.11} parent=5 // pred_region
        %s316 = ssub.s32 %s13, 2
        // Predicated region
        $region45: #{bottleneck_forward.11} parent=43 // pred_check
          %p317 = pneg %p136
        $region46: #{bottleneck_forward.11} parent=43 // pred_check_branch
          %319 = sbr.rel (%p317) target = $region48
        $region47: #{bottleneck_forward.11} parent=43 // pred_region
          %s320 = sand.u32 %s121, 1
          %s321 = scalar_lea.sflag [#allocation3], %s320
          %s322 = sand.u32 %s121, 1
          %s323 = smul.addr %s322, 64
          %s324 = scalar_lea.vmem [#allocation2], %s323
          %325 = dma.done %s321, 1024
        $region48: #{bottleneck_forward.11} parent=43 // pred_fallthru
          _
      $region44: #{bottleneck_forward.11} parent=5 // pred_fallthru
        _
    $region6: #{bottleneck_forward.11} parent=1 // loop_footer
      %s17 = sadd.s32 1, %s13
    $region7: #{bottleneck_forward.11} parent=1 // loop_footer_branch
      %12 = sbr.rel target = $region3
    $region8: #{bottleneck_forward.11} parent=1 // loop_exit
      _
    %326 = vsyncpa [#allocation3], 1
    %s327 = scalar_lea.sflag [#allocation3], 1
    %328 = vsyncpa %s327, 1

// kernel: bottleneck_forward.8
$region0: #{bottleneck_forward.8}
  #allocation0 [shape = 'u32[]', space=smem, size = 0x4, offset = 0x4, fixed_abs, tag = 'smem constant byte address 0x4 - core index']
  #allocation1 [shape = 'u32[144,128]{1,0:T(1,128)}', space=vmem, size = 0x12000, scoped, tag = 'internal scratch']
  %s0 = inlined_call_operand.vmem [shape: bf16[2,108,128], index: 0, kind: input, shape index: {}]
  %s1 = inlined_call_operand.vmem [shape: bf16[9,128,128], index: 1, kind: input, shape index: {}]
  %s2 = inlined_call_operand.vmem [shape: f32[2,80,128], index: 2, kind: output, shape index: {0}]
  %s3 = inlined_call_operand.vmem [shape: f32[1,128], index: 3, kind: output, shape index: {1}]
  %s4 = inlined_call_operand.vmem [shape: f32[1,128], index: 4, kind: output, shape index: {2}]
  %5 = xla_tuple %s2, %s3, %s4
  %s6 = sld [smem:[#allocation0]]
  $region61: #{bottleneck_forward.8} parent=0
    _
  %s8 = ssub.s32 1, %s6
  %s9 = scalar_select 0, %s8, %s6
  loop: start=0, step=1, limit=4
  $region2: #{bottleneck_forward.8} parent=0 // loop_pre_header
    _
  $region3: #{bottleneck_forward.8} parent=0 // loop_header
    %s11 = sphi 0, %s15
    %p12 = scmp.ge.s32.totalorder %s11, 4
    %s21 = sphi 0, %s23
    %s24 = sphi 0, %s21
    %s25 = sphi 0, %s24
    %s41 = sphi 0, %s25
    %s45 = sphi 0, %s45
    %s47 = sphi 0, %s45
    %s48 = sphi 0, %s47
    %s62 = sphi 0, %s48
    %s68 = sphi 0, %s70
    %s71 = sphi 0, %s68
    %s72 = sphi 0, %s71
    %s88 = sphi 0, %s72
    %s92 = sphi 0, %s92
    %s94 = sphi 0, %s92
    %s95 = sphi 0, %s94
    %s109 = sphi 0, %s95
    %s113 = sphi 0, %s113
    %s115 = sphi 0, %s113
    %s116 = sphi 0, %s115
    %s130 = sphi 0, %s116
  $region4: #{bottleneck_forward.8} parent=0 // loop_header_branch
    %14 = sbr.rel (%p12) target = $region8
  $region5: #{bottleneck_forward.8} parent=0 // loop_body
    %s16 = ssub.s32 %s11, 1
    %s17 = ssub.s32 %s11, 2
    %s18 = sadd.s32 %s11, 1
    %s19 = ssub.s32 %s11, %s18
    %p20 = scmp.eq.s32.totalorder %s19, 0
    %s22 = sadd.s32 %s21, 1
    %s23 = scalar_select %p20, %s21, %s22
    %p26 = pneg %p20
    %p27 = scmp.eq.s32.totalorder %s11, 1
    %p28 = por %p26, %p27
    %p29 = scmp.ne.s32.totalorder %s21, %s24
    %p30 = scmp.eq.s32.totalorder %s11, 0
    %p31 = por %p29, %p30
    %p32 = scmp.ne.s32.totalorder %s21, %s24
    %p33 = scmp.eq.s32.totalorder %s16, 1
    %p34 = por %p32, %p33
    %p35 = scmp.ne.s32.totalorder %s24, %s25
    %p36 = scmp.eq.s32.totalorder %s16, 0
    %p37 = por %p35, %p36
    %p38 = scmp.ne.s32.totalorder %s24, %s25
    %p39 = scmp.eq.s32.totalorder %s17, 1
    %p40 = por %p38, %p39
    %p42 = scmp.ne.s32.totalorder %s25, %s41
    %p43 = scmp.eq.s32.totalorder %s17, 0
    %p44 = por %p42, %p43
    %s46 = sadd.s32 %s45, 1
    %p49 = scmp.eq.s32.totalorder %s11, 1
    %p50 = scmp.ne.s32.totalorder %s45, %s47
    %p51 = scmp.eq.s32.totalorder %s11, 0
    %p52 = por %p50, %p51
    %p53 = scmp.ne.s32.totalorder %s45, %s47
    %p54 = scmp.eq.s32.totalorder %s16, 1
    %p55 = por %p53, %p54
    %p56 = scmp.ne.s32.totalorder %s47, %s48
    %p57 = scmp.eq.s32.totalorder %s16, 0
    %p58 = por %p56, %p57
    %p59 = scmp.ne.s32.totalorder %s47, %s48
    %p60 = scmp.eq.s32.totalorder %s17, 1
    %p61 = por %p59, %p60
    %p63 = scmp.ne.s32.totalorder %s48, %s62
    %p64 = scmp.eq.s32.totalorder %s17, 0
    %p65 = por %p63, %p64
    %s66 = ssub.s32 %s11, %s18
    %p67 = scmp.eq.s32.totalorder %s66, 0
    %s69 = sadd.s32 %s68, 1
    %s70 = scalar_select %p67, %s68, %s69
    %p73 = pneg %p67
    %p74 = scmp.eq.s32.totalorder %s11, 1
    %p75 = por %p73, %p74
    %p76 = scmp.ne.s32.totalorder %s68, %s71
    %p77 = scmp.eq.s32.totalorder %s11, 0
    %p78 = por %p76, %p77
    %p79 = scmp.ne.s32.totalorder %s68, %s71
    %p80 = scmp.eq.s32.totalorder %s16, 1
    %p81 = por %p79, %p80
    %p82 = scmp.ne.s32.totalorder %s71, %s72
    %p83 = scmp.eq.s32.totalorder %s16, 0
    %p84 = por %p82, %p83
    %p85 = scmp.ne.s32.totalorder %s71, %s72
    %p86 = scmp.eq.s32.totalorder %s17, 1
    %p87 = por %p85, %p86
    %p89 = scmp.ne.s32.totalorder %s72, %s88
    %p90 = scmp.eq.s32.totalorder %s17, 0
    %p91 = por %p89, %p90
    %s93 = sadd.s32 %s92, 1
    %p96 = scmp.eq.s32.totalorder %s11, 1
    %p97 = scmp.ne.s32.totalorder %s92, %s94
    %p98 = scmp.eq.s32.totalorder %s11, 0
    %p99 = por %p97, %p98
    %p100 = scmp.ne.s32.totalorder %s92, %s94
    %p101 = scmp.eq.s32.totalorder %s16, 1
    %p102 = por %p100, %p101
    %p103 = scmp.ne.s32.totalorder %s94, %s95
    %p104 = scmp.eq.s32.totalorder %s16, 0
    %p105 = por %p103, %p104
    %p106 = scmp.ne.s32.totalorder %s94, %s95
    %p107 = scmp.eq.s32.totalorder %s17, 1
    %p108 = por %p106, %p107
    %p110 = scmp.ne.s32.totalorder %s95, %s109
    %p111 = scmp.eq.s32.totalorder %s17, 0
    %p112 = por %p110, %p111
    %s114 = sadd.s32 %s113, 1
    %p117 = scmp.eq.s32.totalorder %s11, 1
    %p118 = scmp.ne.s32.totalorder %s113, %s115
    %p119 = scmp.eq.s32.totalorder %s11, 0
    %p120 = por %p118, %p119
    %p121 = scmp.ne.s32.totalorder %s113, %s115
    %p122 = scmp.eq.s32.totalorder %s16, 1
    %p123 = por %p121, %p122
    %p124 = scmp.ne.s32.totalorder %s115, %s116
    %p125 = scmp.eq.s32.totalorder %s16, 0
    %p126 = por %p124, %p125
    %p127 = scmp.ne.s32.totalorder %s115, %s116
    %p128 = scmp.eq.s32.totalorder %s17, 1
    %p129 = por %p127, %p128
    %p131 = scmp.ne.s32.totalorder %s116, %s130
    %p132 = scmp.eq.s32.totalorder %s17, 0
    %p133 = por %p131, %p132
    %p134 = scmp.le.s32.totalorder 1, %s11
    %p135 = scmp.lt.s32.totalorder %s11, 3
    %p136 = pnand %p134, %p135
    %p137 = pneg %p136
    // Predicated region
    $region9: #{bottleneck_forward.8} parent=5 // pred_check
      _
    $region10: #{bottleneck_forward.8} parent=5 // pred_check_branch
      %139 = sbr.rel (%p136) target = $region12
    $region11: #{bottleneck_forward.8} parent=5 // pred_region
      %s140 = ssub.s32 %s11, 1
      // Predicated region
      $region13: #{bottleneck_forward.8} parent=11 // pred_check
        %p141 = pneg %p58
      $region14: #{bottleneck_forward.8} parent=11 // pred_check_branch
        %143 = sbr.rel (%p141) target = $region16
      $region15: #{bottleneck_forward.8} parent=11 // pred_region
        _
      $region16: #{bottleneck_forward.8} parent=11 // pred_fallthru
        _
    $region12: #{bottleneck_forward.8} parent=5 // pred_fallthru
      _
    %p144 = scmp.lt.s32.totalorder %s11, 2
    // Predicated region
    $region17: #{bottleneck_forward.8} parent=5 // pred_check
      %p145 = pneg %p144
    $region18: #{bottleneck_forward.8} parent=5 // pred_check_branch
      %147 = sbr.rel (%p145) target = $region20
    $region19: #{bottleneck_forward.8} parent=5 // pred_region
      // Predicated region
      $region21: #{bottleneck_forward.8} parent=19 // pred_check
        %p148 = pneg %p31
      $region22: #{bottleneck_forward.8} parent=19 // pred_check_branch
        %150 = sbr.rel (%p148) target = $region24
      $region23: #{bottleneck_forward.8} parent=19 // pred_region
        %p151 = scmp.lt.s32.totalorder %s11, 1
        %s152 = scalar_select %p151, %s11, 1
        %s153 = smul.addr %s152, 14
        %s154 = smul.addr %s153, 4
        %s155 = scalar_lea.vmem %s0, %s154
      $region24: #{bottleneck_forward.8} parent=19 // pred_fallthru
        _
    $region20: #{bottleneck_forward.8} parent=5 // pred_fallthru
      _
    %p156 = scmp.le.s32.totalorder 1, %s11
    %p157 = scmp.lt.s32.totalorder %s11, 3
    %p158 = pnand %p156, %p157
    %p159 = pneg %p158
    // Predicated region
    $region25: #{bottleneck_forward.8} parent=5 // pred_check
      _
    $region26: #{bottleneck_forward.8} parent=5 // pred_check_branch
      %161 = sbr.rel (%p158) target = $region28
    $region27: #{bottleneck_forward.8} parent=5 // pred_region
      %s162 = ssub.s32 %s11, 1
      %p163 = scmp.lt.s32.totalorder %s16, 1
      %s164 = scalar_select %p163, %s16, 1
      %s165 = smul.addr %s164, 14
      %s166 = smul.addr %s165, 4
      %s167 = scalar_lea.vmem %s0, %s166
      %p168 = pneg %p37
      %p169 = pneg %p34
      %p170 = pneg %p58
      %p171 = pneg %p55
      %p172 = pneg %p84
      %p173 = pneg %p81
      %p174 = scmp.lt.s32.totalorder %s16, 1
      %s175 = scalar_select %p174, %s16, 1
      %s176 = smul.addr %s175, 10
      %s177 = smul.addr %s176, 8
      %s178 = scalar_lea.vmem %s2, %s177
      %p179 = pneg %p105
      %p180 = pneg %p102
      %p181 = pneg %p126
      %p182 = pneg %p123
      %p183 = scmp.lt.s32.totalorder %s16, 1
      %s184 = scalar_select %p183, %s16, 1
      %s185 = smul.addr %s184, 14
      %s186 = smul.addr %s185, 4
      %s187 = scalar_lea.vmem %s0, %s186
      %p188 = scmp.lt.s32.totalorder %s16, 1
      %s189 = scalar_select %p188, %s16, 1
      %s190 = smul.addr %s189, 10
      %s191 = smul.addr %s190, 8
      %s192 = scalar_lea.vmem %s2, %s191
      %v194 = vld [vmem:[%s187] sm:$0xf]
      %v195 = vld [vmem:[%s187 + $0x4] sm:$0xf]
      %v196 = vld [vmem:[%s187 + $0x8] sm:$0xf]
      %v197 = vld [vmem:[%s187 + $0xc] sm:$0xf]
      %v198 = vld [vmem:[%s187 + $0x10] sm:$0xf]
      %v199 = vld [vmem:[%s187 + $0x14] sm:$0xf]
      %v200 = vld [vmem:[%s187 + $0x18] sm:$0xf]
      %v201 = vld [vmem:[%s187 + $0x1c] sm:$0xf]
      %v202 = vld [vmem:[%s187 + $0x20] sm:$0xf]
      %v203 = vld [vmem:[%s187 + $0x24] sm:$0xf]
      %v204 = vld [vmem:[%s1] sm:$0xf]
      %v205 = vld [vmem:[%s1 + $0x4] sm:$0xf]
      %v206 = vld [vmem:[%s1 + $0x8] sm:$0xf]
      %v207 = vld [vmem:[%s1 + $0xc] sm:$0xf]
      %v208 = vld [vmem:[%s1 + $0x10] sm:$0xf]
      %v209 = vld [vmem:[%s1 + $0x14] sm:$0xf]
      %v210 = vld [vmem:[%s1 + $0x18] sm:$0xf]
      %v211 = vld [vmem:[%s1 + $0x1c] sm:$0xf]
      %v212 = vld [vmem:[%s1 + $0x20] sm:$0xf]
      %v213 = vld [vmem:[%s1 + $0x24] sm:$0xf]
      %v214 = vld [vmem:[%s1 + $0x28] sm:$0xf]
      %v215 = vld [vmem:[%s1 + $0x2c] sm:$0xf]
      %v216 = vld [vmem:[%s1 + $0x30] sm:$0xf]
      %v217 = vld [vmem:[%s1 + $0x34] sm:$0xf]
      %v218 = vld [vmem:[%s1 + $0x38] sm:$0xf]
      %v219 = vld [vmem:[%s1 + $0x3c] sm:$0xf]
      %v220 = vld [vmem:[%s187 + $0x28] sm:$0x1]
      %s221 = scalar_lea.vmem %s1, 64
      %v222 = vld [vmem:[%s221] sm:$0xf]
      %v223 = vld [vmem:[%s221 + $0x4] sm:$0xf]
      %v224 = vld [vmem:[%s221 + $0x8] sm:$0xf]
      %v225 = vld [vmem:[%s221 + $0xc] sm:$0xf]
      %v226 = vld [vmem:[%s221 + $0x10] sm:$0xf]
      %v227 = vld [vmem:[%s221 + $0x14] sm:$0xf]
      %v228 = vld [vmem:[%s221 + $0x18] sm:$0xf]
      %v229 = vld [vmem:[%s221 + $0x1c] sm:$0xf]
      %v230 = vld [vmem:[%s221 + $0x20] sm:$0xf]
      %v231 = vld [vmem:[%s221 + $0x24] sm:$0xf]
      %v232 = vld [vmem:[%s221 + $0x28] sm:$0xf]
      %v233 = vld [vmem:[%s221 + $0x2c] sm:$0xf]
      %v234 = vld [vmem:[%s221 + $0x30] sm:$0xf]
      %v235 = vld [vmem:[%s221 + $0x34] sm:$0xf]
      %v236 = vld [vmem:[%s221 + $0x38] sm:$0xf]
      %v237 = vld [vmem:[%s221 + $0x3c] sm:$0xf]
      %v249 = vunpack.c.l.b16 %v194
      %v250 = vunpack.c.l.b16 %v195
      %v251 = vunpack.c.l.b16 %v196
      %v252 = vunpack.c.l.b16 %v197
      %v253 = vunpack.c.l.b16 %v198
      %v254 = vunpack.c.l.b16 %v199
      %v255 = vunpack.c.l.b16 %v200
      %v256 = vunpack.c.l.b16 %v201
      %v257 = vunpack.c.l.b16 %v202
      %v258 = vunpack.c.l.b16 %v203
      %v259 = vunpack.c.l.b16 %v220
      %v260 = vpack.c.b16 %v250, %v249
      %v261 = vpack.c.b16 %v252, %v251
      %v262 = vpack.c.b16 %v254, %v253
      %v263 = vpack.c.b16 %v256, %v255
      %v264 = vpack.c.b16 %v258, %v257
      %v265 = vpack.c.b16 %v259, %v259
      %vm266 = vsmask.f32 7424
      %v268 = vshrl.u32 %v260, 16
      %v270 = vshll.u32 %v260, 16
      %v272 = vrot.slane %v270, 1
      %v273 = vor.u32 %v268, %v272
      %v275 = vshll.u32 %v261, 16
      %v277 = vrot.slane %v275, 1
      %v278 = vsel %vm266, %v273, %v277
      %v279 = vshrl.u32 %v261, 16
      %v281 = vor.u32 %v279, %v277
      %v283 = vshll.u32 %v262, 16
      %v285 = vrot.slane %v283, 1
      %v286 = vsel %vm266, %v281, %v285
      %v287 = vshrl.u32 %v262, 16
      %v289 = vor.u32 %v287, %v285
      %v291 = vshll.u32 %v263, 16
      %v293 = vrot.slane %v291, 1
      %v294 = vsel %vm266, %v289, %v293
      %v295 = vshrl.u32 %v263, 16
      %v297 = vor.u32 %v295, %v293
      %v299 = vshll.u32 %v264, 16
      %v301 = vrot.slane %v299, 1
      %v302 = vsel %vm266, %v297, %v301
      %v303 = vshrl.u32 %v264, 16
      %v305 = vor.u32 %v303, %v301
      %v307 = vshll.u32 %v265, 16
      %v309 = vrot.slane %v307, 1
      %v310 = vsel %vm266, %v305, %v309
      %v332 = vunpack.c.l.b16 %v222
      %v333 = vunpack.c.l.b16 %v223
      %v334 = vunpack.c.l.b16 %v224
      %v335 = vunpack.c.l.b16 %v225
      %v336 = vunpack.c.l.b16 %v226
      %v337 = vunpack.c.l.b16 %v227
      %v338 = vunpack.c.l.b16 %v228
      %v339 = vunpack.c.l.b16 %v229
      %v340 = vunpack.c.l.b16 %v230
      %v341 = vunpack.c.l.b16 %v231
      %v342 = vunpack.c.l.b16 %v232
      %v343 = vunpack.c.l.b16 %v233
      %v344 = vunpack.c.l.b16 %v234
      %v345 = vunpack.c.l.b16 %v235
      %v346 = vunpack.c.l.b16 %v236
      %v347 = vunpack.c.l.b16 %v237
      %v348 = vpack.c.b16 %v333, %v332
      %v349 = vpack.c.b16 %v335, %v334
      %v350 = vpack.c.b16 %v337, %v336
      %v351 = vpack.c.b16 %v339, %v338
      %v352 = vpack.c.b16 %v341, %v340
      %v353 = vpack.c.b16 %v343, %v342
      %v354 = vpack.c.b16 %v345, %v344
      %v355 = vpack.c.b16 %v347, %v346
      %364 = vmatprep.subr.bf16.mxu0 0
      %365 = vmatpush1.bf16.msra.mxu0 %v355
      %366 = vmatprep.subr.bf16.mxu0 0
      %367 = vmatpush1.bf16.msra.mxu0 %v354
      %368 = vmatprep.subr.bf16.mxu0 0
      %369 = vmatpush1.bf16.msra.mxu0 %v353
      %370 = vmatprep.subr.bf16.mxu0 0
      %371 = vmatpush1.bf16.msra.mxu0 %v352
      %372 = vmatprep.subr.bf16.mxu0 0
      %373 = vmatpush1.bf16.msra.mxu0 %v351
      %374 = vmatprep.subr.bf16.mxu0 0
      %375 = vmatpush1.bf16.msra.mxu0 %v350
      %376 = vmatprep.subr.bf16.mxu0 0
      %377 = vmatpush1.bf16.msra.mxu0 %v349
      %378 = vmatprep.subr.bf16.mxu0 0
      %379 = vmatpush1.bf16.msra.mxu0 %v348
      %380 = vmatprep.subr.bf16.mxu0 0
      %381 = vmatpush2.bf16.msra.mxu0 0
      %382 = vmatprep.subr.bf16.mxu0 0
      %383 = vmatpush2.bf16.msra.mxu0 0
      %384 = vmatprep.subr.bf16.mxu0 0
      %385 = vmatpush2.bf16.msra.mxu0 0
      %386 = vmatprep.subr.bf16.mxu0 0
      %387 = vmatpush2.bf16.msra.mxu0 0
      %388 = vmatprep.subr.bf16.mxu0 0
      %389 = vmatpush2.bf16.msra.mxu0 0
      %390 = vmatprep.subr.bf16.mxu0 0
      %391 = vmatpush2.bf16.msra.mxu0 0
      %392 = vmatprep.subr.bf16.mxu0 0
      %393 = vmatpush2.bf16.msra.mxu0 0
      %394 = vmatprep.subr.bf16.mxu0 0
      %395 = vmatpush2.bf16.msra.mxu0 0
      %396 = vmatprep.mubr.bf16.mxu0 0
      %397 = vmatmul.mubr.bf16.gmra.mxu0 %v278
      %v398 = vpop.f32.mrf.mxu0
      %v399 = vadd.f32 0.0, %v398
      %v400 = vpop.f32.mrf.mxu0
      %v401 = vpop.f32.mrf.mxu0
      %v402 = vadd.f32 0.0, %v401
      %v403 = vpop.f32.mrf.mxu0
      %404 = vmatprep.mubr.bf16.mxu0 0
      %405 = vmatmul.mubr.bf16.gmra.mxu0 %v286
      %v406 = vpop.f32.mrf.mxu0
      %v407 = vadd.f32 0.0, %v406
      %v408 = vpop.f32.mrf.mxu0
      %v409 = vpop.f32.mrf.mxu0
      %v410 = vadd.f32 0.0, %v409
      %v411 = vpop.f32.mrf.mxu0
      %412 = vmatprep.mubr.bf16.mxu0 0
      %413 = vmatmul.mubr.bf16.gmra.mxu0 %v294
      %v414 = vpop.f32.mrf.mxu0
      %v415 = vadd.f32 0.0, %v414
      %v416 = vpop.f32.mrf.mxu0
      %v417 = vpop.f32.mrf.mxu0
      %v418 = vadd.f32 0.0, %v417
      %v419 = vpop.f32.mrf.mxu0
      %420 = vmatprep.mubr.bf16.mxu0 0
      %421 = vmatmul.mubr.bf16.gmra.mxu0 %v302
      %v422 = vpop.f32.mrf.mxu0
      %v423 = vadd.f32 0.0, %v422
      %v424 = vpop.f32.mrf.mxu0
      %v425 = vpop.f32.mrf.mxu0
      %v426 = vadd.f32 0.0, %v425
      %v427 = vpop.f32.mrf.mxu0
      %428 = vmatprep.mubr.bf16.mxu0 0
      %429 = vmatmul.mubr.bf16.gmra.mxu0 %v310
      %v430 = vpop.f32.mrf.mxu0
      %v431 = vadd.f32 0.0, %v430
      %v432 = vpop.f32.mrf.mxu0
      %v433 = vpop.f32.mrf.mxu0
      %v434 = vadd.f32 0.0, %v433
      %v435 = vpop.f32.mrf.mxu0
      %436 = vdwg.mxu0
      %v458 = vunpack.c.l.b16 %v204
      %v459 = vunpack.c.l.b16 %v205
      %v460 = vunpack.c.l.b16 %v206
      %v461 = vunpack.c.l.b16 %v207
      %v462 = vunpack.c.l.b16 %v208
      %v463 = vunpack.c.l.b16 %v209
      %v464 = vunpack.c.l.b16 %v210
      %v465 = vunpack.c.l.b16 %v211
      %v466 = vunpack.c.l.b16 %v212
      %v467 = vunpack.c.l.b16 %v213
      %v468 = vunpack.c.l.b16 %v214
      %v469 = vunpack.c.l.b16 %v215
      %v470 = vunpack.c.l.b16 %v216
      %v471 = vunpack.c.l.b16 %v217
      %v472 = vunpack.c.l.b16 %v218
      %v473 = vunpack.c.l.b16 %v219
      %v474 = vpack.c.b16 %v459, %v458
      %v475 = vpack.c.b16 %v461, %v460
      %v476 = vpack.c.b16 %v463, %v462
      %v477 = vpack.c.b16 %v465, %v464
      %v478 = vpack.c.b16 %v467, %v466
      %v479 = vpack.c.b16 %v469, %v468
      %v480 = vpack.c.b16 %v471, %v470
      %v481 = vpack.c.b16 %v473, %v472
      %490 = vmatprep.subr.bf16.mxu0 0
      %491 = vmatpush1.bf16.msra.mxu0 %v481
      %492 = vmatprep.subr.bf16.mxu0 0
      %493 = vmatpush1.bf16.msra.mxu0 %v480
      %494 = vmatprep.subr.bf16.mxu0 0
      %495 = vmatpush1.bf16.msra.mxu0 %v479
      %496 = vmatprep.subr.bf16.mxu0 0
      %497 = vmatpush1.bf16.msra.mxu0 %v478
      %498 = vmatprep.subr.bf16.mxu0 0
      %499 = vmatpush1.bf16.msra.mxu0 %v477
      %500 = vmatprep.subr.bf16.mxu0 0
      %501 = vmatpush1.bf16.msra.mxu0 %v476
      %502 = vmatprep.subr.bf16.mxu0 0
      %503 = vmatpush1.bf16.msra.mxu0 %v475
      %504 = vmatprep.subr.bf16.mxu0 0
      %505 = vmatpush1.bf16.msra.mxu0 %v474
      %506 = vmatprep.subr.bf16.mxu0 0
      %507 = vmatpush2.bf16.msra.mxu0 0
      %508 = vmatprep.subr.bf16.mxu0 0
      %509 = vmatpush2.bf16.msra.mxu0 0
      %510 = vmatprep.subr.bf16.mxu0 0
      %511 = vmatpush2.bf16.msra.mxu0 0
      %512 = vmatprep.subr.bf16.mxu0 0
      %513 = vmatpush2.bf16.msra.mxu0 0
      %514 = vmatprep.subr.bf16.mxu0 0
      %515 = vmatpush2.bf16.msra.mxu0 0
      %516 = vmatprep.subr.bf16.mxu0 0
      %517 = vmatpush2.bf16.msra.mxu0 0
      %518 = vmatprep.subr.bf16.mxu0 0
      %519 = vmatpush2.bf16.msra.mxu0 0
      %520 = vmatprep.subr.bf16.mxu0 0
      %521 = vmatpush2.bf16.msra.mxu0 0
      %522 = vmatprep.mubr.bf16.mxu0 0
      %523 = vmatmul.mubr.bf16.gmra.mxu0 %v260
      %v524 = vpop.f32.mrf.mxu0
      %v525 = vadd.f32 %v399, %v524
      %v526 = vpop.f32.mrf.mxu0
      %v527 = vpop.f32.mrf.mxu0
      %v528 = vadd.f32 %v402, %v527
      %v529 = vpop.f32.mrf.mxu0
      %530 = vmatprep.mubr.bf16.mxu0 0
      %531 = vmatmul.mubr.bf16.gmra.mxu0 %v261
      %v532 = vpop.f32.mrf.mxu0
      %v533 = vadd.f32 %v407, %v532
      %v534 = vpop.f32.mrf.mxu0
      %v535 = vpop.f32.mrf.mxu0
      %v536 = vadd.f32 %v410, %v535
      %v537 = vpop.f32.mrf.mxu0
      %538 = vmatprep.mubr.bf16.mxu0 0
      %539 = vmatmul.mubr.bf16.gmra.mxu0 %v262
      %v540 = vpop.f32.mrf.mxu0
      %v541 = vadd.f32 %v415, %v540
      %v542 = vpop.f32.mrf.mxu0
      %v543 = vpop.f32.mrf.mxu0
      %v544 = vadd.f32 %v418, %v543
      %v545 = vpop.f32.mrf.mxu0
      %546 = vmatprep.mubr.bf16.mxu0 0
      %547 = vmatmul.mubr.bf16.gmra.mxu0 %v263
      %v548 = vpop.f32.mrf.mxu0
      %v549 = vadd.f32 %v423, %v548
      %v550 = vpop.f32.mrf.mxu0
      %v551 = vpop.f32.mrf.mxu0
      %v552 = vadd.f32 %v426, %v551
      %v553 = vpop.f32.mrf.mxu0
      %554 = vmatprep.mubr.bf16.mxu0 0
      %555 = vmatmul.mubr.bf16.gmra.mxu0 %v264
      %v556 = vpop.f32.mrf.mxu0
      %v557 = vadd.f32 %v431, %v556
      %v558 = vpop.f32.mrf.mxu0
      %v559 = vpop.f32.mrf.mxu0
      %v560 = vadd.f32 %v434, %v559
      %v561 = vpop.f32.mrf.mxu0
      %562 = vdwg.mxu0
      %v563 = vld [vmem:[%s187] sm:$0xe]
      %s564 = scalar_lea.vmem %s1, 128
      %v565 = vld [vmem:[%s564] sm:$0xf]
      %v566 = vld [vmem:[%s564 + $0x4] sm:$0xf]
      %v567 = vld [vmem:[%s564 + $0x8] sm:$0xf]
      %v568 = vld [vmem:[%s564 + $0xc] sm:$0xf]
      %v569 = vld [vmem:[%s564 + $0x10] sm:$0xf]
      %v570 = vld [vmem:[%s564 + $0x14] sm:$0xf]
      %v571 = vld [vmem:[%s564 + $0x18] sm:$0xf]
      %v572 = vld [vmem:[%s564 + $0x1c] sm:$0xf]
      %v573 = vld [vmem:[%s564 + $0x20] sm:$0xf]
      %v574 = vld [vmem:[%s564 + $0x24] sm:$0xf]
      %v575 = vld [vmem:[%s564 + $0x28] sm:$0xf]
      %v576 = vld [vmem:[%s564 + $0x2c] sm:$0xf]
      %v577 = vld [vmem:[%s564 + $0x30] sm:$0xf]
      %v578 = vld [vmem:[%s564 + $0x34] sm:$0xf]
      %v579 = vld [vmem:[%s564 + $0x38] sm:$0xf]
      %v580 = vld [vmem:[%s564 + $0x3c] sm:$0xf]
      %v582 = vunpack.c.l.b16 %v563
      %v583 = vpack.c.b16 %v250, %v582
      %vm584 = vcmask 1046528
      %v585 = vrot.slane %v583, 1
      %v586 = vrot.slane %v261, 1
      %v587 = vsel %vm584, %v585, %v586
      %v588 = vrot.slane %v262, 1
      %v589 = vsel %vm584, %v586, %v588
      %v590 = vrot.slane %v263, 1
      %v591 = vsel %vm584, %v588, %v590
      %v592 = vrot.slane %v264, 1
      %v593 = vsel %vm584, %v590, %v592
      %v594 = vrot.slane %v265, 1
      %v595 = vsel %vm584, %v592, %v594
      %v617 = vunpack.c.l.b16 %v565
      %v618 = vunpack.c.l.b16 %v566
      %v619 = vunpack.c.l.b16 %v567
      %v620 = vunpack.c.l.b16 %v568
      %v621 = vunpack.c.l.b16 %v569
      %v622 = vunpack.c.l.b16 %v570
      %v623 = vunpack.c.l.b16 %v571
      %v624 = vunpack.c.l.b16 %v572
      %v625 = vunpack.c.l.b16 %v573
      %v626 = vunpack.c.l.b16 %v574
      %v627 = vunpack.c.l.b16 %v575
      %v628 = vunpack.c.l.b16 %v576
      %v629 = vunpack.c.l.b16 %v577
      %v630 = vunpack.c.l.b16 %v578
      %v631 = vunpack.c.l.b16 %v579
      %v632 = vunpack.c.l.b16 %v580
      %v633 = vpack.c.b16 %v618, %v617
      %v634 = vpack.c.b16 %v620, %v619
      %v635 = vpack.c.b16 %v622, %v621
      %v636 = vpack.c.b16 %v624, %v623
      %v637 = vpack.c.b16 %v626, %v625
      %v638 = vpack.c.b16 %v628, %v627
      %v639 = vpack.c.b16 %v630, %v629
      %v640 = vpack.c.b16 %v632, %v631
      %649 = vmatprep.subr.bf16.mxu0 0
      %650 = vmatpush1.bf16.msra.mxu0 %v640
      %651 = vmatprep.subr.bf16.mxu0 0
      %652 = vmatpush1.bf16.msra.mxu0 %v639
      %653 = vmatprep.subr.bf16.mxu0 0
      %654 = vmatpush1.bf16.msra.mxu0 %v638
      %655 = vmatprep.subr.bf16.mxu0 0
      %656 = vmatpush1.bf16.msra.mxu0 %v637
      %657 = vmatprep.subr.bf16.mxu0 0
      %658 = vmatpush1.bf16.msra.mxu0 %v636
      %659 = vmatprep.subr.bf16.mxu0 0
      %660 = vmatpush1.bf16.msra.mxu0 %v635
      %661 = vmatprep.subr.bf16.mxu0 0
      %662 = vmatpush1.bf16.msra.mxu0 %v634
      %663 = vmatprep.subr.bf16.mxu0 0
      %664 = vmatpush1.bf16.msra.mxu0 %v633
      %665 = vmatprep.subr.bf16.mxu0 0
      %666 = vmatpush2.bf16.msra.mxu0 0
      %667 = vmatprep.subr.bf16.mxu0 0
      %668 = vmatpush2.bf16.msra.mxu0 0
      %669 = vmatprep.subr.bf16.mxu0 0
      %670 = vmatpush2.bf16.msra.mxu0 0
      %671 = vmatprep.subr.bf16.mxu0 0
      %672 = vmatpush2.bf16.msra.mxu0 0
      %673 = vmatprep.subr.bf16.mxu0 0
      %674 = vmatpush2.bf16.msra.mxu0 0
      %675 = vmatprep.subr.bf16.mxu0 0
      %676 = vmatpush2.bf16.msra.mxu0 0
      %677 = vmatprep.subr.bf16.mxu0 0
      %678 = vmatpush2.bf16.msra.mxu0 0
      %679 = vmatprep.subr.bf16.mxu0 0
      %680 = vmatpush2.bf16.msra.mxu0 0
      %681 = vmatprep.mubr.bf16.mxu0 0
      %682 = vmatmul.mubr.bf16.gmra.mxu0 %v587
      %v683 = vpop.f32.mrf.mxu0
      %v684 = vadd.f32 0.0, %v683
      %v685 = vpop.f32.mrf.mxu0
      %v686 = vpop.f32.mrf.mxu0
      %v687 = vadd.f32 0.0, %v686
      %v688 = vpop.f32.mrf.mxu0
      %689 = vmatprep.mubr.bf16.mxu0 0
      %690 = vmatmul.mubr.bf16.gmra.mxu0 %v589
      %v691 = vpop.f32.mrf.mxu0
      %v692 = vadd.f32 0.0, %v691
      %v693 = vpop.f32.mrf.mxu0
      %v694 = vpop.f32.mrf.mxu0
      %v695 = vadd.f32 0.0, %v694
      %v696 = vpop.f32.mrf.mxu0
      %697 = vmatprep.mubr.bf16.mxu0 0
      %698 = vmatmul.mubr.bf16.gmra.mxu0 %v591
      %v699 = vpop.f32.mrf.mxu0
      %v700 = vadd.f32 0.0, %v699
      %v701 = vpop.f32.mrf.mxu0
      %v702 = vpop.f32.mrf.mxu0
      %v703 = vadd.f32 0.0, %v702
      %v704 = vpop.f32.mrf.mxu0
      %705 = vmatprep.mubr.bf16.mxu0 0
      %706 = vmatmul.mubr.bf16.gmra.mxu0 %v593
      %v707 = vpop.f32.mrf.mxu0
      %v708 = vadd.f32 0.0, %v707
      %v709 = vpop.f32.mrf.mxu0
      %v710 = vpop.f32.mrf.mxu0
      %v711 = vadd.f32 0.0, %v710
      %v712 = vpop.f32.mrf.mxu0
      %713 = vmatprep.mubr.bf16.mxu0 0
      %714 = vmatmul.mubr.bf16.gmra.mxu0 %v595
      %v715 = vpop.f32.mrf.mxu0
      %v716 = vadd.f32 0.0, %v715
      %v717 = vpop.f32.mrf.mxu0
      %v718 = vpop.f32.mrf.mxu0
      %v719 = vadd.f32 0.0, %v718
      %v720 = vpop.f32.mrf.mxu0
      %721 = vdwg.mxu0
      %v722 = vadd.f32 %v525, %v684
      %v723 = vadd.f32 %v528, %v687
      %v724 = vadd.f32 %v533, %v692
      %v725 = vadd.f32 %v536, %v695
      %v726 = vadd.f32 %v541, %v700
      %v727 = vadd.f32 %v544, %v703
      %v728 = vadd.f32 %v549, %v708
      %v729 = vadd.f32 %v552, %v711
      %v730 = vadd.f32 %v557, %v716
      %v731 = vadd.f32 %v560, %v719
      %v732 = vld [vmem:[%s187 + $0x4] sm:$0xe]
      %v733 = vld [vmem:[%s187 + $0x8] sm:$0xf]
      %v734 = vld [vmem:[%s187 + $0xc] sm:$0xf]
      %v735 = vld [vmem:[%s187 + $0x10] sm:$0xf]
      %v736 = vld [vmem:[%s187 + $0x14] sm:$0xf]
      %v737 = vld [vmem:[%s187 + $0x18] sm:$0xf]
      %v738 = vld [vmem:[%s187 + $0x1c] sm:$0xf]
      %v739 = vld [vmem:[%s187 + $0x20] sm:$0xf]
      %v740 = vld [vmem:[%s187 + $0x24] sm:$0xf]
      %v741 = vld [vmem:[%s187 + $0x28] sm:$0xf]
      %v742 = vld [vmem:[%s187 + $0x2c] sm:$0x1]
      %s743 = scalar_lea.vmem %s1, 192
      %v744 = vld [vmem:[%s743] sm:$0xf]
      %v745 = vld [vmem:[%s743 + $0x4] sm:$0xf]
      %v746 = vld [vmem:[%s743 + $0x8] sm:$0xf]
      %v747 = vld [vmem:[%s743 + $0xc] sm:$0xf]
      %v748 = vld [vmem:[%s743 + $0x10] sm:$0xf]
      %v749 = vld [vmem:[%s743 + $0x14] sm:$0xf]
      %v750 = vld [vmem:[%s743 + $0x18] sm:$0xf]
      %v751 = vld [vmem:[%s743 + $0x1c] sm:$0xf]
      %v752 = vld [vmem:[%s743 + $0x20] sm:$0xf]
      %v753 = vld [vmem:[%s743 + $0x24] sm:$0xf]
      %v754 = vld [vmem:[%s743 + $0x28] sm:$0xf]
      %v755 = vld [vmem:[%s743 + $0x2c] sm:$0xf]
      %v756 = vld [vmem:[%s743 + $0x30] sm:$0xf]
      %v757 = vld [vmem:[%s743 + $0x34] sm:$0xf]
      %v758 = vld [vmem:[%s743 + $0x38] sm:$0xf]
      %v759 = vld [vmem:[%s743 + $0x3c] sm:$0xf]
      %v771 = vunpack.c.l.b16 %v732
      %v772 = vunpack.c.l.b16 %v733
      %v773 = vunpack.c.l.b16 %v734
      %v774 = vunpack.c.l.b16 %v735
      %v775 = vunpack.c.l.b16 %v736
      %v776 = vunpack.c.l.b16 %v737
      %v777 = vunpack.c.l.b16 %v738
      %v778 = vunpack.c.l.b16 %v739
      %v779 = vunpack.c.l.b16 %v740
      %v780 = vunpack.c.l.b16 %v741
      %v781 = vunpack.c.l.b16 %v742
      %v782 = vpack.c.b16 %v772, %v771
      %v783 = vpack.c.b16 %v774, %v773
      %v784 = vpack.c.b16 %v776, %v775
      %v785 = vpack.c.b16 %v778, %v777
      %v786 = vpack.c.b16 %v780, %v779
      %v787 = vpack.c.b16 %v781, %v781
      %v788 = vrot.slane %v782, 1
      %v789 = vrot.slane %v783, 1
      %v790 = vsel %vm584, %v788, %v789
      %v791 = vrot.slane %v784, 1
      %v792 = vsel %vm584, %v789, %v791
      %v793 = vrot.slane %v785, 1
      %v794 = vsel %vm584, %v791, %v793
      %v795 = vrot.slane %v786, 1
      %v796 = vsel %vm584, %v793, %v795
      %v797 = vrot.slane %v787, 1
      %v798 = vsel %vm584, %v795, %v797
      %v820 = vunpack.c.l.b16 %v744
      %v821 = vunpack.c.l.b16 %v745
      %v822 = vunpack.c.l.b16 %v746
      %v823 = vunpack.c.l.b16 %v747
      %v824 = vunpack.c.l.b16 %v748
      %v825 = vunpack.c.l.b16 %v749
      %v826 = vunpack.c.l.b16 %v750
      %v827 = vunpack.c.l.b16 %v751
      %v828 = vunpack.c.l.b16 %v752
      %v829 = vunpack.c.l.b16 %v753
      %v830 = vunpack.c.l.b16 %v754
      %v831 = vunpack.c.l.b16 %v755
      %v832 = vunpack.c.l.b16 %v756
      %v833 = vunpack.c.l.b16 %v757
      %v834 = vunpack.c.l.b16 %v758
      %v835 = vunpack.c.l.b16 %v759
      %v836 = vpack.c.b16 %v821, %v820
      %v837 = vpack.c.b16 %v823, %v822
      %v838 = vpack.c.b16 %v825, %v824
      %v839 = vpack.c.b16 %v827, %v826
      %v840 = vpack.c.b16 %v829, %v828
      %v841 = vpack.c.b16 %v831, %v830
      %v842 = vpack.c.b16 %v833, %v832
      %v843 = vpack.c.b16 %v835, %v834
      %852 = vmatprep.subr.bf16.mxu0 0
      %853 = vmatpush1.bf16.msra.mxu0 %v843
      %854 = vmatprep.subr.bf16.mxu0 0
      %855 = vmatpush1.bf16.msra.mxu0 %v842
      %856 = vmatprep.subr.bf16.mxu0 0
      %857 = vmatpush1.bf16.msra.mxu0 %v841
      %858 = vmatprep.subr.bf16.mxu0 0
      %859 = vmatpush1.bf16.msra.mxu0 %v840
      %860 = vmatprep.subr.bf16.mxu0 0
      %861 = vmatpush1.bf16.msra.mxu0 %v839
      %862 = vmatprep.subr.bf16.mxu0 0
      %863 = vmatpush1.bf16.msra.mxu0 %v838
      %864 = vmatprep.subr.bf16.mxu0 0
      %865 = vmatpush1.bf16.msra.mxu0 %v837
      %866 = vmatprep.subr.bf16.mxu0 0
      %867 = vmatpush1.bf16.msra.mxu0 %v836
      %868 = vmatprep.subr.bf16.mxu0 0
      %869 = vmatpush2.bf16.msra.mxu0 0
      %870 = vmatprep.subr.bf16.mxu0 0
      %871 = vmatpush2.bf16.msra.mxu0 0
      %872 = vmatprep.subr.bf16.mxu0 0
      %873 = vmatpush2.bf16.msra.mxu0 0
      %874 = vmatprep.subr.bf16.mxu0 0
      %875 = vmatpush2.bf16.msra.mxu0 0
      %876 = vmatprep.subr.bf16.mxu0 0
      %877 = vmatpush2.bf16.msra.mxu0 0
      %878 = vmatprep.subr.bf16.mxu0 0
      %879 = vmatpush2.bf16.msra.mxu0 0
      %880 = vmatprep.subr.bf16.mxu0 0
      %881 = vmatpush2.bf16.msra.mxu0 0
      %882 = vmatprep.subr.bf16.mxu0 0
      %883 = vmatpush2.bf16.msra.mxu0 0
      %884 = vmatprep.mubr.bf16.mxu0 0
      %885 = vmatmul.mubr.bf16.gmra.mxu0 %v790
      %v886 = vpop.f32.mrf.mxu0
      %v887 = vadd.f32 0.0, %v886
      %v888 = vpop.f32.mrf.mxu0
      %v889 = vpop.f32.mrf.mxu0
      %v890 = vadd.f32 0.0, %v889
      %v891 = vpop.f32.mrf.mxu0
      %892 = vmatprep.mubr.bf16.mxu0 0
      %893 = vmatmul.mubr.bf16.gmra.mxu0 %v792
      %v894 = vpop.f32.mrf.mxu0
      %v895 = vadd.f32 0.0, %v894
      %v896 = vpop.f32.mrf.mxu0
      %v897 = vpop.f32.mrf.mxu0
      %v898 = vadd.f32 0.0, %v897
      %v899 = vpop.f32.mrf.mxu0
      %900 = vmatprep.mubr.bf16.mxu0 0
      %901 = vmatmul.mubr.bf16.gmra.mxu0 %v794
      %v902 = vpop.f32.mrf.mxu0
      %v903 = vadd.f32 0.0, %v902
      %v904 = vpop.f32.mrf.mxu0
      %v905 = vpop.f32.mrf.mxu0
      %v906 = vadd.f32 0.0, %v905
      %v907 = vpop.f32.mrf.mxu0
      %908 = vmatprep.mubr.bf16.mxu0 0
      %909 = vmatmul.mubr.bf16.gmra.mxu0 %v796
      %v910 = vpop.f32.mrf.mxu0
      %v911 = vadd.f32 0.0, %v910
      %v912 = vpop.f32.mrf.mxu0
      %v913 = vpop.f32.mrf.mxu0
      %v914 = vadd.f32 0.0, %v913
      %v915 = vpop.f32.mrf.mxu0
      %916 = vmatprep.mubr.bf16.mxu0 0
      %917 = vmatmul.mubr.bf16.gmra.mxu0 %v798
      %v918 = vpop.f32.mrf.mxu0
      %v919 = vadd.f32 0.0, %v918
      %v920 = vpop.f32.mrf.mxu0
      %v921 = vpop.f32.mrf.mxu0
      %v922 = vadd.f32 0.0, %v921
      %v923 = vpop.f32.mrf.mxu0
      %924 = vdwg.mxu0
      %v925 = vadd.f32 %v722, %v887
      %v926 = vadd.f32 %v723, %v890
      %v927 = vadd.f32 %v724, %v895
      %v928 = vadd.f32 %v725, %v898
      %v929 = vadd.f32 %v726, %v903
      %v930 = vadd.f32 %v727, %v906
      %v931 = vadd.f32 %v728, %v911
      %v932 = vadd.f32 %v729, %v914
      %v933 = vadd.f32 %v730, %v919
      %v934 = vadd.f32 %v731, %v922
      %v935 = vld [vmem:[%s187 + $0x2c] sm:$0x3]
      %s936 = scalar_lea.vmem %s1, 256
      %v937 = vld [vmem:[%s936] sm:$0xf]
      %v938 = vld [vmem:[%s936 + $0x4] sm:$0xf]
      %v939 = vld [vmem:[%s936 + $0x8] sm:$0xf]
      %v940 = vld [vmem:[%s936 + $0xc] sm:$0xf]
      %v941 = vld [vmem:[%s936 + $0x10] sm:$0xf]
      %v942 = vld [vmem:[%s936 + $0x14] sm:$0xf]
      %v943 = vld [vmem:[%s936 + $0x18] sm:$0xf]
      %v944 = vld [vmem:[%s936 + $0x1c] sm:$0xf]
      %v945 = vld [vmem:[%s936 + $0x20] sm:$0xf]
      %v946 = vld [vmem:[%s936 + $0x24] sm:$0xf]
      %v947 = vld [vmem:[%s936 + $0x28] sm:$0xf]
      %v948 = vld [vmem:[%s936 + $0x2c] sm:$0xf]
      %v949 = vld [vmem:[%s936 + $0x30] sm:$0xf]
      %v950 = vld [vmem:[%s936 + $0x34] sm:$0xf]
      %v951 = vld [vmem:[%s936 + $0x38] sm:$0xf]
      %v952 = vld [vmem:[%s936 + $0x3c] sm:$0xf]
      %v954 = vunpack.c.l.b16 %v935
      %v955 = vpack.c.b16 %v954, %v954
      %vm956 = vsmask.f32 6400
      %v958 = vshrl.u32 %v782, 16
      %v960 = vrot.slane %v958, 1
      %v961 = vshll.u32 %v782, 16
      %v963 = vrot.slane %v961, 2
      %v964 = vor.u32 %v960, %v963
      %v966 = vshrl.u32 %v783, 16
      %v968 = vrot.slane %v966, 1
      %v969 = vshll.u32 %v783, 16
      %v971 = vrot.slane %v969, 2
      %v972 = vor.u32 %v968, %v971
      %v973 = vsel %vm956, %v964, %v972
      %v975 = vshrl.u32 %v784, 16
      %v977 = vrot.slane %v975, 1
      %v978 = vshll.u32 %v784, 16
      %v980 = vrot.slane %v978, 2
      %v981 = vor.u32 %v977, %v980
      %v982 = vsel %vm956, %v972, %v981
      %v984 = vshrl.u32 %v785, 16
      %v986 = vrot.slane %v984, 1
      %v987 = vshll.u32 %v785, 16
      %v989 = vrot.slane %v987, 2
      %v990 = vor.u32 %v986, %v989
      %v991 = vsel %vm956, %v981, %v990
      %v993 = vshrl.u32 %v786, 16
      %v995 = vrot.slane %v993, 1
      %v996 = vshll.u32 %v786, 16
      %v998 = vrot.slane %v996, 2
      %v999 = vor.u32 %v995, %v998
      %v1000 = vsel %vm956, %v990, %v999
      %v1002 = vshrl.u32 %v955, 16
      %v1004 = vrot.slane %v1002, 1
      %v1005 = vshll.u32 %v955, 16
      %v1007 = vrot.slane %v1005, 2
      %v1008 = vor.u32 %v1004, %v1007
      %v1009 = vsel %vm956, %v999, %v1008
      %v1031 = vunpack.c.l.b16 %v937
      %v1032 = vunpack.c.l.b16 %v938
      %v1033 = vunpack.c.l.b16 %v939
      %v1034 = vunpack.c.l.b16 %v940
      %v1035 = vunpack.c.l.b16 %v941
      %v1036 = vunpack.c.l.b16 %v942
      %v1037 = vunpack.c.l.b16 %v943
      %v1038 = vunpack.c.l.b16 %v944
      %v1039 = vunpack.c.l.b16 %v945
      %v1040 = vunpack.c.l.b16 %v946
      %v1041 = vunpack.c.l.b16 %v947
      %v1042 = vunpack.c.l.b16 %v948
      %v1043 = vunpack.c.l.b16 %v949
      %v1044 = vunpack.c.l.b16 %v950
      %v1045 = vunpack.c.l.b16 %v951
      %v1046 = vunpack.c.l.b16 %v952
      %v1047 = vpack.c.b16 %v1032, %v1031
      %v1048 = vpack.c.b16 %v1034, %v1033
      %v1049 = vpack.c.b16 %v1036, %v1035
      %v1050 = vpack.c.b16 %v1038, %v1037
      %v1051 = vpack.c.b16 %v1040, %v1039
      %v1052 = vpack.c.b16 %v1042, %v1041
      %v1053 = vpack.c.b16 %v1044, %v1043
      %v1054 = vpack.c.b16 %v1046, %v1045
      %1063 = vmatprep.subr.bf16.mxu0 0
      %1064 = vmatpush1.bf16.msra.mxu0 %v1054
      %1065 = vmatprep.subr.bf16.mxu0 0
      %1066 = vmatpush1.bf16.msra.mxu0 %v1053
      %1067 = vmatprep.subr.bf16.mxu0 0
      %1068 = vmatpush1.bf16.msra.mxu0 %v1052
      %1069 = vmatprep.subr.bf16.mxu0 0
      %1070 = vmatpush1.bf16.msra.mxu0 %v1051
      %1071 = vmatprep.subr.bf16.mxu0 0
      %1072 = vmatpush1.bf16.msra.mxu0 %v1050
      %1073 = vmatprep.subr.bf16.mxu0 0
      %1074 = vmatpush1.bf16.msra.mxu0 %v1049
      %1075 = vmatprep.subr.bf16.mxu0 0
      %1076 = vmatpush1.bf16.msra.mxu0 %v1048
      %1077 = vmatprep.subr.bf16.mxu0 0
      %1078 = vmatpush1.bf16.msra.mxu0 %v1047
      %1079 = vmatprep.subr.bf16.mxu0 0
      %1080 = vmatpush2.bf16.msra.mxu0 0
      %1081 = vmatprep.subr.bf16.mxu0 0
      %1082 = vmatpush2.bf16.msra.mxu0 0
      %1083 = vmatprep.subr.bf16.mxu0 0
      %1084 = vmatpush2.bf16.msra.mxu0 0
      %1085 = vmatprep.subr.bf16.mxu0 0
      %1086 = vmatpush2.bf16.msra.mxu0 0
      %1087 = vmatprep.subr.bf16.mxu0 0
      %1088 = vmatpush2.bf16.msra.mxu0 0
      %1089 = vmatprep.subr.bf16.mxu0 0
      %1090 = vmatpush2.bf16.msra.mxu0 0
      %1091 = vmatprep.subr.bf16.mxu0 0
      %1092 = vmatpush2.bf16.msra.mxu0 0
      %1093 = vmatprep.subr.bf16.mxu0 0
      %1094 = vmatpush2.bf16.msra.mxu0 0
      %1095 = vmatprep.mubr.bf16.mxu0 0
      %1096 = vmatmul.mubr.bf16.gmra.mxu0 %v973
      %v1097 = vpop.f32.mrf.mxu0
      %v1098 = vadd.f32 0.0, %v1097
      %v1099 = vpop.f32.mrf.mxu0
      %v1100 = vpop.f32.mrf.mxu0
      %v1101 = vadd.f32 0.0, %v1100
      %v1102 = vpop.f32.mrf.mxu0
      %1103 = vmatprep.mubr.bf16.mxu0 0
      %1104 = vmatmul.mubr.bf16.gmra.mxu0 %v982
      %v1105 = vpop.f32.mrf.mxu0
      %v1106 = vadd.f32 0.0, %v1105
      %v1107 = vpop.f32.mrf.mxu0
      %v1108 = vpop.f32.mrf.mxu0
      %v1109 = vadd.f32 0.0, %v1108
      %v1110 = vpop.f32.mrf.mxu0
      %1111 = vmatprep.mubr.bf16.mxu0 0
      %1112 = vmatmul.mubr.bf16.gmra.mxu0 %v991
      %v1113 = vpop.f32.mrf.mxu0
      %v1114 = vadd.f32 0.0, %v1113
      %v1115 = vpop.f32.mrf.mxu0
      %v1116 = vpop.f32.mrf.mxu0
      %v1117 = vadd.f32 0.0, %v1116
      %v1118 = vpop.f32.mrf.mxu0
      %1119 = vmatprep.mubr.bf16.mxu0 0
      %1120 = vmatmul.mubr.bf16.gmra.mxu0 %v1000
      %v1121 = vpop.f32.mrf.mxu0
      %v1122 = vadd.f32 0.0, %v1121
      %v1123 = vpop.f32.mrf.mxu0
      %v1124 = vpop.f32.mrf.mxu0
      %v1125 = vadd.f32 0.0, %v1124
      %v1126 = vpop.f32.mrf.mxu0
      %1127 = vmatprep.mubr.bf16.mxu0 0
      %1128 = vmatmul.mubr.bf16.gmra.mxu0 %v1009
      %v1129 = vpop.f32.mrf.mxu0
      %v1130 = vadd.f32 0.0, %v1129
      %v1131 = vpop.f32.mrf.mxu0
      %v1132 = vpop.f32.mrf.mxu0
      %v1133 = vadd.f32 0.0, %v1132
      %v1134 = vpop.f32.mrf.mxu0
      %1135 = vdwg.mxu0
      %v1136 = vadd.f32 %v925, %v1098
      %v1137 = vadd.f32 %v926, %v1101
      %v1138 = vadd.f32 %v927, %v1106
      %v1139 = vadd.f32 %v928, %v1109
      %v1140 = vadd.f32 %v929, %v1114
      %v1141 = vadd.f32 %v930, %v1117
      %v1142 = vadd.f32 %v931, %v1122
      %v1143 = vadd.f32 %v932, %v1125
      %v1144 = vadd.f32 %v933, %v1130
      %v1145 = vadd.f32 %v934, %v1133
      %v1146 = vld [vmem:[%s187 + $0x4] sm:$0xc]
      %s1147 = scalar_lea.vmem %s1, 320
      %v1148 = vld [vmem:[%s1147] sm:$0xf]
      %v1149 = vld [vmem:[%s1147 + $0x4] sm:$0xf]
      %v1150 = vld [vmem:[%s1147 + $0x8] sm:$0xf]
      %v1151 = vld [vmem:[%s1147 + $0xc] sm:$0xf]
      %v1152 = vld [vmem:[%s1147 + $0x10] sm:$0xf]
      %v1153 = vld [vmem:[%s1147 + $0x14] sm:$0xf]
      %v1154 = vld [vmem:[%s1147 + $0x18] sm:$0xf]
      %v1155 = vld [vmem:[%s1147 + $0x1c] sm:$0xf]
      %v1156 = vld [vmem:[%s1147 + $0x20] sm:$0xf]
      %v1157 = vld [vmem:[%s1147 + $0x24] sm:$0xf]
      %v1158 = vld [vmem:[%s1147 + $0x28] sm:$0xf]
      %v1159 = vld [vmem:[%s1147 + $0x2c] sm:$0xf]
      %v1160 = vld [vmem:[%s1147 + $0x30] sm:$0xf]
      %v1161 = vld [vmem:[%s1147 + $0x34] sm:$0xf]
      %v1162 = vld [vmem:[%s1147 + $0x38] sm:$0xf]
      %v1163 = vld [vmem:[%s1147 + $0x3c] sm:$0xf]
      %v1165 = vunpack.c.l.b16 %v1146
      %v1166 = vpack.c.b16 %v772, %v1165
      %vm1167 = vcmask 1045504
      %v1168 = vrot.slane %v1166, 2
      %v1169 = vrot.slane %v783, 2
      %v1170 = vsel %vm1167, %v1168, %v1169
      %v1171 = vrot.slane %v784, 2
      %v1172 = vsel %vm1167, %v1169, %v1171
      %v1173 = vrot.slane %v785, 2
      %v1174 = vsel %vm1167, %v1171, %v1173
      %v1175 = vrot.slane %v786, 2
      %v1176 = vsel %vm1167, %v1173, %v1175
      %v1177 = vrot.slane %v955, 2
      %v1178 = vsel %vm1167, %v1175, %v1177
      %v1200 = vunpack.c.l.b16 %v1148
      %v1201 = vunpack.c.l.b16 %v1149
      %v1202 = vunpack.c.l.b16 %v1150
      %v1203 = vunpack.c.l.b16 %v1151
      %v1204 = vunpack.c.l.b16 %v1152
      %v1205 = vunpack.c.l.b16 %v1153
      %v1206 = vunpack.c.l.b16 %v1154
      %v1207 = vunpack.c.l.b16 %v1155
      %v1208 = vunpack.c.l.b16 %v1156
      %v1209 = vunpack.c.l.b16 %v1157
      %v1210 = vunpack.c.l.b16 %v1158
      %v1211 = vunpack.c.l.b16 %v1159
      %v1212 = vunpack.c.l.b16 %v1160
      %v1213 = vunpack.c.l.b16 %v1161
      %v1214 = vunpack.c.l.b16 %v1162
      %v1215 = vunpack.c.l.b16 %v1163
      %v1216 = vpack.c.b16 %v1201, %v1200
      %v1217 = vpack.c.b16 %v1203, %v1202
      %v1218 = vpack.c.b16 %v1205, %v1204
      %v1219 = vpack.c.b16 %v1207, %v1206
      %v1220 = vpack.c.b16 %v1209, %v1208
      %v1221 = vpack.c.b16 %v1211, %v1210
      %v1222 = vpack.c.b16 %v1213, %v1212
      %v1223 = vpack.c.b16 %v1215, %v1214
      %1232 = vmatprep.subr.bf16.mxu0 0
      %1233 = vmatpush1.bf16.msra.mxu0 %v1223
      %1234 = vmatprep.subr.bf16.mxu0 0
      %1235 = vmatpush1.bf16.msra.mxu0 %v1222
      %1236 = vmatprep.subr.bf16.mxu0 0
      %1237 = vmatpush1.bf16.msra.mxu0 %v1221
      %1238 = vmatprep.subr.bf16.mxu0 0
      %1239 = vmatpush1.bf16.msra.mxu0 %v1220
      %1240 = vmatprep.subr.bf16.mxu0 0
      %1241 = vmatpush1.bf16.msra.mxu0 %v1219
      %1242 = vmatprep.subr.bf16.mxu0 0
      %1243 = vmatpush1.bf16.msra.mxu0 %v1218
      %1244 = vmatprep.subr.bf16.mxu0 0
      %1245 = vmatpush1.bf16.msra.mxu0 %v1217
      %1246 = vmatprep.subr.bf16.mxu0 0
      %1247 = vmatpush1.bf16.msra.mxu0 %v1216
      %1248 = vmatprep.subr.bf16.mxu0 0
      %1249 = vmatpush2.bf16.msra.mxu0 0
      %1250 = vmatprep.subr.bf16.mxu0 0
      %1251 = vmatpush2.bf16.msra.mxu0 0
      %1252 = vmatprep.subr.bf16.mxu0 0
      %1253 = vmatpush2.bf16.msra.mxu0 0
      %1254 = vmatprep.subr.bf16.mxu0 0
      %1255 = vmatpush2.bf16.msra.mxu0 0
      %1256 = vmatprep.subr.bf16.mxu0 0
      %1257 = vmatpush2.bf16.msra.mxu0 0
      %1258 = vmatprep.subr.bf16.mxu0 0
      %1259 = vmatpush2.bf16.msra.mxu0 0
      %1260 = vmatprep.subr.bf16.mxu0 0
      %1261 = vmatpush2.bf16.msra.mxu0 0
      %1262 = vmatprep.subr.bf16.mxu0 0
      %1263 = vmatpush2.bf16.msra.mxu0 0
      %1264 = vmatprep.mubr.bf16.mxu0 0
      %1265 = vmatmul.mubr.bf16.gmra.mxu0 %v1170
      %v1266 = vpop.f32.mrf.mxu0
      %v1267 = vadd.f32 0.0, %v1266
      %v1268 = vpop.f32.mrf.mxu0
      %v1269 = vpop.f32.mrf.mxu0
      %v1270 = vadd.f32 0.0, %v1269
      %v1271 = vpop.f32.mrf.mxu0
      %1272 = vmatprep.mubr.bf16.mxu0 0
      %1273 = vmatmul.mubr.bf16.gmra.mxu0 %v1172
      %v1274 = vpop.f32.mrf.mxu0
      %v1275 = vadd.f32 0.0, %v1274
      %v1276 = vpop.f32.mrf.mxu0
      %v1277 = vpop.f32.mrf.mxu0
      %v1278 = vadd.f32 0.0, %v1277
      %v1279 = vpop.f32.mrf.mxu0
      %1280 = vmatprep.mubr.bf16.mxu0 0
      %1281 = vmatmul.mubr.bf16.gmra.mxu0 %v1174
      %v1282 = vpop.f32.mrf.mxu0
      %v1283 = vadd.f32 0.0, %v1282
      %v1284 = vpop.f32.mrf.mxu0
      %v1285 = vpop.f32.mrf.mxu0
      %v1286 = vadd.f32 0.0, %v1285
      %v1287 = vpop.f32.mrf.mxu0
      %1288 = vmatprep.mubr.bf16.mxu0 0
      %1289 = vmatmul.mubr.bf16.gmra.mxu0 %v1176
      %v1290 = vpop.f32.mrf.mxu0
      %v1291 = vadd.f32 0.0, %v1290
      %v1292 = vpop.f32.mrf.mxu0
      %v1293 = vpop.f32.mrf.mxu0
      %v1294 = vadd.f32 0.0, %v1293
      %v1295 = vpop.f32.mrf.mxu0
      %1296 = vmatprep.mubr.bf16.mxu0 0
      %1297 = vmatmul.mubr.bf16.gmra.mxu0 %v1178
      %v1298 = vpop.f32.mrf.mxu0
      %v1299 = vadd.f32 0.0, %v1298
      %v1300 = vpop.f32.mrf.mxu0
      %v1301 = vpop.f32.mrf.mxu0
      %v1302 = vadd.f32 0.0, %v1301
      %v1303 = vpop.f32.mrf.mxu0
      %1304 = vdwg.mxu0
      %v1305 = vadd.f32 %v1136, %v1267
      %v1306 = vadd.f32 %v1137, %v1270
      %v1307 = vadd.f32 %v1138, %v1275
      %v1308 = vadd.f32 %v1139, %v1278
      %v1309 = vadd.f32 %v1140, %v1283
      %v1310 = vadd.f32 %v1141, %v1286
      %v1311 = vadd.f32 %v1142, %v1291
      %v1312 = vadd.f32 %v1143, %v1294
      %v1313 = vadd.f32 %v1144, %v1299
      %v1314 = vadd.f32 %v1145, %v1302
      %v1315 = vld [vmem:[%s187 + $0x8] sm:$0xc]
      %v1316 = vld [vmem:[%s187 + $0xc] sm:$0xf]
      %v1317 = vld [vmem:[%s187 + $0x10] sm:$0xf]
      %v1318 = vld [vmem:[%s187 + $0x14] sm:$0xf]
      %v1319 = vld [vmem:[%s187 + $0x18] sm:$0xf]
      %v1320 = vld [vmem:[%s187 + $0x1c] sm:$0xf]
      %v1321 = vld [vmem:[%s187 + $0x20] sm:$0xf]
      %v1322 = vld [vmem:[%s187 + $0x24] sm:$0xf]
      %v1323 = vld [vmem:[%s187 + $0x28] sm:$0xf]
      %v1324 = vld [vmem:[%s187 + $0x2c] sm:$0xf]
      %v1325 = vld [vmem:[%s187 + $0x30] sm:$0x3]
      %s1326 = scalar_lea.vmem %s1, 384
      %v1327 = vld [vmem:[%s1326] sm:$0xf]
      %v1328 = vld [vmem:[%s1326 + $0x4] sm:$0xf]
      %v1329 = vld [vmem:[%s1326 + $0x8] sm:$0xf]
      %v1330 = vld [vmem:[%s1326 + $0xc] sm:$0xf]
      %v1331 = vld [vmem:[%s1326 + $0x10] sm:$0xf]
      %v1332 = vld [vmem:[%s1326 + $0x14] sm:$0xf]
      %v1333 = vld [vmem:[%s1326 + $0x18] sm:$0xf]
      %v1334 = vld [vmem:[%s1326 + $0x1c] sm:$0xf]
      %v1335 = vld [vmem:[%s1326 + $0x20] sm:$0xf]
      %v1336 = vld [vmem:[%s1326 + $0x24] sm:$0xf]
      %v1337 = vld [vmem:[%s1326 + $0x28] sm:$0xf]
      %v1338 = vld [vmem:[%s1326 + $0x2c] sm:$0xf]
      %v1339 = vld [vmem:[%s1326 + $0x30] sm:$0xf]
      %v1340 = vld [vmem:[%s1326 + $0x34] sm:$0xf]
      %v1341 = vld [vmem:[%s1326 + $0x38] sm:$0xf]
      %v1342 = vld [vmem:[%s1326 + $0x3c] sm:$0xf]
      %v1354 = vunpack.c.l.b16 %v1315
      %v1355 = vunpack.c.l.b16 %v1316
      %v1356 = vunpack.c.l.b16 %v1317
      %v1357 = vunpack.c.l.b16 %v1318
      %v1358 = vunpack.c.l.b16 %v1319
      %v1359 = vunpack.c.l.b16 %v1320
      %v1360 = vunpack.c.l.b16 %v1321
      %v1361 = vunpack.c.l.b16 %v1322
      %v1362 = vunpack.c.l.b16 %v1323
      %v1363 = vunpack.c.l.b16 %v1324
      %v1364 = vunpack.c.l.b16 %v1325
      %v1365 = vpack.c.b16 %v1355, %v1354
      %v1366 = vpack.c.b16 %v1357, %v1356
      %v1367 = vpack.c.b16 %v1359, %v1358
      %v1368 = vpack.c.b16 %v1361, %v1360
      %v1369 = vpack.c.b16 %v1363, %v1362
      %v1370 = vpack.c.b16 %v1364, %v1364
      %v1371 = vrot.slane %v1365, 2
      %v1372 = vrot.slane %v1366, 2
      %v1373 = vsel %vm1167, %v1371, %v1372
      %v1374 = vrot.slane %v1367, 2
      %v1375 = vsel %vm1167, %v1372, %v1374
      %v1376 = vrot.slane %v1368, 2
      %v1377 = vsel %vm1167, %v1374, %v1376
      %v1378 = vrot.slane %v1369, 2
      %v1379 = vsel %vm1167, %v1376, %v1378
      %v1380 = vrot.slane %v1370, 2
      %v1381 = vsel %vm1167, %v1378, %v1380
      %v1403 = vunpack.c.l.b16 %v1327
      %v1404 = vunpack.c.l.b16 %v1328
      %v1405 = vunpack.c.l.b16 %v1329
      %v1406 = vunpack.c.l.b16 %v1330
      %v1407 = vunpack.c.l.b16 %v1331
      %v1408 = vunpack.c.l.b16 %v1332
      %v1409 = vunpack.c.l.b16 %v1333
      %v1410 = vunpack.c.l.b16 %v1334
      %v1411 = vunpack.c.l.b16 %v1335
      %v1412 = vunpack.c.l.b16 %v1336
      %v1413 = vunpack.c.l.b16 %v1337
      %v1414 = vunpack.c.l.b16 %v1338
      %v1415 = vunpack.c.l.b16 %v1339
      %v1416 = vunpack.c.l.b16 %v1340
      %v1417 = vunpack.c.l.b16 %v1341
      %v1418 = vunpack.c.l.b16 %v1342
      %v1419 = vpack.c.b16 %v1404, %v1403
      %v1420 = vpack.c.b16 %v1406, %v1405
      %v1421 = vpack.c.b16 %v1408, %v1407
      %v1422 = vpack.c.b16 %v1410, %v1409
      %v1423 = vpack.c.b16 %v1412, %v1411
      %v1424 = vpack.c.b16 %v1414, %v1413
      %v1425 = vpack.c.b16 %v1416, %v1415
      %v1426 = vpack.c.b16 %v1418, %v1417
      %1435 = vmatprep.subr.bf16.mxu0 0
      %1436 = vmatpush1.bf16.msra.mxu0 %v1426
      %1437 = vmatprep.subr.bf16.mxu0 0
      %1438 = vmatpush1.bf16.msra.mxu0 %v1425
      %1439 = vmatprep.subr.bf16.mxu0 0
      %1440 = vmatpush1.bf16.msra.mxu0 %v1424
      %1441 = vmatprep.subr.bf16.mxu0 0
      %1442 = vmatpush1.bf16.msra.mxu0 %v1423
      %1443 = vmatprep.subr.bf16.mxu0 0
      %1444 = vmatpush1.bf16.msra.mxu0 %v1422
      %1445 = vmatprep.subr.bf16.mxu0 0
      %1446 = vmatpush1.bf16.msra.mxu0 %v1421
      %1447 = vmatprep.subr.bf16.mxu0 0
      %1448 = vmatpush1.bf16.msra.mxu0 %v1420
      %1449 = vmatprep.subr.bf16.mxu0 0
      %1450 = vmatpush1.bf16.msra.mxu0 %v1419
      %1451 = vmatprep.subr.bf16.mxu0 0
      %1452 = vmatpush2.bf16.msra.mxu0 0
      %1453 = vmatprep.subr.bf16.mxu0 0
      %1454 = vmatpush2.bf16.msra.mxu0 0
      %1455 = vmatprep.subr.bf16.mxu0 0
      %1456 = vmatpush2.bf16.msra.mxu0 0
      %1457 = vmatprep.subr.bf16.mxu0 0
      %1458 = vmatpush2.bf16.msra.mxu0 0
      %1459 = vmatprep.subr.bf16.mxu0 0
      %1460 = vmatpush2.bf16.msra.mxu0 0
      %1461 = vmatprep.subr.bf16.mxu0 0
      %1462 = vmatpush2.bf16.msra.mxu0 0
      %1463 = vmatprep.subr.bf16.mxu0 0
      %1464 = vmatpush2.bf16.msra.mxu0 0
      %1465 = vmatprep.subr.bf16.mxu0 0
      %1466 = vmatpush2.bf16.msra.mxu0 0
      %1467 = vmatprep.mubr.bf16.mxu0 0
      %1468 = vmatmul.mubr.bf16.gmra.mxu0 %v1373
      %v1469 = vpop.f32.mrf.mxu0
      %v1470 = vadd.f32 0.0, %v1469
      %v1471 = vpop.f32.mrf.mxu0
      %v1472 = vpop.f32.mrf.mxu0
      %v1473 = vadd.f32 0.0, %v1472
      %v1474 = vpop.f32.mrf.mxu0
      %1475 = vmatprep.mubr.bf16.mxu0 0
      %1476 = vmatmul.mubr.bf16.gmra.mxu0 %v1375
      %v1477 = vpop.f32.mrf.mxu0
      %v1478 = vadd.f32 0.0, %v1477
      %v1479 = vpop.f32.mrf.mxu0
      %v1480 = vpop.f32.mrf.mxu0
      %v1481 = vadd.f32 0.0, %v1480
      %v1482 = vpop.f32.mrf.mxu0
      %1483 = vmatprep.mubr.bf16.mxu0 0
      %1484 = vmatmul.mubr.bf16.gmra.mxu0 %v1377
      %v1485 = vpop.f32.mrf.mxu0
      %v1486 = vadd.f32 0.0, %v1485
      %v1487 = vpop.f32.mrf.mxu0
      %v1488 = vpop.f32.mrf.mxu0
      %v1489 = vadd.f32 0.0, %v1488
      %v1490 = vpop.f32.mrf.mxu0
      %1491 = vmatprep.mubr.bf16.mxu0 0
      %1492 = vmatmul.mubr.bf16.gmra.mxu0 %v1379
      %v1493 = vpop.f32.mrf.mxu0
      %v1494 = vadd.f32 0.0, %v1493
      %v1495 = vpop.f32.mrf.mxu0
      %v1496 = vpop.f32.mrf.mxu0
      %v1497 = vadd.f32 0.0, %v1496
      %v1498 = vpop.f32.mrf.mxu0
      %1499 = vmatprep.mubr.bf16.mxu0 0
      %1500 = vmatmul.mubr.bf16.gmra.mxu0 %v1381
      %v1501 = vpop.f32.mrf.mxu0
      %v1502 = vadd.f32 0.0, %v1501
      %v1503 = vpop.f32.mrf.mxu0
      %v1504 = vpop.f32.mrf.mxu0
      %v1505 = vadd.f32 0.0, %v1504
      %v1506 = vpop.f32.mrf.mxu0
      %1507 = vdwg.mxu0
      %v1508 = vadd.f32 %v1305, %v1470
      %v1509 = vadd.f32 %v1306, %v1473
      %v1510 = vadd.f32 %v1307, %v1478
      %v1511 = vadd.f32 %v1308, %v1481
      %v1512 = vadd.f32 %v1309, %v1486
      %v1513 = vadd.f32 %v1310, %v1489
      %v1514 = vadd.f32 %v1311, %v1494
      %v1515 = vadd.f32 %v1312, %v1497
      %v1516 = vadd.f32 %v1313, %v1502
      %v1517 = vadd.f32 %v1314, %v1505
      %v1518 = vld [vmem:[%s187 + $0x30] sm:$0x7]
      %s1519 = scalar_lea.vmem %s1, 448
      %v1520 = vld [vmem:[%s1519] sm:$0xf]
      %v1521 = vld [vmem:[%s1519 + $0x4] sm:$0xf]
      %v1522 = vld [vmem:[%s1519 + $0x8] sm:$0xf]
      %v1523 = vld [vmem:[%s1519 + $0xc] sm:$0xf]
      %v1524 = vld [vmem:[%s1519 + $0x10] sm:$0xf]
      %v1525 = vld [vmem:[%s1519 + $0x14] sm:$0xf]
      %v1526 = vld [vmem:[%s1519 + $0x18] sm:$0xf]
      %v1527 = vld [vmem:[%s1519 + $0x1c] sm:$0xf]
      %v1528 = vld [vmem:[%s1519 + $0x20] sm:$0xf]
      %v1529 = vld [vmem:[%s1519 + $0x24] sm:$0xf]
      %v1530 = vld [vmem:[%s1519 + $0x28] sm:$0xf]
      %v1531 = vld [vmem:[%s1519 + $0x2c] sm:$0xf]
      %v1532 = vld [vmem:[%s1519 + $0x30] sm:$0xf]
      %v1533 = vld [vmem:[%s1519 + $0x34] sm:$0xf]
      %v1534 = vld [vmem:[%s1519 + $0x38] sm:$0xf]
      %v1535 = vld [vmem:[%s1519 + $0x3c] sm:$0xf]
      %v1537 = vunpack.c.l.b16 %v1518
      %v1538 = vpack.c.b16 %v1537, %v1537
      %vm1539 = vsmask.f32 5376
      %v1541 = vshrl.u32 %v1365, 16
      %v1543 = vrot.slane %v1541, 2
      %v1544 = vshll.u32 %v1365, 16
      %v1546 = vrot.slane %v1544, 3
      %v1547 = vor.u32 %v1543, %v1546
      %v1549 = vshrl.u32 %v1366, 16
      %v1551 = vrot.slane %v1549, 2
      %v1552 = vshll.u32 %v1366, 16
      %v1554 = vrot.slane %v1552, 3
      %v1555 = vor.u32 %v1551, %v1554
      %v1556 = vsel %vm1539, %v1547, %v1555
      %v1558 = vshrl.u32 %v1367, 16
      %v1560 = vrot.slane %v1558, 2
      %v1561 = vshll.u32 %v1367, 16
      %v1563 = vrot.slane %v1561, 3
      %v1564 = vor.u32 %v1560, %v1563
      %v1565 = vsel %vm1539, %v1555, %v1564
      %v1567 = vshrl.u32 %v1368, 16
      %v1569 = vrot.slane %v1567, 2
      %v1570 = vshll.u32 %v1368, 16
      %v1572 = vrot.slane %v1570, 3
      %v1573 = vor.u32 %v1569, %v1572
      %v1574 = vsel %vm1539, %v1564, %v1573
      %v1576 = vshrl.u32 %v1369, 16
      %v1578 = vrot.slane %v1576, 2
      %v1579 = vshll.u32 %v1369, 16
      %v1581 = vrot.slane %v1579, 3
      %v1582 = vor.u32 %v1578, %v1581
      %v1583 = vsel %vm1539, %v1573, %v1582
      %v1585 = vshrl.u32 %v1538, 16
      %v1587 = vrot.slane %v1585, 2
      %v1588 = vshll.u32 %v1538, 16
      %v1590 = vrot.slane %v1588, 3
      %v1591 = vor.u32 %v1587, %v1590
      %v1592 = vsel %vm1539, %v1582, %v1591
      %v1614 = vunpack.c.l.b16 %v1520
      %v1615 = vunpack.c.l.b16 %v1521
      %v1616 = vunpack.c.l.b16 %v1522
      %v1617 = vunpack.c.l.b16 %v1523
      %v1618 = vunpack.c.l.b16 %v1524
      %v1619 = vunpack.c.l.b16 %v1525
      %v1620 = vunpack.c.l.b16 %v1526
      %v1621 = vunpack.c.l.b16 %v1527
      %v1622 = vunpack.c.l.b16 %v1528
      %v1623 = vunpack.c.l.b16 %v1529
      %v1624 = vunpack.c.l.b16 %v1530
      %v1625 = vunpack.c.l.b16 %v1531
      %v1626 = vunpack.c.l.b16 %v1532
      %v1627 = vunpack.c.l.b16 %v1533
      %v1628 = vunpack.c.l.b16 %v1534
      %v1629 = vunpack.c.l.b16 %v1535
      %v1630 = vpack.c.b16 %v1615, %v1614
      %v1631 = vpack.c.b16 %v1617, %v1616
      %v1632 = vpack.c.b16 %v1619, %v1618
      %v1633 = vpack.c.b16 %v1621, %v1620
      %v1634 = vpack.c.b16 %v1623, %v1622
      %v1635 = vpack.c.b16 %v1625, %v1624
      %v1636 = vpack.c.b16 %v1627, %v1626
      %v1637 = vpack.c.b16 %v1629, %v1628
      %1646 = vmatprep.subr.bf16.mxu0 0
      %1647 = vmatpush1.bf16.msra.mxu0 %v1637
      %1648 = vmatprep.subr.bf16.mxu0 0
      %1649 = vmatpush1.bf16.msra.mxu0 %v1636
      %1650 = vmatprep.subr.bf16.mxu0 0
      %1651 = vmatpush1.bf16.msra.mxu0 %v1635
      %1652 = vmatprep.subr.bf16.mxu0 0
      %1653 = vmatpush1.bf16.msra.mxu0 %v1634
      %1654 = vmatprep.subr.bf16.mxu0 0
      %1655 = vmatpush1.bf16.msra.mxu0 %v1633
      %1656 = vmatprep.subr.bf16.mxu0 0
      %1657 = vmatpush1.bf16.msra.mxu0 %v1632
      %1658 = vmatprep.subr.bf16.mxu0 0
      %1659 = vmatpush1.bf16.msra.mxu0 %v1631
      %1660 = vmatprep.subr.bf16.mxu0 0
      %1661 = vmatpush1.bf16.msra.mxu0 %v1630
      %1662 = vmatprep.subr.bf16.mxu0 0
      %1663 = vmatpush2.bf16.msra.mxu0 0
      %1664 = vmatprep.subr.bf16.mxu0 0
      %1665 = vmatpush2.bf16.msra.mxu0 0
      %1666 = vmatprep.subr.bf16.mxu0 0
      %1667 = vmatpush2.bf16.msra.mxu0 0
      %1668 = vmatprep.subr.bf16.mxu0 0
      %1669 = vmatpush2.bf16.msra.mxu0 0
      %1670 = vmatprep.subr.bf16.mxu0 0
      %1671 = vmatpush2.bf16.msra.mxu0 0
      %1672 = vmatprep.subr.bf16.mxu0 0
      %1673 = vmatpush2.bf16.msra.mxu0 0
      %1674 = vmatprep.subr.bf16.mxu0 0
      %1675 = vmatpush2.bf16.msra.mxu0 0
      %1676 = vmatprep.subr.bf16.mxu0 0
      %1677 = vmatpush2.bf16.msra.mxu0 0
      %1678 = vmatprep.mubr.bf16.mxu0 0
      %1679 = vmatmul.mubr.bf16.gmra.mxu0 %v1556
      %v1680 = vpop.f32.mrf.mxu0
      %v1681 = vadd.f32 0.0, %v1680
      %v1682 = vpop.f32.mrf.mxu0
      %v1683 = vpop.f32.mrf.mxu0
      %v1684 = vadd.f32 0.0, %v1683
      %v1685 = vpop.f32.mrf.mxu0
      %1686 = vmatprep.mubr.bf16.mxu0 0
      %1687 = vmatmul.mubr.bf16.gmra.mxu0 %v1565
      %v1688 = vpop.f32.mrf.mxu0
      %v1689 = vadd.f32 0.0, %v1688
      %v1690 = vpop.f32.mrf.mxu0
      %v1691 = vpop.f32.mrf.mxu0
      %v1692 = vadd.f32 0.0, %v1691
      %v1693 = vpop.f32.mrf.mxu0
      %1694 = vmatprep.mubr.bf16.mxu0 0
      %1695 = vmatmul.mubr.bf16.gmra.mxu0 %v1574
      %v1696 = vpop.f32.mrf.mxu0
      %v1697 = vadd.f32 0.0, %v1696
      %v1698 = vpop.f32.mrf.mxu0
      %v1699 = vpop.f32.mrf.mxu0
      %v1700 = vadd.f32 0.0, %v1699
      %v1701 = vpop.f32.mrf.mxu0
      %1702 = vmatprep.mubr.bf16.mxu0 0
      %1703 = vmatmul.mubr.bf16.gmra.mxu0 %v1583
      %v1704 = vpop.f32.mrf.mxu0
      %v1705 = vadd.f32 0.0, %v1704
      %v1706 = vpop.f32.mrf.mxu0
      %v1707 = vpop.f32.mrf.mxu0
      %v1708 = vadd.f32 0.0, %v1707
      %v1709 = vpop.f32.mrf.mxu0
      %1710 = vmatprep.mubr.bf16.mxu0 0
      %1711 = vmatmul.mubr.bf16.gmra.mxu0 %v1592
      %v1712 = vpop.f32.mrf.mxu0
      %v1713 = vadd.f32 0.0, %v1712
      %v1714 = vpop.f32.mrf.mxu0
      %v1715 = vpop.f32.mrf.mxu0
      %v1716 = vadd.f32 0.0, %v1715
      %v1717 = vpop.f32.mrf.mxu0
      %1718 = vdwg.mxu0
      %v1719 = vadd.f32 %v1508, %v1681
      %v1720 = vadd.f32 %v1509, %v1684
      %v1721 = vadd.f32 %v1510, %v1689
      %v1722 = vadd.f32 %v1511, %v1692
      %v1723 = vadd.f32 %v1512, %v1697
      %v1724 = vadd.f32 %v1513, %v1700
      %v1725 = vadd.f32 %v1514, %v1705
      %v1726 = vadd.f32 %v1515, %v1708
      %v1727 = vadd.f32 %v1516, %v1713
      %v1728 = vadd.f32 %v1517, %v1716
      %v1729 = vld [vmem:[%s187 + $0x8] sm:$0x8]
      %s1730 = scalar_lea.vmem %s1, 512
      %v1731 = vld [vmem:[%s1730] sm:$0xf]
      %v1732 = vld [vmem:[%s1730 + $0x4] sm:$0xf]
      %v1733 = vld [vmem:[%s1730 + $0x8] sm:$0xf]
      %v1734 = vld [vmem:[%s1730 + $0xc] sm:$0xf]
      %v1735 = vld [vmem:[%s1730 + $0x10] sm:$0xf]
      %v1736 = vld [vmem:[%s1730 + $0x14] sm:$0xf]
      %v1737 = vld [vmem:[%s1730 + $0x18] sm:$0xf]
      %v1738 = vld [vmem:[%s1730 + $0x1c] sm:$0xf]
      %v1739 = vld [vmem:[%s1730 + $0x20] sm:$0xf]
      %v1740 = vld [vmem:[%s1730 + $0x24] sm:$0xf]
      %v1741 = vld [vmem:[%s1730 + $0x28] sm:$0xf]
      %v1742 = vld [vmem:[%s1730 + $0x2c] sm:$0xf]
      %v1743 = vld [vmem:[%s1730 + $0x30] sm:$0xf]
      %v1744 = vld [vmem:[%s1730 + $0x34] sm:$0xf]
      %v1745 = vld [vmem:[%s1730 + $0x38] sm:$0xf]
      %v1746 = vld [vmem:[%s1730 + $0x3c] sm:$0xf]
      %v1748 = vunpack.c.l.b16 %v1729
      %v1749 = vpack.c.b16 %v1355, %v1748
      %vm1750 = vcmask 1044480
      %v1751 = vrot.slane %v1749, 3
      %v1752 = vrot.slane %v1366, 3
      %v1753 = vsel %vm1750, %v1751, %v1752
      %v1754 = vrot.slane %v1367, 3
      %v1755 = vsel %vm1750, %v1752, %v1754
      %v1756 = vrot.slane %v1368, 3
      %v1757 = vsel %vm1750, %v1754, %v1756
      %v1758 = vrot.slane %v1369, 3
      %v1759 = vsel %vm1750, %v1756, %v1758
      %v1760 = vrot.slane %v1538, 3
      %v1761 = vsel %vm1750, %v1758, %v1760
      %v1783 = vunpack.c.l.b16 %v1731
      %v1784 = vunpack.c.l.b16 %v1732
      %v1785 = vunpack.c.l.b16 %v1733
      %v1786 = vunpack.c.l.b16 %v1734
      %v1787 = vunpack.c.l.b16 %v1735
      %v1788 = vunpack.c.l.b16 %v1736
      %v1789 = vunpack.c.l.b16 %v1737
      %v1790 = vunpack.c.l.b16 %v1738
      %v1791 = vunpack.c.l.b16 %v1739
      %v1792 = vunpack.c.l.b16 %v1740
      %v1793 = vunpack.c.l.b16 %v1741
      %v1794 = vunpack.c.l.b16 %v1742
      %v1795 = vunpack.c.l.b16 %v1743
      %v1796 = vunpack.c.l.b16 %v1744
      %v1797 = vunpack.c.l.b16 %v1745
      %v1798 = vunpack.c.l.b16 %v1746
      %v1799 = vpack.c.b16 %v1784, %v1783
      %v1800 = vpack.c.b16 %v1786, %v1785
      %v1801 = vpack.c.b16 %v1788, %v1787
      %v1802 = vpack.c.b16 %v1790, %v1789
      %v1803 = vpack.c.b16 %v1792, %v1791
      %v1804 = vpack.c.b16 %v1794, %v1793
      %v1805 = vpack.c.b16 %v1796, %v1795
      %v1806 = vpack.c.b16 %v1798, %v1797
      %1815 = vmatprep.subr.bf16.mxu0 0
      %1816 = vmatpush1.bf16.msra.mxu0 %v1806
      %1817 = vmatprep.subr.bf16.mxu0 0
      %1818 = vmatpush1.bf16.msra.mxu0 %v1805
      %1819 = vmatprep.subr.bf16.mxu0 0
      %1820 = vmatpush1.bf16.msra.mxu0 %v1804
      %1821 = vmatprep.subr.bf16.mxu0 0
      %1822 = vmatpush1.bf16.msra.mxu0 %v1803
      %1823 = vmatprep.subr.bf16.mxu0 0
      %1824 = vmatpush1.bf16.msra.mxu0 %v1802
      %1825 = vmatprep.subr.bf16.mxu0 0
      %1826 = vmatpush1.bf16.msra.mxu0 %v1801
      %1827 = vmatprep.subr.bf16.mxu0 0
      %1828 = vmatpush1.bf16.msra.mxu0 %v1800
      %1829 = vmatprep.subr.bf16.mxu0 0
      %1830 = vmatpush1.bf16.msra.mxu0 %v1799
      %1831 = vmatprep.subr.bf16.mxu0 0
      %1832 = vmatpush2.bf16.msra.mxu0 0
      %1833 = vmatprep.subr.bf16.mxu0 0
      %1834 = vmatpush2.bf16.msra.mxu0 0
      %1835 = vmatprep.subr.bf16.mxu0 0
      %1836 = vmatpush2.bf16.msra.mxu0 0
      %1837 = vmatprep.subr.bf16.mxu0 0
      %1838 = vmatpush2.bf16.msra.mxu0 0
      %1839 = vmatprep.subr.bf16.mxu0 0
      %1840 = vmatpush2.bf16.msra.mxu0 0
      %1841 = vmatprep.subr.bf16.mxu0 0
      %1842 = vmatpush2.bf16.msra.mxu0 0
      %1843 = vmatprep.subr.bf16.mxu0 0
      %1844 = vmatpush2.bf16.msra.mxu0 0
      %1845 = vmatprep.subr.bf16.mxu0 0
      %1846 = vmatpush2.bf16.msra.mxu0 0
      %1847 = vmatprep.mubr.bf16.mxu0 0
      %1848 = vmatmul.mubr.bf16.gmra.mxu0 %v1753
      %v1849 = vpop.f32.mrf.mxu0
      %v1850 = vadd.f32 0.0, %v1849
      %v1851 = vpop.f32.mrf.mxu0
      %v1852 = vpop.f32.mrf.mxu0
      %v1853 = vadd.f32 0.0, %v1852
      %v1854 = vpop.f32.mrf.mxu0
      %1855 = vmatprep.mubr.bf16.mxu0 0
      %1856 = vmatmul.mubr.bf16.gmra.mxu0 %v1755
      %v1857 = vpop.f32.mrf.mxu0
      %v1858 = vadd.f32 0.0, %v1857
      %v1859 = vpop.f32.mrf.mxu0
      %v1860 = vpop.f32.mrf.mxu0
      %v1861 = vadd.f32 0.0, %v1860
      %v1862 = vpop.f32.mrf.mxu0
      %1863 = vmatprep.mubr.bf16.mxu0 0
      %1864 = vmatmul.mubr.bf16.gmra.mxu0 %v1757
      %v1865 = vpop.f32.mrf.mxu0
      %v1866 = vadd.f32 0.0, %v1865
      %v1867 = vpop.f32.mrf.mxu0
      %v1868 = vpop.f32.mrf.mxu0
      %v1869 = vadd.f32 0.0, %v1868
      %v1870 = vpop.f32.mrf.mxu0
      %1871 = vmatprep.mubr.bf16.mxu0 0
      %1872 = vmatmul.mubr.bf16.gmra.mxu0 %v1759
      %v1873 = vpop.f32.mrf.mxu0
      %v1874 = vadd.f32 0.0, %v1873
      %v1875 = vpop.f32.mrf.mxu0
      %v1876 = vpop.f32.mrf.mxu0
      %v1877 = vadd.f32 0.0, %v1876
      %v1878 = vpop.f32.mrf.mxu0
      %1879 = vmatprep.mubr.bf16.mxu0 0
      %1880 = vmatmul.mubr.bf16.gmra.mxu0 %v1761
      %v1881 = vpop.f32.mrf.mxu0
      %v1882 = vadd.f32 0.0, %v1881
      %v1883 = vpop.f32.mrf.mxu0
      %v1884 = vpop.f32.mrf.mxu0
      %v1885 = vadd.f32 0.0, %v1884
      %v1886 = vpop.f32.mrf.mxu0
      %1887 = vdwg.mxu0
      %v1888 = vadd.f32 %v1719, %v1850
      %v1889 = vadd.f32 %v1720, %v1853
      %v1890 = vadd.f32 %v1721, %v1858
      %v1891 = vadd.f32 %v1722, %v1861
      %v1892 = vadd.f32 %v1723, %v1866
      %v1893 = vadd.f32 %v1724, %v1869
      %v1894 = vadd.f32 %v1725, %v1874
      %v1895 = vadd.f32 %v1726, %v1877
      %v1896 = vadd.f32 %v1727, %v1882
      %v1897 = vadd.f32 %v1728, %v1885
      %v1898 = vlaneseq
      %v1899 = vshrl.u32 %v1898, 7
      %v1900 = vadd.s32 %v1899, 8
      %v1901 = vadd.s32 %v1899, 16
      %v1902 = vadd.s32 %v1899, 24
      %v1903 = vadd.s32 %v1899, 32
      %v1904 = vadd.s32 %v1899, 40
      %v1905 = vadd.s32 %v1899, 48
      %v1906 = vadd.s32 %v1899, 56
      %v1907 = vadd.s32 %v1899, 64
      %v1908 = vadd.s32 %v1899, 72
      %vm1909 = vcmp.lt.s32.totalorder %v1899, 0
      %v1910 = vsub.s32 0, %v1899
      %v1911 = vsel %vm1909, %v1910, %v1899
      %v1912 = vmul.u32.u64.compose %v1911, 3435973837
      %v1913 = vextract.low.u32 %v1912
      %v1914 = vextract.high.u32 %v1912
      %v1915 = vshrl.u32 %v1914, 3
      %v1916 = vmul.u32 %v1915, 10
      %v1917 = vsub.s32 %v1911, %v1916
      %v1918 = vsub.s32 0, %v1917
      %v1919 = vsel %vm1909, %v1918, %v1917
      %vm1920 = vcmp.lt.s32.totalorder %v1900, 0
      %v1921 = vsub.s32 0, %v1900
      %v1922 = vsel %vm1920, %v1921, %v1900
      %v1923 = vmul.u32.u64.compose %v1922, 3435973837
      %v1924 = vextract.low.u32 %v1923
      %v1925 = vextract.high.u32 %v1923
      %v1926 = vshrl.u32 %v1925, 3
      %v1927 = vmul.u32 %v1926, 10
      %v1928 = vsub.s32 %v1922, %v1927
      %v1929 = vsub.s32 0, %v1928
      %v1930 = vsel %vm1920, %v1929, %v1928
      %vm1931 = vcmp.lt.s32.totalorder %v1901, 0
      %v1932 = vsub.s32 0, %v1901
      %v1933 = vsel %vm1931, %v1932, %v1901
      %v1934 = vmul.u32.u64.compose %v1933, 3435973837
      %v1935 = vextract.low.u32 %v1934
      %v1936 = vextract.high.u32 %v1934
      %v1937 = vshrl.u32 %v1936, 3
      %v1938 = vmul.u32 %v1937, 10
      %v1939 = vsub.s32 %v1933, %v1938
      %v1940 = vsub.s32 0, %v1939
      %v1941 = vsel %vm1931, %v1940, %v1939
      %vm1942 = vcmp.lt.s32.totalorder %v1902, 0
      %v1943 = vsub.s32 0, %v1902
      %v1944 = vsel %vm1942, %v1943, %v1902
      %v1945 = vmul.u32.u64.compose %v1944, 3435973837
      %v1946 = vextract.low.u32 %v1945
      %v1947 = vextract.high.u32 %v1945
      %v1948 = vshrl.u32 %v1947, 3
      %v1949 = vmul.u32 %v1948, 10
      %v1950 = vsub.s32 %v1944, %v1949
      %v1951 = vsub.s32 0, %v1950
      %v1952 = vsel %vm1942, %v1951, %v1950
      %vm1953 = vcmp.lt.s32.totalorder %v1903, 0
      %v1954 = vsub.s32 0, %v1903
      %v1955 = vsel %vm1953, %v1954, %v1903
      %v1956 = vmul.u32.u64.compose %v1955, 3435973837
      %v1957 = vextract.low.u32 %v1956
      %v1958 = vextract.high.u32 %v1956
      %v1959 = vshrl.u32 %v1958, 3
      %v1960 = vmul.u32 %v1959, 10
      %v1961 = vsub.s32 %v1955, %v1960
      %v1962 = vsub.s32 0, %v1961
      %v1963 = vsel %vm1953, %v1962, %v1961
      %vm1964 = vcmp.lt.s32.totalorder %v1904, 0
      %v1965 = vsub.s32 0, %v1904
      %v1966 = vsel %vm1964, %v1965, %v1904
      %v1967 = vmul.u32.u64.compose %v1966, 3435973837
      %v1968 = vextract.low.u32 %v1967
      %v1969 = vextract.high.u32 %v1967
      %v1970 = vshrl.u32 %v1969, 3
      %v1971 = vmul.u32 %v1970, 10
      %v1972 = vsub.s32 %v1966, %v1971
      %v1973 = vsub.s32 0, %v1972
      %v1974 = vsel %vm1964, %v1973, %v1972
      %vm1975 = vcmp.lt.s32.totalorder %v1905, 0
      %v1976 = vsub.s32 0, %v1905
      %v1977 = vsel %vm1975, %v1976, %v1905
      %v1978 = vmul.u32.u64.compose %v1977, 3435973837
      %v1979 = vextract.low.u32 %v1978
      %v1980 = vextract.high.u32 %v1978
      %v1981 = vshrl.u32 %v1980, 3
      %v1982 = vmul.u32 %v1981, 10
      %v1983 = vsub.s32 %v1977, %v1982
      %v1984 = vsub.s32 0, %v1983
      %v1985 = vsel %vm1975, %v1984, %v1983
      %vm1986 = vcmp.lt.s32.totalorder %v1906, 0
      %v1987 = vsub.s32 0, %v1906
      %v1988 = vsel %vm1986, %v1987, %v1906
      %v1989 = vmul.u32.u64.compose %v1988, 3435973837
      %v1990 = vextract.low.u32 %v1989
      %v1991 = vextract.high.u32 %v1989
      %v1992 = vshrl.u32 %v1991, 3
      %v1993 = vmul.u32 %v1992, 10
      %v1994 = vsub.s32 %v1988, %v1993
      %v1995 = vsub.s32 0, %v1994
      %v1996 = vsel %vm1986, %v1995, %v1994
      %vm1997 = vcmp.lt.s32.totalorder %v1907, 0
      %v1998 = vsub.s32 0, %v1907
      %v1999 = vsel %vm1997, %v1998, %v1907
      %v2000 = vmul.u32.u64.compose %v1999, 3435973837
      %v2001 = vextract.low.u32 %v2000
      %v2002 = vextract.high.u32 %v2000
      %v2003 = vshrl.u32 %v2002, 3
      %v2004 = vmul.u32 %v2003, 10
      %v2005 = vsub.s32 %v1999, %v2004
      %v2006 = vsub.s32 0, %v2005
      %v2007 = vsel %vm1997, %v2006, %v2005
      %vm2008 = vcmp.lt.s32.totalorder %v1908, 0
      %v2009 = vsub.s32 0, %v1908
      %v2010 = vsel %vm2008, %v2009, %v1908
      %v2011 = vmul.u32.u64.compose %v2010, 3435973837
      %v2012 = vextract.low.u32 %v2011
      %v2013 = vextract.high.u32 %v2011
      %v2014 = vshrl.u32 %v2013, 3
      %v2015 = vmul.u32 %v2014, 10
      %v2016 = vsub.s32 %v2010, %v2015
      %v2017 = vsub.s32 0, %v2016
      %v2018 = vsel %vm2008, %v2017, %v2016
      %vm2019 = vcmp.ne.s32.totalorder %v1919, 0
      %vm2020 = vcmp.ne.s32.totalorder %v1930, 0
      %vm2021 = vcmp.ne.s32.totalorder %v1941, 0
      %vm2022 = vcmp.ne.s32.totalorder %v1952, 0
      %vm2023 = vcmp.ne.s32.totalorder %v1963, 0
      %vm2024 = vcmp.ne.s32.totalorder %v1974, 0
      %vm2025 = vcmp.ne.s32.totalorder %v1985, 0
      %vm2026 = vcmp.ne.s32.totalorder %v1996, 0
      %vm2027 = vcmp.ne.s32.totalorder %v2007, 0
      %vm2028 = vcmp.ne.s32.totalorder %v2018, 0
      %vm2029 = vcmp.lt.s32.totalorder %v1919, 0
      %vm2030 = vcmp.lt.s32.totalorder %v1930, 0
      %vm2031 = vcmp.lt.s32.totalorder %v1941, 0
      %vm2032 = vcmp.lt.s32.totalorder %v1952, 0
      %vm2033 = vcmp.lt.s32.totalorder %v1963, 0
      %vm2034 = vcmp.lt.s32.totalorder %v1974, 0
      %vm2035 = vcmp.lt.s32.totalorder %v1985, 0
      %vm2036 = vcmp.lt.s32.totalorder %v1996, 0
      %vm2037 = vcmp.lt.s32.totalorder %v2007, 0
      %vm2038 = vcmp.lt.s32.totalorder %v2018, 0
      %vm2039 = vmand %vm2029, %vm2019
      %vm2040 = vmand %vm2030, %vm2020
      %vm2041 = vmand %vm2031, %vm2021
      %vm2042 = vmand %vm2032, %vm2022
      %vm2043 = vmand %vm2033, %vm2023
      %vm2044 = vmand %vm2034, %vm2024
      %vm2045 = vmand %vm2035, %vm2025
      %vm2046 = vmand %vm2036, %vm2026
      %vm2047 = vmand %vm2037, %vm2027
      %vm2048 = vmand %vm2038, %vm2028
      %v2049 = vadd.s32 %v1919, 10
      %v2050 = vadd.s32 %v1930, 10
      %v2051 = vadd.s32 %v1941, 10
      %v2052 = vadd.s32 %v1952, 10
      %v2053 = vadd.s32 %v1963, 10
      %v2054 = vadd.s32 %v1974, 10
      %v2055 = vadd.s32 %v1985, 10
      %v2056 = vadd.s32 %v1996, 10
      %v2057 = vadd.s32 %v2007, 10
      %v2058 = vadd.s32 %v2018, 10
      %v2059 = vsel %vm2039, %v2049, %v1919
      %v2060 = vsel %vm2040, %v2050, %v1930
      %v2061 = vsel %vm2041, %v2051, %v1941
      %v2062 = vsel %vm2042, %v2052, %v1952
      %v2063 = vsel %vm2043, %v2053, %v1963
      %v2064 = vsel %vm2044, %v2054, %v1974
      %v2065 = vsel %vm2045, %v2055, %v1985
      %v2066 = vsel %vm2046, %v2056, %v1996
      %v2067 = vsel %vm2047, %v2057, %v2007
      %v2068 = vsel %vm2048, %v2058, %v2018
      %vm2069 = vcmp.lt.s32.totalorder %v2059, 8
      %vm2070 = vcmp.lt.s32.totalorder %v2060, 8
      %vm2071 = vcmp.lt.s32.totalorder %v2061, 8
      %vm2072 = vcmp.lt.s32.totalorder %v2062, 8
      %vm2073 = vcmp.lt.s32.totalorder %v2063, 8
      %vm2074 = vcmp.lt.s32.totalorder %v2064, 8
      %vm2075 = vcmp.lt.s32.totalorder %v2065, 8
      %vm2076 = vcmp.lt.s32.totalorder %v2066, 8
      %vm2077 = vcmp.lt.s32.totalorder %v2067, 8
      %vm2078 = vcmp.lt.s32.totalorder %v2068, 8
      %v2079 = vsel %vm2069, 1, 0
      %v2080 = vsel %vm2070, 1, 0
      %v2081 = vsel %vm2071, 1, 0
      %v2082 = vsel %vm2072, 1, 0
      %v2083 = vsel %vm2073, 1, 0
      %v2084 = vsel %vm2074, 1, 0
      %v2085 = vsel %vm2075, 1, 0
      %v2086 = vsel %vm2076, 1, 0
      %v2087 = vsel %vm2077, 1, 0
      %v2088 = vsel %vm2078, 1, 0
      %vm2089 = vcmp.eq.s32.totalorder %v2079, 1
      %vm2090 = vcmp.eq.s32.totalorder %v2080, 1
      %vm2091 = vcmp.eq.s32.totalorder %v2081, 1
      %vm2092 = vcmp.eq.s32.totalorder %v2082, 1
      %vm2093 = vcmp.eq.s32.totalorder %v2083, 1
      %vm2094 = vcmp.eq.s32.totalorder %v2084, 1
      %vm2095 = vcmp.eq.s32.totalorder %v2085, 1
      %vm2096 = vcmp.eq.s32.totalorder %v2086, 1
      %vm2097 = vcmp.eq.s32.totalorder %v2087, 1
      %vm2098 = vcmp.eq.s32.totalorder %v2088, 1
      %v2099 = vsel %vm2089, %v1888, 0.0
      %v2100 = vsel %vm2090, %v1889, 0.0
      %v2101 = vsel %vm2091, %v1890, 0.0
      %v2102 = vsel %vm2092, %v1891, 0.0
      %v2103 = vsel %vm2093, %v1892, 0.0
      %v2104 = vsel %vm2094, %v1893, 0.0
      %v2105 = vsel %vm2095, %v1894, 0.0
      %v2106 = vsel %vm2096, %v1895, 0.0
      %v2107 = vsel %vm2097, %v1896, 0.0
      %v2108 = vsel %vm2098, %v1897, 0.0
      %2109 = vst [vmem:[%s192] sm:$0xff] %v2099
      %2110 = vst [vmem:[%s192 + $0x8] sm:$0xff] %v2100
      %2111 = vst [vmem:[%s192 + $0x10] sm:$0xff] %v2101
      %2112 = vst [vmem:[%s192 + $0x18] sm:$0xff] %v2102
      %2113 = vst [vmem:[%s192 + $0x20] sm:$0xff] %v2103
      %2114 = vst [vmem:[%s192 + $0x28] sm:$0xff] %v2104
      %2115 = vst [vmem:[%s192 + $0x30] sm:$0xff] %v2105
      %2116 = vst [vmem:[%s192 + $0x38] sm:$0xff] %v2106
      %2117 = vst [vmem:[%s192 + $0x40] sm:$0xff] %v2107
      %2118 = vst [vmem:[%s192 + $0x48] sm:$0xff] %v2108
      %p2119 = scmp.eq.s32.totalorder %s16, 0
      // Predicated region
      $region29: #{bottleneck_forward.8} parent=27 // pred_check
        %p2120 = pneg %p2119
      $region30: #{bottleneck_forward.8} parent=27 // pred_check_branch
        %2122 = sbr.rel (%p2120) target = $region32
      $region31: #{bottleneck_forward.8} parent=27 // pred_region
        %2123 = vst [vmem:[%s3] sm:$0x1] 0.0
        %2124 = vst [vmem:[%s4] sm:$0x1] 0.0
      $region32: #{bottleneck_forward.8} parent=27 // pred_fallthru
        _
      %v2125 = vld [vmem:[%s3] sm:$0x1]
      %v2126 = vadd.f32 %v2099, %v2100
      %v2127 = vadd.f32 %v2126, %v2101
      %v2128 = vadd.f32 %v2127, %v2102
      %v2129 = vadd.f32 %v2128, %v2103
      %v2130 = vadd.f32 %v2129, %v2104
      %v2131 = vadd.f32 %v2130, %v2105
      %v2132 = vadd.f32 %v2131, %v2106
      %v2133 = vadd.f32 %v2132, %v2107
      %v2134 = vadd.f32 %v2133, %v2108
      %v2135 = vrot.slane %v2134, 4
      %v2136 = vadd.f32 %v2134, %v2135
      %v2137 = vrot.slane %v2136, 2
      %v2138 = vadd.f32 %v2136, %v2137
      %v2139 = vrot.slane %v2138, 1
      %v2140 = vadd.f32 %v2138, %v2139
      %v2141 = vadd.f32 %v2125, %v2140
      %2142 = vst [vmem:[%s3] sm:$0x1] %v2141
      %v2143 = vld [vmem:[%s4] sm:$0x1]
      %v2144 = vmul.f32 %v2099, %v2099
      %v2145 = vmul.f32 %v2100, %v2100
      %v2146 = vmul.f32 %v2101, %v2101
      %v2147 = vmul.f32 %v2102, %v2102
      %v2148 = vmul.f32 %v2103, %v2103
      %v2149 = vmul.f32 %v2104, %v2104
      %v2150 = vmul.f32 %v2105, %v2105
      %v2151 = vmul.f32 %v2106, %v2106
      %v2152 = vmul.f32 %v2107, %v2107
      %v2153 = vmul.f32 %v2108, %v2108
      %v2154 = vadd.f32 %v2144, %v2145
      %v2155 = vadd.f32 %v2154, %v2146
      %v2156 = vadd.f32 %v2155, %v2147
      %v2157 = vadd.f32 %v2156, %v2148
      %v2158 = vadd.f32 %v2157, %v2149
      %v2159 = vadd.f32 %v2158, %v2150
      %v2160 = vadd.f32 %v2159, %v2151
      %v2161 = vadd.f32 %v2160, %v2152
      %v2162 = vadd.f32 %v2161, %v2153
      %v2163 = vrot.slane %v2162, 4
      %v2164 = vadd.f32 %v2162, %v2163
      %v2165 = vrot.slane %v2164, 2
      %v2166 = vadd.f32 %v2164, %v2165
      %v2167 = vrot.slane %v2166, 1
      %v2168 = vadd.f32 %v2166, %v2167
      %v2169 = vadd.f32 %v2143, %v2168
      %2170 = vst [vmem:[%s4] sm:$0x1] %v2169
      %p2171 = scmp.lt.s32.totalorder %s16, 1
      %s2172 = scalar_select %p2171, %s16, 1
      %s2173 = smul.addr %s2172, 10
      %s2174 = smul.addr %s2173, 8
      %s2175 = scalar_lea.vmem %s2, %s2174
      // Predicated region
      $region33: #{bottleneck_forward.8} parent=27 // pred_check
        %p2176 = pneg %p81
      $region34: #{bottleneck_forward.8} parent=27 // pred_check_branch
        %2178 = sbr.rel (%p2176) target = $region36
      $region35: #{bottleneck_forward.8} parent=27 // pred_region
        _
      $region36: #{bottleneck_forward.8} parent=27 // pred_fallthru
        _
      // Predicated region
      $region37: #{bottleneck_forward.8} parent=27 // pred_check
        %p2179 = pneg %p102
      $region38: #{bottleneck_forward.8} parent=27 // pred_check_branch
        %2181 = sbr.rel (%p2179) target = $region40
      $region39: #{bottleneck_forward.8} parent=27 // pred_region
        _
      $region40: #{bottleneck_forward.8} parent=27 // pred_fallthru
        _
      // Predicated region
      $region41: #{bottleneck_forward.8} parent=27 // pred_check
        %p2182 = pneg %p123
      $region42: #{bottleneck_forward.8} parent=27 // pred_check_branch
        %2184 = sbr.rel (%p2182) target = $region44
      $region43: #{bottleneck_forward.8} parent=27 // pred_region
        _
      $region44: #{bottleneck_forward.8} parent=27 // pred_fallthru
        _
      // Predicated region
      $region45: #{bottleneck_forward.8} parent=27 // pred_check
        %p2185 = pneg %p102
      $region46: #{bottleneck_forward.8} parent=27 // pred_check_branch
        %2187 = sbr.rel (%p2185) target = $region48
      $region47: #{bottleneck_forward.8} parent=27 // pred_region
        _
      $region48: #{bottleneck_forward.8} parent=27 // pred_fallthru
        _
      // Predicated region
      $region49: #{bottleneck_forward.8} parent=27 // pred_check
        %p2188 = pneg %p123
      $region50: #{bottleneck_forward.8} parent=27 // pred_check_branch
        %2190 = sbr.rel (%p2188) target = $region52
      $region51: #{bottleneck_forward.8} parent=27 // pred_region
        _
      $region52: #{bottleneck_forward.8} parent=27 // pred_fallthru
        _
    $region28: #{bottleneck_forward.8} parent=5 // pred_fallthru
      _
    %p2191 = scmp.le.s32.totalorder 2, %s11
    // Predicated region
    $region53: #{bottleneck_forward.8} parent=5 // pred_check
      %p2192 = pneg %p2191
    $region54: #{bottleneck_forward.8} parent=5 // pred_check_branch
      %2194 = sbr.rel (%p2192) target = $region56
    $region55: #{bottleneck_forward.8} parent=5 // pred_region
      %s2195 = ssub.s32 %s11, 2
      // Predicated region
      $region57: #{bottleneck_forward.8} parent=55 // pred_check
        %p2196 = pneg %p87
      $region58: #{bottleneck_forward.8} parent=55 // pred_check_branch
        %2198 = sbr.rel (%p2196) target = $region60
      $region59: #{bottleneck_forward.8} parent=55 // pred_region
        %p2199 = scmp.lt.s32.totalorder %s17, 1
        %s2200 = scalar_select %p2199, %s17, 1
        %s2201 = smul.addr %s2200, 10
        %s2202 = smul.addr %s2201, 8
        %s2203 = scalar_lea.vmem %s2, %s2202
      $region60: #{bottleneck_forward.8} parent=55 // pred_fallthru
        _
    $region56: #{bottleneck_forward.8} parent=5 // pred_fallthru
      _
  $region6: #{bottleneck_forward.8} parent=0 // loop_footer
    %s15 = sadd.s32 1, %s11
  $region7: #{bottleneck_forward.8} parent=0 // loop_footer_branch
    %10 = sbr.rel target = $region3
  $region8: #{bottleneck_forward.8} parent=0 // loop_exit
    _

</llo_original>
